<compile_context>
chip_gen: v6e
topology: v6e:2x2x1
jax: 0.10.0
libtpu: 0.0.40
codegen_flags: <defaults>
</compile_context>

<pallas_src>
import functools

import jax
import jax.numpy as jnp
import numpy as np
from jax import lax
from jax.experimental import pallas as pl
from jax.experimental.pallas import tpu as pltpu


# ----------------------------------------------------------------------------
# Small helpers.
# ----------------------------------------------------------------------------
def _round_up(x, m):
    return (x + m - 1) // m * m


def _cdiv(a, b):
    return (a + b - 1) // b


# Compat shim (older jax spelled this TPUCompilerParams).
_CompilerParams = getattr(pltpu, "CompilerParams", None) or getattr(
    pltpu, "TPUCompilerParams", None)

_VMEM_LIMIT = 32 * 1024 * 1024  # worst-case working set is ~8 MB at tm=512


def _device_config():
    """(tm_max, min_m_tiles, dimension_semantics) per TPU generation."""
    tm_max, min_tiles, sem = 256, 1, ("parallel",)
    try:
        kind = jax.devices()[0].device_kind.lower()
    except Exception:
        return tm_max, min_tiles, sem
    if "v6" in kind:
        tm_max = 512                       # single TC, 128 MiB VMEM: long M tiles
    elif "v7" in kind:
        tm_max, min_tiles = 256, 2         # 2 TCs/chip, 64 MiB VMEM
        core_par = getattr(pltpu, "CORE_PARALLEL", None)
        if core_par is not None:
            sem = (core_par,)              # explicit cross-core sharding of M tiles
    # v5e / v5p / unknown: tm_max=256 (raised from 128), single tile allowed.
    return tm_max, min_tiles, sem


_TM_MAX, _MIN_TILES, _DIM_SEM = _device_config()


def _choose_tiles(m):
    """(tm, Mp): tm multiple of 16 (bf16 sublanes); padding waste < 16 rows."""
    m16 = _round_up(m, 16)
    ntiles = max(1, _cdiv(m16, _TM_MAX))
    if _MIN_TILES > 1 and m16 >= 16 * _MIN_TILES:
        # Only multi-TensorCore chips (v7x) benefit from forcing >=2 tiles.
        ntiles = _round_up(max(ntiles, _MIN_TILES), _MIN_TILES)
    tm = _round_up(_cdiv(m16, ntiles), 16)
    return tm, tm * ntiles


def _compiler_params():
    return _CompilerParams(dimension_semantics=_DIM_SEM,
                           vmem_limit_bytes=_VMEM_LIMIT)


# ----------------------------------------------------------------------------
# Pallas kernels (value accumulation, no VMEM scratch).
# ----------------------------------------------------------------------------
def _conv_kernel(a_ref, w_ref, b_ref, o_ref):
    """One K-concatenated matmul per tile: (tm, Kp) @ (Kp, Np) + bias -> bf16."""
    acc = jnp.dot(a_ref[...], w_ref[...], preferred_element_type=jnp.float32)
    o_ref[...] = (acc + b_ref[...]).astype(o_ref.dtype)


def _conv_fused_kernel(a_ref, w_ref, b_ref, w2_ref, b2_ref, o_ref):
    """Last 3x3 conv + fused 1x1 projection epilogue (no HBM round trip).

    a_ref: (tm, Kp) bf16; w_ref: (Kp, C4p) bf16; b_ref: (1, C4p) f32
    w2_ref: (C4p, Hp) bf16; b2_ref: (1, Hp) f32; o_ref: (tm, Hp) f32
    """
    acc = jnp.dot(a_ref[...], w_ref[...], preferred_element_type=jnp.float32)
    h = (acc + b_ref[...]).astype(w2_ref.dtype)          # bf16 hidden activation
    out = jnp.dot(h, w2_ref[...], preferred_element_type=jnp.float32)
    o_ref[...] = (out + b2_ref[...]).astype(o_ref.dtype)


# ----------------------------------------------------------------------------
# pallas_call wrappers.
# ----------------------------------------------------------------------------
def _conv3x3_pallas(taps, kp, wk, bias):
    """taps (M, Kcat) bf16 @ wk (Kp, Np) bf16 + bias -> (Mp, Np) bf16."""
    m, kcat = taps.shape
    n_out = wk.shape[1]
    tm, mp = _choose_tiles(m)
    taps_p = jnp.pad(taps, ((0, mp - m), (0, kp - kcat)))

    flops = 2 * mp * kp * n_out
    bytes_accessed = (taps_p.size * 2 + wk.size * 2 + bias.size * 4
                      + mp * n_out * 2)
    return pl.pallas_call(
        _conv_kernel,
        out_shape=jax.ShapeDtypeStruct((mp, n_out), jnp.bfloat16),
        grid=(mp // tm,),
        in_specs=[
            pl.BlockSpec((tm, kp), lambda i: (i, 0)),
            pl.BlockSpec((kp, n_out), lambda i: (0, 0)),
            pl.BlockSpec((1, n_out), lambda i: (0, 0)),
        ],
        out_specs=pl.BlockSpec((tm, n_out), lambda i: (i, 0)),
        compiler_params=_compiler_params(),
        cost_estimate=pl.CostEstimate(flops=flops, transcendentals=0,
                                      bytes_accessed=bytes_accessed),
    )(taps_p, wk, bias)


def _conv3x3_1x1_fused_pallas(taps, kp, wk, bias, w2, b2):
    """Last 3x3 conv + fused 1x1 projection -> (Mp, Hp) f32."""
    m, kcat = taps.shape
    n_mid = wk.shape[1]
    n_out = w2.shape[1]
    tm, mp = _choose_tiles(m)
    taps_p = jnp.pad(taps, ((0, mp - m), (0, kp - kcat)))

    flops = 2 * mp * kp * n_mid + 2 * mp * n_mid * n_out
    bytes_accessed = (taps_p.size * 2 + wk.size * 2 + bias.size * 4
                      + w2.size * 2 + b2.size * 4 + mp * n_out * 4)
    return pl.pallas_call(
        _conv_fused_kernel,
        out_shape=jax.ShapeDtypeStruct((mp, n_out), jnp.float32),
        grid=(mp // tm,),
        in_specs=[
            pl.BlockSpec((tm, kp), lambda i: (i, 0)),
            pl.BlockSpec((kp, n_mid), lambda i: (0, 0)),
            pl.BlockSpec((1, n_mid), lambda i: (0, 0)),
            pl.BlockSpec((n_mid, n_out), lambda i: (0, 0)),
            pl.BlockSpec((1, n_out), lambda i: (0, 0)),
        ],
        out_specs=pl.BlockSpec((tm, n_out), lambda i: (i, 0)),
        compiler_params=_compiler_params(),
        cost_estimate=pl.CostEstimate(flops=flops, transcendentals=0,
                                      bytes_accessed=bytes_accessed),
    )(taps_p, wk, bias, w2, b2)


# ----------------------------------------------------------------------------
# Glue: stride-2 3x3 window extraction, concatenated along K.
# (Cheap strided slices + one concat in XLA; review-sanctioned fallback to
# in-kernel halo'd tap generation.)
# ----------------------------------------------------------------------------
def _extract_taps_concat(x_nhwc, *, ksize=3, stride=2, pad=1):
    """Return ((N*ho*wo, ksize*ksize*C) bf16, ho, wo) with tap-major K order."""
    n, h, w, c = x_nhwc.shape
    xp = jnp.pad(x_nhwc, ((0, 0), (pad, pad), (pad, pad), (0, 0)))
    ho = (h + 2 * pad - ksize) // stride + 1
    wo = (w + 2 * pad - ksize) // stride + 1
    taps = []
    for di in range(ksize):
        for dj in range(ksize):
            taps.append(xp[:, di:di + stride * (ho - 1) + 1:stride,
                           dj:dj + stride * (wo - 1) + 1:stride, :])
    cat = jnp.concatenate(taps, axis=-1)        # (n, ho, wo, 9*c), tap-major
    return cat.reshape(n * ho * wo, ksize * ksize * c), ho, wo


# ----------------------------------------------------------------------------
# Parameter preparation (hoisted out of the forward pass).
# ----------------------------------------------------------------------------
def prepare_params(params):
    """One-time transpose / K-concat / pad / bf16-cast of weights and biases."""
    conv_w, conv_b, conv_dims = [], [], []
    for (w, b) in params["convs3x3"]:
        co, ci, kh, kw = (int(d) for d in w.shape)
        kcat = kh * kw * ci
        kp = _round_up(kcat, 16)   # bf16 sublane multiple; only layer 1 pads (27->32)
        cp = _round_up(co, 128)    # lane-dense output stores / carries
        # (co, ci, kh, kw) -> (kh, kw, ci, co) -> (kh*kw*ci, co): matches the
        # tap-major channel-minor K order produced by _extract_taps_concat.
        wk = jnp.transpose(w, (2, 3, 1, 0)).reshape(kcat, co)
        wk = jnp.pad(wk, ((0, kp - kcat), (0, cp - co))).astype(jnp.bfloat16)
        conv_w.append(wk)
        conv_b.append(jnp.pad(b, (0, cp - co)).astype(jnp.float32).reshape(1, cp))
        conv_dims.append((ci, kp))

    w1, b1 = params["conv1x1"]
    hd, c4 = int(w1.shape[0]), int(w1.shape[1])
    c4p = _round_up(c4, 128)       # == last conv's padded C_out (384)
    hp = _round_up(hd, 128)
    w2 = jnp.transpose(w1.reshape(hd, c4), (1, 0))
    w2 = jnp.pad(w2, ((0, c4p - c4), (0, hp - hd))).astype(jnp.bfloat16)
    b2 = jnp.pad(b1, (0, hp - hd)).astype(jnp.float32).reshape(1, hp)

    arrays = {"conv_w": conv_w, "conv_b": conv_b, "w_1x1": w2, "b_1x1": b2}
    dims = (tuple(conv_dims), hd)   # static (hashable) metadata for jit
    return arrays, dims


# ----------------------------------------------------------------------------
# CNNEmbedding forward.
# ----------------------------------------------------------------------------
@functools.partial(jax.jit, static_argnums=(2,))
def cnn_embedding_forward(img_nchw, arrays, dims):
    """img: (B, 3, H, W) f32 (PyTorch NCHW). Returns (B, Hout*Wout, hidden) f32.

    Note: MXU operands and inter-layer activations are bf16 (f32 accumulation),
    so expect ~1e-2-level differences vs a pure-f32 PyTorch reference.
    """
    conv_dims, hidden_dim = dims
    x = jnp.transpose(img_nchw, (0, 2, 3, 1)).astype(jnp.bfloat16)  # NHWC bf16
    n = x.shape[0]
    n_layers = len(conv_dims)
    out = None
    for idx in range(n_layers):
        ci, kp = conv_dims[idx]
        taps, ho, wo = _extract_taps_concat(x[..., :ci])   # slice real channels
        m = n * ho * wo
        if idx < n_layers - 1:
            y = _conv3x3_pallas(taps, kp, arrays["conv_w"][idx],
                                arrays["conv_b"][idx])
            x = y[:m].reshape(n, ho, wo, y.shape[1])        # carry channel-padded
        else:
            # Last 3x3 conv with the 1x1 projection fused in the epilogue.
            # (Fusing L3 into this kernel as well would save one more launch
            # for tiny late-layer M, but needs in-kernel tap generation.)
            y = _conv3x3_1x1_fused_pallas(taps, kp, arrays["conv_w"][idx],
                                          arrays["conv_b"][idx],
                                          arrays["w_1x1"], arrays["b_1x1"])
            # Rearrange 'b c h w -> b (h w) c': already channels-last.
            out = y[:m, :hidden_dim].reshape(n, ho * wo, hidden_dim)
    # TODO(synk): self.projection is an Identity (dummy weight) and never runs
    # in forward, so it is intentionally not implemented.
    return out


# ----------------------------------------------------------------------------
# Parameter init matching the PyTorch module's Conv2d defaults.
# ----------------------------------------------------------------------------
def init_params(key, hidden_dim=192):
    n_filter_list = (3, 48, 96, 192, 384)
    convs = []
    for i in range(len(n_filter_list) - 1):
        key, k1, k2 = jax.random.split(key, 3)
        cin, cout = n_filter_list[i], n_filter_list[i + 1]
        bound = 1.0 / np.sqrt(cin * 9)
        w = jax.random.uniform(k1, (cout, cin, 3, 3), jnp.float32, -bound, bound)
        b = jax.random.uniform(k2, (cout,), jnp.float32, -bound, bound)
        convs.append((w, b))
    key, k1, k2 = jax.random.split(key, 3)
    cin = n_filter_list[-1]
    bound = 1.0 / np.sqrt(cin)
    w = jax.random.uniform(k1, (hidden_dim, cin, 1, 1), jnp.float32, -bound, bound)
    b = jax.random.uniform(k2, (hidden_dim,), jnp.float32, -bound, bound)
    return {"convs3x3": convs, "conv1x1": (w, b)}


# ----------------------------------------------------------------------------
# Pure-JAX f32 reference (lax.conv) for correctness checking.
# ----------------------------------------------------------------------------
def reference_forward(img_nchw, params):
    x = img_nchw
    for (w, b) in params["convs3x3"]:
        x = lax.conv_general_dilated(
            x, w, (2, 2), ((1, 1), (1, 1)),
            dimension_numbers=("NCHW", "OIHW", "NCHW"))
        x = x + b[None, :, None, None]
    w1, b1 = params["conv1x1"]
    x = lax.conv_general_dilated(
        x, w1, (1, 1), ((0, 0), (0, 0)),
        dimension_numbers=("NCHW", "OIHW", "NCHW"))
    x = x + b1[None, :, None, None]
    n, c, h, w = x.shape
    return jnp.transpose(x.reshape(n, c, h * w), (0, 2, 1))


if __name__ == "__main__":
    key = jax.random.PRNGKey(0)
    key, pkey, xkey = jax.random.split(key, 3)
    params = init_params(pkey, hidden_dim=192)
    arrays, dims = prepare_params(params)

    # Small image consistent with the module: batch=2, 3 channels, 16x16
    # (spatial 16 -> 8 -> 4 -> 2 -> 1 through the four stride-2 convs).
    img = jax.random.normal(xkey, (2, 3, 16, 16), jnp.float32)

    out = jax.block_until_ready(cnn_embedding_forward(img, arrays, dims))
    ref = jax.block_until_ready(reference_forward(img, params))

    assert out.shape == (2, 1, 192), out.shape
    # bf16 MXU operands / inter-layer activations with f32 accumulation:
    # tolerance loosened vs the pure-f32 reference.
    np.testing.assert_allclose(np.asarray(out, dtype=np.float32),
                               np.asarray(ref), rtol=2e-2, atol=2e-2)
    print("KERNEL_OK")
</pallas_src>

<mosaic_0001>
module attributes {stable_mosaic.version = 11 : i64} {
  func.func @_conv_kernel(%arg0: i32, %arg1: memref<128x32xbf16, #tpu.memory_space<vmem>>, %arg2: memref<32x128xbf16, #tpu.memory_space<vmem>>, %arg3: memref<1x128xf32, #tpu.memory_space<vmem>>, %arg4: memref<128x128xbf16, #tpu.memory_space<vmem>>) attributes {dimension_semantics = [#tpu.dimension_semantics<parallel>], iteration_bounds = array<i64: 1>, scalar_prefetch = 0 : i64, scratch_operands = 0 : i64, tpu.core_type = #tpu.core_type<tc>, window_params = [{transform_indices = @transform_0, window_bounds = array<i64: 128, 32>}, {pipeline_mode = #tpu.pipeline_mode<synchronous>, transform_indices = @transform_1, window_bounds = array<i64: 32, 128>}, {pipeline_mode = #tpu.pipeline_mode<synchronous>, transform_indices = @transform_2, window_bounds = array<i64: 1, 128>}, {transform_indices = @transform_3, window_bounds = array<i64: 128, 128>}]} {
    %c0 = arith.constant 0 : index
    %c0_0 = arith.constant 0 : index
    %0 = vector.load %arg1[%c0, %c0_0] : memref<128x32xbf16, #tpu.memory_space<vmem>>, vector<128x32xbf16>
    %c0_1 = arith.constant 0 : index
    %c0_2 = arith.constant 0 : index
    %1 = vector.load %arg2[%c0_1, %c0_2] : memref<32x128xbf16, #tpu.memory_space<vmem>>, vector<32x128xbf16>
    %cst = arith.constant dense<0.000000e+00> : vector<128x128xf32>
    %2 = tpu.matmul %0, %1, %cst {dimension_numbers = #tpu.dot_dimension_numbers<[1], [0], [0], [1], [0, 0, 1, 1], [], []>} : vector<128x32xbf16>, vector<32x128xbf16>, vector<128x128xf32> -> vector<128x128xf32>
    %c0_3 = arith.constant 0 : index
    %c0_4 = arith.constant 0 : index
    %3 = vector.load %arg3[%c0_3, %c0_4] : memref<1x128xf32, #tpu.memory_space<vmem>>, vector<1x128xf32>
    %4 = vector.broadcast %3 : vector<1x128xf32> to vector<128x128xf32>
    %5 = arith.addf %2, %4 : vector<128x128xf32>
    %6 = arith.truncf %5 : vector<128x128xf32> to vector<128x128xbf16>
    %c0_5 = arith.constant 0 : index
    %c0_6 = arith.constant 0 : index
    %7 = vector.load %arg4[%c0_5, %c0_6] : memref<128x128xbf16, #tpu.memory_space<vmem>>, vector<128x128xbf16>
    tpu.vector_store %arg4[%c0_5, %c0_6], %6 {strides = array<i32>} : memref<128x128xbf16, #tpu.memory_space<vmem>>, vector<128x128xbf16>,
    return
  }
  func.func @transform_0(%arg0: i32) -> (i32, i32) {
    %c0_i32 = arith.constant 0 : i32
    %c0_i32_0 = arith.constant 0 : i32
    return %arg0, %c0_i32 : i32, i32
  }
  func.func @transform_1(%arg0: i32) -> (i32, i32) {
    %c0_i32 = arith.constant 0 : i32
    %c0_i32_0 = arith.constant 0 : i32
    %c0_i32_1 = arith.constant 0 : i32
    return %c0_i32, %c0_i32_0 : i32, i32
  }
  func.func @transform_2(%arg0: i32) -> (i32, i32) {
    %c0_i32 = arith.constant 0 : i32
    %c0_i32_0 = arith.constant 0 : i32
    %c0_i32_1 = arith.constant 0 : i32
    return %c0_i32, %c0_i32_0 : i32, i32
  }
  func.func @transform_3(%arg0: i32) -> (i32, i32) {
    %c0_i32 = arith.constant 0 : i32
    %c0_i32_0 = arith.constant 0 : i32
    return %arg0, %c0_i32 : i32, i32
  }
}

module attributes {stable_mosaic.version = 11 : i64} {
  func.func @_conv_kernel(%arg0: i32, %arg1: memref<32x432xbf16, #tpu.memory_space<vmem>>, %arg2: memref<432x128xbf16, #tpu.memory_space<vmem>>, %arg3: memref<1x128xf32, #tpu.memory_space<vmem>>, %arg4: memref<32x128xbf16, #tpu.memory_space<vmem>>) attributes {dimension_semantics = [#tpu.dimension_semantics<parallel>], iteration_bounds = array<i64: 1>, scalar_prefetch = 0 : i64, scratch_operands = 0 : i64, tpu.core_type = #tpu.core_type<tc>, window_params = [{transform_indices = @transform_0, window_bounds = array<i64: 32, 432>}, {pipeline_mode = #tpu.pipeline_mode<synchronous>, transform_indices = @transform_1, window_bounds = array<i64: 432, 128>}, {pipeline_mode = #tpu.pipeline_mode<synchronous>, transform_indices = @transform_2, window_bounds = array<i64: 1, 128>}, {transform_indices = @transform_3, window_bounds = array<i64: 32, 128>}]} {
    %c0 = arith.constant 0 : index
    %c0_0 = arith.constant 0 : index
    %0 = vector.load %arg1[%c0, %c0_0] : memref<32x432xbf16, #tpu.memory_space<vmem>>, vector<32x432xbf16>
    %c0_1 = arith.constant 0 : index
    %c0_2 = arith.constant 0 : index
    %1 = vector.load %arg2[%c0_1, %c0_2] : memref<432x128xbf16, #tpu.memory_space<vmem>>, vector<432x128xbf16>
    %cst = arith.constant dense<0.000000e+00> : vector<32x128xf32>
    %2 = tpu.matmul %0, %1, %cst {dimension_numbers = #tpu.dot_dimension_numbers<[1], [0], [0], [1], [0, 0, 1, 1], [], []>} : vector<32x432xbf16>, vector<432x128xbf16>, vector<32x128xf32> -> vector<32x128xf32>
    %c0_3 = arith.constant 0 : index
    %c0_4 = arith.constant 0 : index
    %3 = vector.load %arg3[%c0_3, %c0_4] : memref<1x128xf32, #tpu.memory_space<vmem>>, vector<1x128xf32>
    %4 = vector.broadcast %3 : vector<1x128xf32> to vector<32x128xf32>
    %5 = arith.addf %2, %4 : vector<32x128xf32>
    %6 = arith.truncf %5 : vector<32x128xf32> to vector<32x128xbf16>
    %c0_5 = arith.constant 0 : index
    %c0_6 = arith.constant 0 : index
    %7 = vector.load %arg4[%c0_5, %c0_6] : memref<32x128xbf16, #tpu.memory_space<vmem>>, vector<32x128xbf16>
    tpu.vector_store %arg4[%c0_5, %c0_6], %6 {strides = array<i32>} : memref<32x128xbf16, #tpu.memory_space<vmem>>, vector<32x128xbf16>,
    return
  }
  func.func @transform_0(%arg0: i32) -> (i32, i32) {
    %c0_i32 = arith.constant 0 : i32
    %c0_i32_0 = arith.constant 0 : i32
    return %arg0, %c0_i32 : i32, i32
  }
  func.func @transform_1(%arg0: i32) -> (i32, i32) {
    %c0_i32 = arith.constant 0 : i32
    %c0_i32_0 = arith.constant 0 : i32
    %c0_i32_1 = arith.constant 0 : i32
    return %c0_i32, %c0_i32_0 : i32, i32
  }
  func.func @transform_2(%arg0: i32) -> (i32, i32) {
    %c0_i32 = arith.constant 0 : i32
    %c0_i32_0 = arith.constant 0 : i32
    %c0_i32_1 = arith.constant 0 : i32
    return %c0_i32, %c0_i32_0 : i32, i32
  }
  func.func @transform_3(%arg0: i32) -> (i32, i32) {
    %c0_i32 = arith.constant 0 : i32
    %c0_i32_0 = arith.constant 0 : i32
    return %arg0, %c0_i32 : i32, i32
  }
}

module attributes {stable_mosaic.version = 11 : i64} {
  func.func @_conv_fused_kernel(%arg0: i32, %arg1: memref<16x1728xbf16, #tpu.memory_space<vmem>>, %arg2: memref<1728x384xbf16, #tpu.memory_space<vmem>>, %arg3: memref<1x384xf32, #tpu.memory_space<vmem>>, %arg4: memref<384x256xbf16, #tpu.memory_space<vmem>>, %arg5: memref<1x256xf32, #tpu.memory_space<vmem>>, %arg6: memref<16x256xf32, #tpu.memory_space<vmem>>) attributes {dimension_semantics = [#tpu.dimension_semantics<parallel>], iteration_bounds = array<i64: 1>, scalar_prefetch = 0 : i64, scratch_operands = 0 : i64, tpu.core_type = #tpu.core_type<tc>, window_params = [{transform_indices = @transform_0, window_bounds = array<i64: 16, 1728>}, {pipeline_mode = #tpu.pipeline_mode<synchronous>, transform_indices = @transform_1, window_bounds = array<i64: 1728, 384>}, {pipeline_mode = #tpu.pipeline_mode<synchronous>, transform_indices = @transform_2, window_bounds = array<i64: 1, 384>}, {pipeline_mode = #tpu.pipeline_mode<synchronous>, transform_indices = @transform_3, window_bounds = array<i64: 384, 256>}, {pipeline_mode = #tpu.pipeline_mode<synchronous>, transform_indices = @transform_4, window_bounds = array<i64: 1, 256>}, {transform_indices = @transform_5, window_bounds = array<i64: 16, 256>}]} {
    %c0 = arith.constant 0 : index
    %c0_0 = arith.constant 0 : index
    %0 = vector.load %arg1[%c0, %c0_0] : memref<16x1728xbf16, #tpu.memory_space<vmem>>, vector<16x1728xbf16>
    %c0_1 = arith.constant 0 : index
    %c0_2 = arith.constant 0 : index
    %1 = vector.load %arg2[%c0_1, %c0_2] : memref<1728x384xbf16, #tpu.memory_space<vmem>>, vector<1728x384xbf16>
    %cst = arith.constant dense<0.000000e+00> : vector<16x384xf32>
    %2 = tpu.matmul %0, %1, %cst {dimension_numbers = #tpu.dot_dimension_numbers<[1], [0], [0], [1], [0, 0, 1, 1], [], []>} : vector<16x1728xbf16>, vector<1728x384xbf16>, vector<16x384xf32> -> vector<16x384xf32>
    %c0_3 = arith.constant 0 : index
    %c0_4 = arith.constant 0 : index
    %3 = vector.load %arg3[%c0_3, %c0_4] : memref<1x384xf32, #tpu.memory_space<vmem>>, vector<1x384xf32>
    %4 = vector.broadcast %3 : vector<1x384xf32> to vector<16x384xf32>
    %5 = arith.addf %2, %4 : vector<16x384xf32>
    %6 = arith.truncf %5 : vector<16x384xf32> to vector<16x384xbf16>
    %c0_5 = arith.constant 0 : index
    %c0_6 = arith.constant 0 : index
    %7 = vector.load %arg4[%c0_5, %c0_6] : memref<384x256xbf16, #tpu.memory_space<vmem>>, vector<384x256xbf16>
    %cst_7 = arith.constant dense<0.000000e+00> : vector<16x256xf32>
    %8 = tpu.matmul %6, %7, %cst_7 {dimension_numbers = #tpu.dot_dimension_numbers<[1], [0], [0], [1], [0, 0, 1, 1], [], []>} : vector<16x384xbf16>, vector<384x256xbf16>, vector<16x256xf32> -> vector<16x256xf32>
    %c0_8 = arith.constant 0 : index
    %c0_9 = arith.constant 0 : index
    %9 = vector.load %arg5[%c0_8, %c0_9] : memref<1x256xf32, #tpu.memory_space<vmem>>, vector<1x256xf32>
    %10 = vector.broadcast %9 : vector<1x256xf32> to vector<16x256xf32>
    %11 = arith.addf %8, %10 : vector<16x256xf32>
    %c0_10 = arith.constant 0 : index
    %c0_11 = arith.constant 0 : index
    %12 = vector.load %arg6[%c0_10, %c0_11] : memref<16x256xf32, #tpu.memory_space<vmem>>, vector<16x256xf32>
    tpu.vector_store %arg6[%c0_10, %c0_11], %11 {strides = array<i32>} : memref<16x256xf32, #tpu.memory_space<vmem>>, vector<16x256xf32>,
    return
  }
  func.func @transform_0(%arg0: i32) -> (i32, i32) {
    %c0_i32 = arith.constant 0 : i32
    %c0_i32_0 = arith.constant 0 : i32
    return %arg0, %c0_i32 : i32, i32
  }
  func.func @transform_1(%arg0: i32) -> (i32, i32) {
    %c0_i32 = arith.constant 0 : i32
    %c0_i32_0 = arith.constant 0 : i32
    %c0_i32_1 = arith.constant 0 : i32
    return %c0_i32, %c0_i32_0 : i32, i32
  }
  func.func @transform_2(%arg0: i32) -> (i32, i32) {
    %c0_i32 = arith.constant 0 : i32
    %c0_i32_0 = arith.constant 0 : i32
    %c0_i32_1 = arith.constant 0 : i32
    return %c0_i32, %c0_i32_0 : i32, i32
  }
  func.func @transform_3(%arg0: i32) -> (i32, i32) {
    %c0_i32 = arith.constant 0 : i32
    %c0_i32_0 = arith.constant 0 : i32
    %c0_i32_1 = arith.constant 0 : i32
    return %c0_i32, %c0_i32_0 : i32, i32
  }
  func.func @transform_4(%arg0: i32) -> (i32, i32) {
    %c0_i32 = arith.constant 0 : i32
    %c0_i32_0 = arith.constant 0 : i32
    %c0_i32_1 = arith.constant 0 : i32
    return %c0_i32, %c0_i32_0 : i32, i32
  }
  func.func @transform_5(%arg0: i32) -> (i32, i32) {
    %c0_i32 = arith.constant 0 : i32
    %c0_i32_0 = arith.constant 0 : i32
    return %arg0, %c0_i32 : i32, i32
  }
}

module attributes {stable_mosaic.version = 11 : i64} {
  func.func @_conv_kernel(%arg0: i32, %arg1: memref<16x864xbf16, #tpu.memory_space<vmem>>, %arg2: memref<864x256xbf16, #tpu.memory_space<vmem>>, %arg3: memref<1x256xf32, #tpu.memory_space<vmem>>, %arg4: memref<16x256xbf16, #tpu.memory_space<vmem>>) attributes {dimension_semantics = [#tpu.dimension_semantics<parallel>], iteration_bounds = array<i64: 1>, scalar_prefetch = 0 : i64, scratch_operands = 0 : i64, tpu.core_type = #tpu.core_type<tc>, window_params = [{transform_indices = @transform_0, window_bounds = array<i64: 16, 864>}, {pipeline_mode = #tpu.pipeline_mode<synchronous>, transform_indices = @transform_1, window_bounds = array<i64: 864, 256>}, {pipeline_mode = #tpu.pipeline_mode<synchronous>, transform_indices = @transform_2, window_bounds = array<i64: 1, 256>}, {transform_indices = @transform_3, window_bounds = array<i64: 16, 256>}]} {
    %c0 = arith.constant 0 : index
    %c0_0 = arith.constant 0 : index
    %0 = vector.load %arg1[%c0, %c0_0] : memref<16x864xbf16, #tpu.memory_space<vmem>>, vector<16x864xbf16>
    %c0_1 = arith.constant 0 : index
    %c0_2 = arith.constant 0 : index
    %1 = vector.load %arg2[%c0_1, %c0_2] : memref<864x256xbf16, #tpu.memory_space<vmem>>, vector<864x256xbf16>
    %cst = arith.constant dense<0.000000e+00> : vector<16x256xf32>
    %2 = tpu.matmul %0, %1, %cst {dimension_numbers = #tpu.dot_dimension_numbers<[1], [0], [0], [1], [0, 0, 1, 1], [], []>} : vector<16x864xbf16>, vector<864x256xbf16>, vector<16x256xf32> -> vector<16x256xf32>
    %c0_3 = arith.constant 0 : index
    %c0_4 = arith.constant 0 : index
    %3 = vector.load %arg3[%c0_3, %c0_4] : memref<1x256xf32, #tpu.memory_space<vmem>>, vector<1x256xf32>
    %4 = vector.broadcast %3 : vector<1x256xf32> to vector<16x256xf32>
    %5 = arith.addf %2, %4 : vector<16x256xf32>
    %6 = arith.truncf %5 : vector<16x256xf32> to vector<16x256xbf16>
    %c0_5 = arith.constant 0 : index
    %c0_6 = arith.constant 0 : index
    %7 = vector.load %arg4[%c0_5, %c0_6] : memref<16x256xbf16, #tpu.memory_space<vmem>>, vector<16x256xbf16>
    tpu.vector_store %arg4[%c0_5, %c0_6], %6 {strides = array<i32>} : memref<16x256xbf16, #tpu.memory_space<vmem>>, vector<16x256xbf16>,
    return
  }
  func.func @transform_0(%arg0: i32) -> (i32, i32) {
    %c0_i32 = arith.constant 0 : i32
    %c0_i32_0 = arith.constant 0 : i32
    return %arg0, %c0_i32 : i32, i32
  }
  func.func @transform_1(%arg0: i32) -> (i32, i32) {
    %c0_i32 = arith.constant 0 : i32
    %c0_i32_0 = arith.constant 0 : i32
    %c0_i32_1 = arith.constant 0 : i32
    return %c0_i32, %c0_i32_0 : i32, i32
  }
  func.func @transform_2(%arg0: i32) -> (i32, i32) {
    %c0_i32 = arith.constant 0 : i32
    %c0_i32_0 = arith.constant 0 : i32
    %c0_i32_1 = arith.constant 0 : i32
    return %c0_i32, %c0_i32_0 : i32, i32
  }
  func.func @transform_3(%arg0: i32) -> (i32, i32) {
    %c0_i32 = arith.constant 0 : i32
    %c0_i32_0 = arith.constant 0 : i32
    return %arg0, %c0_i32 : i32, i32
  }
}

</mosaic_0001>

<llo_original>
// kernel: cnn_embedding_forward.4
$region0: #{cnn_embedding_forward.4}
  #allocation0 [shape = 'u32[]', space=smem, size = 0x4, offset = 0x4, fixed_abs, tag = 'smem constant byte address 0x4 - core index']
  #allocation1 [shape = 'u32[144,128]{1,0:T(1,128)}', space=vmem, size = 0x12000, scoped, tag = 'internal scratch']
  %s0 = inlined_call_operand.vmem [shape: bf16[128,32], index: 0, kind: input, shape index: {}]
  %s1 = inlined_call_operand.hbm [shape: bf16[32,128], index: 1, kind: input, shape index: {}]
  %s2 = inlined_call_operand.hbm [shape: f32[1,128], index: 2, kind: input, shape index: {}]
  %s3 = inlined_call_operand.vmem [shape: bf16[128,128], index: 3, kind: output, shape index: {}]
  %s4 = sld [smem:[#allocation0]]
  $region30: #{cnn_embedding_forward.4} parent=0
    _
  %s6 = ssub.s32 1, %s4
  %s7 = scalar_select 0, %s6, %s4
  $region1: #{cnn_embedding_forward.4} parent=0
    #allocation2 [shape = 'u8[8192]{0}', space=vmem, size = 0x2000, scoped, tag = 'input window, operand 1, single buffered']
    #allocation3 [shape = 's32[1]{0}', space=sflag, size = 0x4, scoped, tag = 'scoped memory for cnn_embedding_forward.4']
    #allocation4 [shape = 'u8[512]{0}', space=vmem, size = 0x400, scoped, tag = 'input window, operand 2, single buffered']
    #allocation5 [shape = 's32[1]{0}', space=sflag, size = 0x4, scoped, tag = 'scoped memory for cnn_embedding_forward.4']
    %8 = vsyncpa [#allocation3], 0
    %9 = vsyncpa [#allocation5], 0
    // Predicated region
    $region2: #{cnn_embedding_forward.4} parent=1 // pred_check
      _
    $region3: #{cnn_embedding_forward.4} parent=1 // pred_check_branch
      %11 = sbr.rel (0) target = $region5
    $region4: #{cnn_embedding_forward.4} parent=1 // pred_region
      _
    $region5: #{cnn_embedding_forward.4} parent=1 // pred_fallthru
      _
    // Predicated region
    $region6: #{cnn_embedding_forward.4} parent=1 // pred_check
      _
    $region7: #{cnn_embedding_forward.4} parent=1 // pred_check_branch
      %13 = sbr.rel (0) target = $region9
    $region8: #{cnn_embedding_forward.4} parent=1 // pred_region
      %s15 = ssub.s32 256, 256
      %16 = vsyncadd [#allocation3], %s15
      %s17 = sshll.u32 [#allocation2], 4
      %s18 = int_to_ptr.vmem [resolvable:$true] %s17
      %23 = dma.hbm_to_vmem [thread:$0]  %s1, 256, %s18, [#allocation3], 64, 64, 4
    $region9: #{cnn_embedding_forward.4} parent=1 // pred_fallthru
      _
    // Predicated region
    $region10: #{cnn_embedding_forward.4} parent=1 // pred_check
      _
    $region11: #{cnn_embedding_forward.4} parent=1 // pred_check_branch
      %25 = sbr.rel (0) target = $region13
    $region12: #{cnn_embedding_forward.4} parent=1 // pred_region
      %s27 = ssub.s32 16, 16
      %28 = vsyncadd [#allocation5], %s27
      %s30 = sshll.u32 [#allocation4], 4
      %s31 = int_to_ptr.vmem [resolvable:$true] %s30
      %33 = dma.hbm_to_vmem [thread:$0]  %s2, 16, %s31, [#allocation5]
    $region13: #{cnn_embedding_forward.4} parent=1 // pred_fallthru
      _
    // Predicated region
    $region14: #{cnn_embedding_forward.4} parent=1 // pred_check
      _
    $region15: #{cnn_embedding_forward.4} parent=1 // pred_check_branch
      %35 = sbr.rel (0) target = $region17
    $region16: #{cnn_embedding_forward.4} parent=1 // pred_region
      %36 = dma.done [#allocation3], 256
    $region17: #{cnn_embedding_forward.4} parent=1 // pred_fallthru
      _
    // Predicated region
    $region18: #{cnn_embedding_forward.4} parent=1 // pred_check
      _
    $region19: #{cnn_embedding_forward.4} parent=1 // pred_check_branch
      %38 = sbr.rel (0) target = $region21
    $region20: #{cnn_embedding_forward.4} parent=1 // pred_region
      %39 = dma.done [#allocation5], 16
    $region21: #{cnn_embedding_forward.4} parent=1 // pred_fallthru
      _
    %v41 = vld [vmem:[%s0] sm:$0xf]
    %v42 = vld [vmem:[%s0 + $0x4] sm:$0xf]
    %v43 = vld [vmem:[%s0 + $0x8] sm:$0xf]
    %v44 = vld [vmem:[%s0 + $0xc] sm:$0xf]
    %v45 = vld [vmem:[%s0 + $0x10] sm:$0xf]
    %v46 = vld [vmem:[%s0 + $0x14] sm:$0xf]
    %v47 = vld [vmem:[%s0 + $0x18] sm:$0xf]
    %v48 = vld [vmem:[%s0 + $0x1c] sm:$0xf]
    %v49 = vld [vmem:[%s0 + $0x20] sm:$0xf]
    %v50 = vld [vmem:[%s0 + $0x24] sm:$0xf]
    %v51 = vld [vmem:[%s0 + $0x28] sm:$0xf]
    %v52 = vld [vmem:[%s0 + $0x2c] sm:$0xf]
    %v53 = vld [vmem:[%s0 + $0x30] sm:$0xf]
    %v54 = vld [vmem:[%s0 + $0x34] sm:$0xf]
    %v55 = vld [vmem:[%s0 + $0x38] sm:$0xf]
    %v56 = vld [vmem:[%s0 + $0x3c] sm:$0xf]
    %v57 = vld [vmem:[#allocation2] sm:$0xf]
    %v58 = vld [vmem:[#allocation2 + $0x4] sm:$0xf]
    %v59 = vld [vmem:[#allocation2 + $0x8] sm:$0xf]
    %v60 = vld [vmem:[#allocation2 + $0xc] sm:$0xf]
    %v61 = vld [vmem:[#allocation4] sm:$0x1]
    %v63 = vlaneseq
    %v64 = vshrl.u32 %v63, 7
    %v65 = vsub.s32 0, %v64
    %v66 = vrot.slane %v61, %v65
    %v84 = vunpack.c.l.b16 %v41
    %v85 = vunpack.c.l.b16 %v42
    %v86 = vunpack.c.l.b16 %v43
    %v87 = vunpack.c.l.b16 %v44
    %v88 = vunpack.c.l.b16 %v45
    %v89 = vunpack.c.l.b16 %v46
    %v90 = vunpack.c.l.b16 %v47
    %v91 = vunpack.c.l.b16 %v48
    %v92 = vunpack.c.l.b16 %v49
    %v93 = vunpack.c.l.b16 %v50
    %v94 = vunpack.c.l.b16 %v51
    %v95 = vunpack.c.l.b16 %v52
    %v96 = vunpack.c.l.b16 %v53
    %v97 = vunpack.c.l.b16 %v54
    %v98 = vunpack.c.l.b16 %v55
    %v99 = vunpack.c.l.b16 %v56
    %v100 = vpack.c.b16 %v85, %v84
    %v101 = vpack.c.b16 %v87, %v86
    %v102 = vpack.c.b16 %v89, %v88
    %v103 = vpack.c.b16 %v91, %v90
    %v104 = vpack.c.b16 %v93, %v92
    %v105 = vpack.c.b16 %v95, %v94
    %v106 = vpack.c.b16 %v97, %v96
    %v107 = vpack.c.b16 %v99, %v98
    %v112 = vunpack.c.l.b16 %v57
    %v113 = vunpack.c.l.b16 %v58
    %v114 = vunpack.c.l.b16 %v59
    %v115 = vunpack.c.l.b16 %v60
    %v116 = vpack.c.b16 %v113, %v112
    %v117 = vpack.c.b16 %v115, %v114
    %vm120 = vcmask 261120
    %v122 = vsel %vm120, %v100, 0
    %v125 = vsel %vm120, %v101, 0
    %v128 = vsel %vm120, %v102, 0
    %v131 = vsel %vm120, %v103, 0
    %v134 = vsel %vm120, %v104, 0
    %v137 = vsel %vm120, %v105, 0
    %v140 = vsel %vm120, %v106, 0
    %v143 = vsel %vm120, %v107, 0
    %145 = vmatprep.subr.bf16.mxu0 0
    %146 = vmatpush1.bf16.msra.mxu0 0
    %147 = vmatprep.subr.bf16.mxu0 0
    %148 = vmatpush1.bf16.msra.mxu0 0
    %149 = vmatprep.subr.bf16.mxu0 0
    %150 = vmatpush1.bf16.msra.mxu0 0
    %151 = vmatprep.subr.bf16.mxu0 0
    %152 = vmatpush1.bf16.msra.mxu0 0
    %153 = vmatprep.subr.bf16.mxu0 0
    %154 = vmatpush1.bf16.msra.mxu0 0
    %155 = vmatprep.subr.bf16.mxu0 0
    %156 = vmatpush1.bf16.msra.mxu0 0
    %157 = vmatprep.subr.bf16.mxu0 0
    %158 = vmatpush1.bf16.msra.mxu0 %v117
    %159 = vmatprep.subr.bf16.mxu0 0
    %160 = vmatpush1.bf16.msra.mxu0 %v116
    %161 = vmatprep.subr.bf16.mxu0 0
    %162 = vmatpush2.bf16.msra.mxu0 0
    %163 = vmatprep.subr.bf16.mxu0 0
    %164 = vmatpush2.bf16.msra.mxu0 0
    %165 = vmatprep.subr.bf16.mxu0 0
    %166 = vmatpush2.bf16.msra.mxu0 0
    %167 = vmatprep.subr.bf16.mxu0 0
    %168 = vmatpush2.bf16.msra.mxu0 0
    %169 = vmatprep.subr.bf16.mxu0 0
    %170 = vmatpush2.bf16.msra.mxu0 0
    %171 = vmatprep.subr.bf16.mxu0 0
    %172 = vmatpush2.bf16.msra.mxu0 0
    %173 = vmatprep.subr.bf16.mxu0 0
    %174 = vmatpush2.bf16.msra.mxu0 0
    %175 = vmatprep.subr.bf16.mxu0 0
    %176 = vmatpush2.bf16.msra.mxu0 0
    %177 = vmatprep.mubr.bf16.mxu0 0
    %178 = vmatmul.mubr.bf16.gmra.mxu0 %v122
    %v179 = vpop.f32.mrf.mxu0
    %v180 = vadd.f32 %v66, %v179
    %v181 = vpop.f32.mrf.mxu0
    %v182 = vpop.f32.mrf.mxu0
    %v183 = vadd.f32 %v66, %v182
    %v184 = vpop.f32.mrf.mxu0
    %185 = vmatprep.mubr.bf16.mxu0 0
    %186 = vmatmul.mubr.bf16.gmra.mxu0 %v125
    %v187 = vpop.f32.mrf.mxu0
    %v188 = vadd.f32 %v66, %v187
    %v189 = vpop.f32.mrf.mxu0
    %v190 = vpop.f32.mrf.mxu0
    %v191 = vadd.f32 %v66, %v190
    %v192 = vpop.f32.mrf.mxu0
    %193 = vmatprep.mubr.bf16.mxu0 0
    %194 = vmatmul.mubr.bf16.gmra.mxu0 %v128
    %v195 = vpop.f32.mrf.mxu0
    %v196 = vadd.f32 %v66, %v195
    %v197 = vpop.f32.mrf.mxu0
    %v198 = vpop.f32.mrf.mxu0
    %v199 = vadd.f32 %v66, %v198
    %v200 = vpop.f32.mrf.mxu0
    %201 = vmatprep.mubr.bf16.mxu0 0
    %202 = vmatmul.mubr.bf16.gmra.mxu0 %v131
    %v203 = vpop.f32.mrf.mxu0
    %v204 = vadd.f32 %v66, %v203
    %v205 = vpop.f32.mrf.mxu0
    %v206 = vpop.f32.mrf.mxu0
    %v207 = vadd.f32 %v66, %v206
    %v208 = vpop.f32.mrf.mxu0
    %209 = vmatprep.mubr.bf16.mxu0 0
    %210 = vmatmul.mubr.bf16.gmra.mxu0 %v134
    %v211 = vpop.f32.mrf.mxu0
    %v212 = vadd.f32 %v66, %v211
    %v213 = vpop.f32.mrf.mxu0
    %v214 = vpop.f32.mrf.mxu0
    %v215 = vadd.f32 %v66, %v214
    %v216 = vpop.f32.mrf.mxu0
    %217 = vmatprep.mubr.bf16.mxu0 0
    %218 = vmatmul.mubr.bf16.gmra.mxu0 %v137
    %v219 = vpop.f32.mrf.mxu0
    %v220 = vadd.f32 %v66, %v219
    %v221 = vpop.f32.mrf.mxu0
    %v222 = vpop.f32.mrf.mxu0
    %v223 = vadd.f32 %v66, %v222
    %v224 = vpop.f32.mrf.mxu0
    %225 = vmatprep.mubr.bf16.mxu0 0
    %226 = vmatmul.mubr.bf16.gmra.mxu0 %v140
    %v227 = vpop.f32.mrf.mxu0
    %v228 = vadd.f32 %v66, %v227
    %v229 = vpop.f32.mrf.mxu0
    %v230 = vpop.f32.mrf.mxu0
    %v231 = vadd.f32 %v66, %v230
    %v232 = vpop.f32.mrf.mxu0
    %233 = vmatprep.mubr.bf16.mxu0 0
    %234 = vmatmul.mubr.bf16.gmra.mxu0 %v143
    %v235 = vpop.f32.mrf.mxu0
    %v236 = vadd.f32 %v66, %v235
    %v237 = vpop.f32.mrf.mxu0
    %v238 = vpop.f32.mrf.mxu0
    %v239 = vadd.f32 %v66, %v238
    %v240 = vpop.f32.mrf.mxu0
    %241 = vdwg.mxu0
    %v242 = vpack.c.bf16 %v183, %v180
    %v243 = vpack.c.bf16 %v191, %v188
    %v244 = vpack.c.bf16 %v199, %v196
    %v245 = vpack.c.bf16 %v207, %v204
    %v246 = vpack.c.bf16 %v215, %v212
    %v247 = vpack.c.bf16 %v223, %v220
    %v248 = vpack.c.bf16 %v231, %v228
    %v249 = vpack.c.bf16 %v239, %v236
    %v258 = vunpack.c.l.b16 %v242
    %v259 = vunpack.c.h.b16 %v242
    %v260 = vunpack.c.l.b16 %v243
    %v261 = vunpack.c.h.b16 %v243
    %v262 = vunpack.c.l.b16 %v244
    %v263 = vunpack.c.h.b16 %v244
    %v264 = vunpack.c.l.b16 %v245
    %v265 = vunpack.c.h.b16 %v245
    %v266 = vunpack.c.l.b16 %v246
    %v267 = vunpack.c.h.b16 %v246
    %v268 = vunpack.c.l.b16 %v247
    %v269 = vunpack.c.h.b16 %v247
    %v270 = vunpack.c.l.b16 %v248
    %v271 = vunpack.c.h.b16 %v248
    %v272 = vunpack.c.l.b16 %v249
    %v273 = vunpack.c.h.b16 %v249
    %v274 = vpack.c.b16 %v258, %v258
    %v275 = vpack.c.b16 %v259, %v259
    %v276 = vpack.c.b16 %v260, %v260
    %v277 = vpack.c.b16 %v261, %v261
    %v278 = vpack.c.b16 %v262, %v262
    %v279 = vpack.c.b16 %v263, %v263
    %v280 = vpack.c.b16 %v264, %v264
    %v281 = vpack.c.b16 %v265, %v265
    %v282 = vpack.c.b16 %v266, %v266
    %v283 = vpack.c.b16 %v267, %v267
    %v284 = vpack.c.b16 %v268, %v268
    %v285 = vpack.c.b16 %v269, %v269
    %v286 = vpack.c.b16 %v270, %v270
    %v287 = vpack.c.b16 %v271, %v271
    %v288 = vpack.c.b16 %v272, %v272
    %v289 = vpack.c.b16 %v273, %v273
    %306 = vst [vmem:[%s3] sm:$0xf] %v274
    %307 = vst [vmem:[%s3 + $0x4] sm:$0xf] %v275
    %308 = vst [vmem:[%s3 + $0x8] sm:$0xf] %v276
    %309 = vst [vmem:[%s3 + $0xc] sm:$0xf] %v277
    %310 = vst [vmem:[%s3 + $0x10] sm:$0xf] %v278
    %311 = vst [vmem:[%s3 + $0x14] sm:$0xf] %v279
    %312 = vst [vmem:[%s3 + $0x18] sm:$0xf] %v280
    %313 = vst [vmem:[%s3 + $0x1c] sm:$0xf] %v281
    %314 = vst [vmem:[%s3 + $0x20] sm:$0xf] %v282
    %315 = vst [vmem:[%s3 + $0x24] sm:$0xf] %v283
    %316 = vst [vmem:[%s3 + $0x28] sm:$0xf] %v284
    %317 = vst [vmem:[%s3 + $0x2c] sm:$0xf] %v285
    %318 = vst [vmem:[%s3 + $0x30] sm:$0xf] %v286
    %319 = vst [vmem:[%s3 + $0x34] sm:$0xf] %v287
    %320 = vst [vmem:[%s3 + $0x38] sm:$0xf] %v288
    %321 = vst [vmem:[%s3 + $0x3c] sm:$0xf] %v289
    // Predicated region
    $region22: #{cnn_embedding_forward.4} parent=1 // pred_check
      _
    $region23: #{cnn_embedding_forward.4} parent=1 // pred_check_branch
      %323 = sbr.rel (0) target = $region25
    $region24: #{cnn_embedding_forward.4} parent=1 // pred_region
      _
    $region25: #{cnn_embedding_forward.4} parent=1 // pred_fallthru
      _
    // Predicated region
    $region26: #{cnn_embedding_forward.4} parent=1 // pred_check
      _
    $region27: #{cnn_embedding_forward.4} parent=1 // pred_check_branch
      %325 = sbr.rel (0) target = $region29
    $region28: #{cnn_embedding_forward.4} parent=1 // pred_region
      _
    $region29: #{cnn_embedding_forward.4} parent=1 // pred_fallthru
      _
    %326 = vsyncpa [#allocation3], 1
    %327 = vsyncpa [#allocation5], 1

// kernel: cnn_embedding_forward.5
$region0: #{cnn_embedding_forward.5}
  #allocation0 [shape = 'u32[]', space=smem, size = 0x4, offset = 0x4, fixed_abs, tag = 'smem constant byte address 0x4 - core index']
  #allocation1 [shape = 'u32[144,128]{1,0:T(1,128)}', space=vmem, size = 0x12000, scoped, tag = 'internal scratch']
  %s0 = inlined_call_operand.vmem [shape: bf16[32,432], index: 0, kind: input, shape index: {}]
  %s1 = inlined_call_operand.vmem [shape: bf16[432,128], index: 1, kind: input, shape index: {}]
  %s2 = inlined_call_operand.vmem [shape: f32[1,128], index: 2, kind: input, shape index: {}]
  %s3 = inlined_call_operand.vmem [shape: bf16[32,128], index: 3, kind: output, shape index: {}]
  %s4 = sld [smem:[#allocation0]]
  $region22: #{cnn_embedding_forward.5} parent=0
    _
  %s6 = ssub.s32 1, %s4
  %s7 = scalar_select 0, %s6, %s4
  // Predicated region
  $region2: #{cnn_embedding_forward.5} parent=0 // pred_check
    _
  $region3: #{cnn_embedding_forward.5} parent=0 // pred_check_branch
    %9 = sbr.rel (0) target = $region5
  $region4: #{cnn_embedding_forward.5} parent=0 // pred_region
    _
  $region5: #{cnn_embedding_forward.5} parent=0 // pred_fallthru
    _
  // Predicated region
  $region6: #{cnn_embedding_forward.5} parent=0 // pred_check
    _
  $region7: #{cnn_embedding_forward.5} parent=0 // pred_check_branch
    %11 = sbr.rel (0) target = $region9
  $region8: #{cnn_embedding_forward.5} parent=0 // pred_region
    _
  $region9: #{cnn_embedding_forward.5} parent=0 // pred_fallthru
    _
  // Predicated region
  $region10: #{cnn_embedding_forward.5} parent=0 // pred_check
    _
  $region11: #{cnn_embedding_forward.5} parent=0 // pred_check_branch
    %13 = sbr.rel (0) target = $region13
  $region12: #{cnn_embedding_forward.5} parent=0 // pred_region
    _
  $region13: #{cnn_embedding_forward.5} parent=0 // pred_fallthru
    _
  %v15 = vld [vmem:[%s0] sm:$0xff]
  %v16 = vld [vmem:[%s0 + $0x8] sm:$0xff]
  %v17 = vld [vmem:[%s0 + $0x10] sm:$0xff]
  %v18 = vld [vmem:[%s0 + $0x18] sm:$0xff]
  %v19 = vld [vmem:[%s0 + $0x20] sm:$0xff]
  %v20 = vld [vmem:[%s0 + $0x28] sm:$0xff]
  %v21 = vld [vmem:[%s0 + $0x30] sm:$0xff]
  %v22 = vld [vmem:[%s0 + $0x38] sm:$0xff]
  %v23 = vld [vmem:[%s1] sm:$0xf]
  %v24 = vld [vmem:[%s1 + $0x4] sm:$0xf]
  %v25 = vld [vmem:[%s1 + $0x8] sm:$0xf]
  %v26 = vld [vmem:[%s1 + $0xc] sm:$0xf]
  %v27 = vld [vmem:[%s1 + $0x10] sm:$0xf]
  %v28 = vld [vmem:[%s1 + $0x14] sm:$0xf]
  %v29 = vld [vmem:[%s1 + $0x18] sm:$0xf]
  %v30 = vld [vmem:[%s1 + $0x1c] sm:$0xf]
  %v31 = vld [vmem:[%s1 + $0x20] sm:$0xf]
  %v32 = vld [vmem:[%s1 + $0x24] sm:$0xf]
  %v33 = vld [vmem:[%s1 + $0x28] sm:$0xf]
  %v34 = vld [vmem:[%s1 + $0x2c] sm:$0xf]
  %v35 = vld [vmem:[%s1 + $0x30] sm:$0xf]
  %v36 = vld [vmem:[%s1 + $0x34] sm:$0xf]
  %v37 = vld [vmem:[%s1 + $0x38] sm:$0xf]
  %v38 = vld [vmem:[%s1 + $0x3c] sm:$0xf]
  %v39 = vld [vmem:[%s1 + $0x40] sm:$0xf]
  %v40 = vld [vmem:[%s1 + $0x44] sm:$0xf]
  %v41 = vld [vmem:[%s1 + $0x48] sm:$0xf]
  %v42 = vld [vmem:[%s1 + $0x4c] sm:$0xf]
  %v43 = vld [vmem:[%s1 + $0x50] sm:$0xf]
  %v44 = vld [vmem:[%s1 + $0x54] sm:$0xf]
  %v45 = vld [vmem:[%s1 + $0x58] sm:$0xf]
  %v46 = vld [vmem:[%s1 + $0x5c] sm:$0xf]
  %v47 = vld [vmem:[%s1 + $0x60] sm:$0xf]
  %v48 = vld [vmem:[%s1 + $0x64] sm:$0xf]
  %v49 = vld [vmem:[%s1 + $0x68] sm:$0xf]
  %v50 = vld [vmem:[%s1 + $0x6c] sm:$0xf]
  %v51 = vld [vmem:[%s1 + $0x70] sm:$0xf]
  %v52 = vld [vmem:[%s1 + $0x74] sm:$0xf]
  %v53 = vld [vmem:[%s1 + $0x78] sm:$0xf]
  %v54 = vld [vmem:[%s1 + $0x7c] sm:$0xf]
  %v55 = vld [vmem:[%s1 + $0x80] sm:$0xf]
  %v56 = vld [vmem:[%s1 + $0x84] sm:$0xf]
  %v57 = vld [vmem:[%s1 + $0x88] sm:$0xf]
  %v58 = vld [vmem:[%s1 + $0x8c] sm:$0xf]
  %v59 = vld [vmem:[%s1 + $0x90] sm:$0xf]
  %v60 = vld [vmem:[%s1 + $0x94] sm:$0xf]
  %v61 = vld [vmem:[%s1 + $0x98] sm:$0xf]
  %v62 = vld [vmem:[%s1 + $0x9c] sm:$0xf]
  %v63 = vld [vmem:[%s1 + $0xa0] sm:$0xf]
  %v64 = vld [vmem:[%s1 + $0xa4] sm:$0xf]
  %v65 = vld [vmem:[%s1 + $0xa8] sm:$0xf]
  %v66 = vld [vmem:[%s1 + $0xac] sm:$0xf]
  %v67 = vld [vmem:[%s1 + $0xb0] sm:$0xf]
  %v68 = vld [vmem:[%s1 + $0xb4] sm:$0xf]
  %v69 = vld [vmem:[%s1 + $0xb8] sm:$0xf]
  %v70 = vld [vmem:[%s1 + $0xbc] sm:$0xf]
  %v71 = vld [vmem:[%s1 + $0xc0] sm:$0xf]
  %v72 = vld [vmem:[%s1 + $0xc4] sm:$0xf]
  %v73 = vld [vmem:[%s1 + $0xc8] sm:$0xf]
  %v74 = vld [vmem:[%s1 + $0xcc] sm:$0xf]
  %v75 = vld [vmem:[%s1 + $0xd0] sm:$0xf]
  %v76 = vld [vmem:[%s1 + $0xd4] sm:$0xf]
  %v77 = vld [vmem:[%s2] sm:$0x1]
  %v79 = vlaneseq
  %v80 = vshrl.u32 %v79, 7
  %v81 = vsub.s32 0, %v80
  %v82 = vrot.slane %v77, %v81
  %v92 = vunpack.c.l.b16 %v15
  %v93 = vunpack.c.h.b16 %v15
  %v94 = vunpack.c.l.b16 %v16
  %v95 = vunpack.c.h.b16 %v16
  %v96 = vunpack.c.l.b16 %v17
  %v97 = vunpack.c.h.b16 %v17
  %v98 = vunpack.c.l.b16 %v18
  %v99 = vunpack.c.h.b16 %v18
  %v100 = vunpack.c.l.b16 %v19
  %v101 = vunpack.c.h.b16 %v19
  %v102 = vunpack.c.l.b16 %v20
  %v103 = vunpack.c.h.b16 %v20
  %v104 = vunpack.c.l.b16 %v21
  %v105 = vunpack.c.h.b16 %v21
  %v106 = vunpack.c.l.b16 %v22
  %v107 = vunpack.c.h.b16 %v22
  %v108 = vpack.c.b16 %v96, %v92
  %v109 = vpack.c.b16 %v97, %v93
  %v110 = vpack.c.b16 %v98, %v94
  %v111 = vpack.c.b16 %v99, %v95
  %v112 = vpack.c.b16 %v104, %v100
  %v113 = vpack.c.b16 %v105, %v101
  %v114 = vpack.c.b16 %v106, %v102
  %v115 = vpack.c.b16 %v107, %v103
  %v176 = vunpack.c.l.b16 %v23
  %v177 = vunpack.c.l.b16 %v24
  %v178 = vunpack.c.l.b16 %v25
  %v179 = vunpack.c.l.b16 %v26
  %v180 = vunpack.c.l.b16 %v27
  %v181 = vunpack.c.l.b16 %v28
  %v182 = vunpack.c.l.b16 %v29
  %v183 = vunpack.c.l.b16 %v30
  %v184 = vunpack.c.l.b16 %v31
  %v185 = vunpack.c.l.b16 %v32
  %v186 = vunpack.c.l.b16 %v33
  %v187 = vunpack.c.l.b16 %v34
  %v188 = vunpack.c.l.b16 %v35
  %v189 = vunpack.c.l.b16 %v36
  %v190 = vunpack.c.l.b16 %v37
  %v191 = vunpack.c.l.b16 %v38
  %v192 = vunpack.c.l.b16 %v39
  %v193 = vunpack.c.l.b16 %v40
  %v194 = vunpack.c.l.b16 %v41
  %v195 = vunpack.c.l.b16 %v42
  %v196 = vunpack.c.l.b16 %v43
  %v197 = vunpack.c.l.b16 %v44
  %v198 = vunpack.c.l.b16 %v45
  %v199 = vunpack.c.l.b16 %v46
  %v200 = vunpack.c.l.b16 %v47
  %v201 = vunpack.c.l.b16 %v48
  %v202 = vunpack.c.l.b16 %v49
  %v203 = vunpack.c.l.b16 %v50
  %v204 = vunpack.c.l.b16 %v51
  %v205 = vunpack.c.l.b16 %v52
  %v206 = vunpack.c.l.b16 %v53
  %v207 = vunpack.c.l.b16 %v54
  %v208 = vunpack.c.l.b16 %v55
  %v209 = vunpack.c.l.b16 %v56
  %v210 = vunpack.c.l.b16 %v57
  %v211 = vunpack.c.l.b16 %v58
  %v212 = vunpack.c.l.b16 %v59
  %v213 = vunpack.c.l.b16 %v60
  %v214 = vunpack.c.l.b16 %v61
  %v215 = vunpack.c.l.b16 %v62
  %v216 = vunpack.c.l.b16 %v63
  %v217 = vunpack.c.l.b16 %v64
  %v218 = vunpack.c.l.b16 %v65
  %v219 = vunpack.c.l.b16 %v66
  %v220 = vunpack.c.l.b16 %v67
  %v221 = vunpack.c.l.b16 %v68
  %v222 = vunpack.c.l.b16 %v69
  %v223 = vunpack.c.l.b16 %v70
  %v224 = vunpack.c.l.b16 %v71
  %v225 = vunpack.c.l.b16 %v72
  %v226 = vunpack.c.l.b16 %v73
  %v227 = vunpack.c.l.b16 %v74
  %v228 = vunpack.c.l.b16 %v75
  %v229 = vunpack.c.l.b16 %v76
  %v230 = vpack.c.b16 %v177, %v176
  %v231 = vpack.c.b16 %v179, %v178
  %v232 = vpack.c.b16 %v181, %v180
  %v233 = vpack.c.b16 %v183, %v182
  %v234 = vpack.c.b16 %v185, %v184
  %v235 = vpack.c.b16 %v187, %v186
  %v236 = vpack.c.b16 %v189, %v188
  %v237 = vpack.c.b16 %v191, %v190
  %v238 = vpack.c.b16 %v193, %v192
  %v239 = vpack.c.b16 %v195, %v194
  %v240 = vpack.c.b16 %v197, %v196
  %v241 = vpack.c.b16 %v199, %v198
  %v242 = vpack.c.b16 %v201, %v200
  %v243 = vpack.c.b16 %v203, %v202
  %v244 = vpack.c.b16 %v205, %v204
  %v245 = vpack.c.b16 %v207, %v206
  %v246 = vpack.c.b16 %v209, %v208
  %v247 = vpack.c.b16 %v211, %v210
  %v248 = vpack.c.b16 %v213, %v212
  %v249 = vpack.c.b16 %v215, %v214
  %v250 = vpack.c.b16 %v217, %v216
  %v251 = vpack.c.b16 %v219, %v218
  %v252 = vpack.c.b16 %v221, %v220
  %v253 = vpack.c.b16 %v223, %v222
  %v254 = vpack.c.b16 %v225, %v224
  %v255 = vpack.c.b16 %v227, %v226
  %v256 = vpack.c.b16 %v229, %v228
  %vm284 = vcmask 392192
  %v286 = vsel %vm284, %v111, 0
  %v289 = vsel %vm284, %v115, 0
  %291 = vmatprep.subr.bf16.mxu0 0
  %292 = vmatpush1.bf16.msra.mxu0 %v237
  %293 = vmatprep.subr.bf16.mxu0 0
  %294 = vmatpush1.bf16.msra.mxu0 %v236
  %295 = vmatprep.subr.bf16.mxu0 0
  %296 = vmatpush1.bf16.msra.mxu0 %v235
  %297 = vmatprep.subr.bf16.mxu0 0
  %298 = vmatpush1.bf16.msra.mxu0 %v234
  %299 = vmatprep.subr.bf16.mxu0 0
  %300 = vmatpush1.bf16.msra.mxu0 %v233
  %301 = vmatprep.subr.bf16.mxu0 0
  %302 = vmatpush1.bf16.msra.mxu0 %v232
  %303 = vmatprep.subr.bf16.mxu0 0
  %304 = vmatpush1.bf16.msra.mxu0 %v231
  %305 = vmatprep.subr.bf16.mxu0 0
  %306 = vmatpush1.bf16.msra.mxu0 %v230
  %307 = vmatprep.subr.bf16.mxu0 0
  %308 = vmatpush2.bf16.msra.mxu0 %v245
  %309 = vmatprep.subr.bf16.mxu0 0
  %310 = vmatpush2.bf16.msra.mxu0 %v244
  %311 = vmatprep.subr.bf16.mxu0 0
  %312 = vmatpush2.bf16.msra.mxu0 %v243
  %313 = vmatprep.subr.bf16.mxu0 0
  %314 = vmatpush2.bf16.msra.mxu0 %v242
  %315 = vmatprep.subr.bf16.mxu0 0
  %316 = vmatpush2.bf16.msra.mxu0 %v241
  %317 = vmatprep.subr.bf16.mxu0 0
  %318 = vmatpush2.bf16.msra.mxu0 %v240
  %319 = vmatprep.subr.bf16.mxu0 0
  %320 = vmatpush2.bf16.msra.mxu0 %v239
  %321 = vmatprep.subr.bf16.mxu0 0
  %322 = vmatpush2.bf16.msra.mxu0 %v238
  %323 = vmatprep.mubr.bf16.mxu0 %v109
  %324 = vmatmul.mubr.bf16.gmra.mxu0 %v108
  %v325 = vpop.f32.mrf.mxu0
  %v326 = vadd.f32 %v82, %v325
  %v327 = vpop.f32.mrf.mxu0
  %v328 = vpop.f32.mrf.mxu0
  %v329 = vadd.f32 %v82, %v328
  %v330 = vpop.f32.mrf.mxu0
  %331 = vmatprep.mubr.bf16.mxu0 %v113
  %332 = vmatmul.mubr.bf16.gmra.mxu0 %v112
  %v333 = vpop.f32.mrf.mxu0
  %v334 = vadd.f32 %v82, %v333
  %v335 = vpop.f32.mrf.mxu0
  %v336 = vpop.f32.mrf.mxu0
  %v337 = vadd.f32 %v82, %v336
  %v338 = vpop.f32.mrf.mxu0
  %339 = vdwg.mxu0
  %340 = vmatprep.subr.bf16.mxu0 0
  %341 = vmatpush1.bf16.msra.mxu0 %v253
  %342 = vmatprep.subr.bf16.mxu0 0
  %343 = vmatpush1.bf16.msra.mxu0 %v252
  %344 = vmatprep.subr.bf16.mxu0 0
  %345 = vmatpush1.bf16.msra.mxu0 %v251
  %346 = vmatprep.subr.bf16.mxu0 0
  %347 = vmatpush1.bf16.msra.mxu0 %v250
  %348 = vmatprep.subr.bf16.mxu0 0
  %349 = vmatpush1.bf16.msra.mxu0 %v249
  %350 = vmatprep.subr.bf16.mxu0 0
  %351 = vmatpush1.bf16.msra.mxu0 %v248
  %352 = vmatprep.subr.bf16.mxu0 0
  %353 = vmatpush1.bf16.msra.mxu0 %v247
  %354 = vmatprep.subr.bf16.mxu0 0
  %355 = vmatpush1.bf16.msra.mxu0 %v246
  %356 = vmatprep.subr.bf16.mxu0 0
  %357 = vmatpush2.bf16.msra.mxu0 0
  %358 = vmatprep.subr.bf16.mxu0 0
  %359 = vmatpush2.bf16.msra.mxu0 0
  %360 = vmatprep.subr.bf16.mxu0 0
  %361 = vmatpush2.bf16.msra.mxu0 0
  %362 = vmatprep.subr.bf16.mxu0 0
  %363 = vmatpush2.bf16.msra.mxu0 0
  %364 = vmatprep.subr.bf16.mxu0 0
  %365 = vmatpush2.bf16.msra.mxu0 0
  %366 = vmatprep.subr.bf16.mxu0 0
  %367 = vmatpush2.bf16.msra.mxu0 %v256
  %368 = vmatprep.subr.bf16.mxu0 0
  %369 = vmatpush2.bf16.msra.mxu0 %v255
  %370 = vmatprep.subr.bf16.mxu0 0
  %371 = vmatpush2.bf16.msra.mxu0 %v254
  %372 = vmatprep.mubr.bf16.mxu0 %v286
  %373 = vmatmul.mubr.bf16.gmra.mxu0 %v110
  %v374 = vpop.f32.mrf.mxu0
  %v375 = vadd.f32 %v326, %v374
  %v376 = vpop.f32.mrf.mxu0
  %v377 = vpop.f32.mrf.mxu0
  %v378 = vadd.f32 %v329, %v377
  %v379 = vpop.f32.mrf.mxu0
  %380 = vmatprep.mubr.bf16.mxu0 %v289
  %381 = vmatmul.mubr.bf16.gmra.mxu0 %v114
  %v382 = vpop.f32.mrf.mxu0
  %v383 = vadd.f32 %v334, %v382
  %v384 = vpop.f32.mrf.mxu0
  %v385 = vpop.f32.mrf.mxu0
  %v386 = vadd.f32 %v337, %v385
  %v387 = vpop.f32.mrf.mxu0
  %388 = vdwg.mxu0
  %v389 = vpack.c.bf16 %v378, %v375
  %v390 = vpack.c.bf16 %v386, %v383
  %v393 = vunpack.c.l.b16 %v389
  %v394 = vunpack.c.h.b16 %v389
  %v395 = vunpack.c.l.b16 %v390
  %v396 = vunpack.c.h.b16 %v390
  %v397 = vpack.c.b16 %v393, %v393
  %v398 = vpack.c.b16 %v394, %v394
  %v399 = vpack.c.b16 %v395, %v395
  %v400 = vpack.c.b16 %v396, %v396
  %405 = vst [vmem:[%s3] sm:$0xf] %v397
  %406 = vst [vmem:[%s3 + $0x4] sm:$0xf] %v398
  %407 = vst [vmem:[%s3 + $0x8] sm:$0xf] %v399
  %408 = vst [vmem:[%s3 + $0xc] sm:$0xf] %v400
  // Predicated region
  $region14: #{cnn_embedding_forward.5} parent=0 // pred_check
    _
  $region15: #{cnn_embedding_forward.5} parent=0 // pred_check_branch
    %410 = sbr.rel (0) target = $region17
  $region16: #{cnn_embedding_forward.5} parent=0 // pred_region
    _
  $region17: #{cnn_embedding_forward.5} parent=0 // pred_fallthru
    _
  // Predicated region
  $region18: #{cnn_embedding_forward.5} parent=0 // pred_check
    _
  $region19: #{cnn_embedding_forward.5} parent=0 // pred_check_branch
    %412 = sbr.rel (0) target = $region21
  $region20: #{cnn_embedding_forward.5} parent=0 // pred_region
    _
  $region21: #{cnn_embedding_forward.5} parent=0 // pred_fallthru
    _

// kernel: cnn_embedding_forward.6
$region0: #{cnn_embedding_forward.6}
  #allocation0 [shape = 'u32[]', space=smem, size = 0x4, offset = 0x4, fixed_abs, tag = 'smem constant byte address 0x4 - core index']
  #allocation1 [shape = 'u32[144,128]{1,0:T(1,128)}', space=vmem, size = 0x12000, scoped, tag = 'internal scratch']
  %s0 = inlined_call_operand.vmem [shape: bf16[16,864], index: 0, kind: input, shape index: {}]
  %s1 = inlined_call_operand.vmem [shape: bf16[864,256], index: 1, kind: input, shape index: {}]
  %s2 = inlined_call_operand.vmem [shape: f32[1,256], index: 2, kind: input, shape index: {}]
  %s3 = inlined_call_operand.vmem [shape: bf16[16,256], index: 3, kind: output, shape index: {}]
  %s4 = sld [smem:[#allocation0]]
  $region22: #{cnn_embedding_forward.6} parent=0
    _
  %s6 = ssub.s32 1, %s4
  %s7 = scalar_select 0, %s6, %s4
  // Predicated region
  $region2: #{cnn_embedding_forward.6} parent=0 // pred_check
    _
  $region3: #{cnn_embedding_forward.6} parent=0 // pred_check_branch
    %9 = sbr.rel (0) target = $region5
  $region4: #{cnn_embedding_forward.6} parent=0 // pred_region
    _
  $region5: #{cnn_embedding_forward.6} parent=0 // pred_fallthru
    _
  // Predicated region
  $region6: #{cnn_embedding_forward.6} parent=0 // pred_check
    _
  $region7: #{cnn_embedding_forward.6} parent=0 // pred_check_branch
    %11 = sbr.rel (0) target = $region9
  $region8: #{cnn_embedding_forward.6} parent=0 // pred_region
    _
  $region9: #{cnn_embedding_forward.6} parent=0 // pred_fallthru
    _
  // Predicated region
  $region10: #{cnn_embedding_forward.6} parent=0 // pred_check
    _
  $region11: #{cnn_embedding_forward.6} parent=0 // pred_check_branch
    %13 = sbr.rel (0) target = $region13
  $region12: #{cnn_embedding_forward.6} parent=0 // pred_region
    _
  $region13: #{cnn_embedding_forward.6} parent=0 // pred_fallthru
    _
  %v15 = vld [vmem:[%s0] sm:$0xff]
  %v16 = vld [vmem:[%s0 + $0x8] sm:$0xff]
  %v17 = vld [vmem:[%s0 + $0x10] sm:$0xff]
  %v18 = vld [vmem:[%s0 + $0x18] sm:$0xf]
  %v19 = vld [vmem:[%s0 + $0x1c] sm:$0xff]
  %v20 = vld [vmem:[%s0 + $0x24] sm:$0xff]
  %v21 = vld [vmem:[%s0 + $0x2c] sm:$0xff]
  %v22 = vld [vmem:[%s0 + $0x34] sm:$0xf]
  %v23 = vld [vmem:[%s1] sm:$0xff]
  %v24 = vld [vmem:[%s1 + $0x8] sm:$0xff]
  %v25 = vld [vmem:[%s1 + $0x10] sm:$0xff]
  %v26 = vld [vmem:[%s1 + $0x18] sm:$0xff]
  %v27 = vld [vmem:[%s1 + $0x20] sm:$0xff]
  %v28 = vld [vmem:[%s1 + $0x28] sm:$0xff]
  %v29 = vld [vmem:[%s1 + $0x30] sm:$0xff]
  %v30 = vld [vmem:[%s1 + $0x38] sm:$0xff]
  %v31 = vld [vmem:[%s1 + $0x40] sm:$0xff]
  %v32 = vld [vmem:[%s1 + $0x48] sm:$0xff]
  %v33 = vld [vmem:[%s1 + $0x50] sm:$0xff]
  %v34 = vld [vmem:[%s1 + $0x58] sm:$0xff]
  %v35 = vld [vmem:[%s1 + $0x60] sm:$0xff]
  %v36 = vld [vmem:[%s1 + $0x68] sm:$0xff]
  %v37 = vld [vmem:[%s1 + $0x70] sm:$0xff]
  %v38 = vld [vmem:[%s1 + $0x78] sm:$0xff]
  %v39 = vld [vmem:[%s1 + $0x80] sm:$0xff]
  %v40 = vld [vmem:[%s1 + $0x88] sm:$0xff]
  %v41 = vld [vmem:[%s1 + $0x90] sm:$0xff]
  %v42 = vld [vmem:[%s1 + $0x98] sm:$0xff]
  %v43 = vld [vmem:[%s1 + $0xa0] sm:$0xff]
  %v44 = vld [vmem:[%s1 + $0xa8] sm:$0xff]
  %v45 = vld [vmem:[%s1 + $0xb0] sm:$0xff]
  %v46 = vld [vmem:[%s1 + $0xb8] sm:$0xff]
  %v47 = vld [vmem:[%s1 + $0xc0] sm:$0xff]
  %v48 = vld [vmem:[%s1 + $0xc8] sm:$0xff]
  %v49 = vld [vmem:[%s1 + $0xd0] sm:$0xff]
  %v50 = vld [vmem:[%s1 + $0xd8] sm:$0xff]
  %v51 = vld [vmem:[%s1 + $0xe0] sm:$0xff]
  %v52 = vld [vmem:[%s1 + $0xe8] sm:$0xff]
  %v53 = vld [vmem:[%s1 + $0xf0] sm:$0xff]
  %v54 = vld [vmem:[%s1 + $0xf8] sm:$0xff]
  %v55 = vld [vmem:[%s1 + $0x100] sm:$0xff]
  %v56 = vld [vmem:[%s1 + $0x108] sm:$0xff]
  %v57 = vld [vmem:[%s1 + $0x110] sm:$0xff]
  %v58 = vld [vmem:[%s1 + $0x118] sm:$0xff]
  %v59 = vld [vmem:[%s1 + $0x120] sm:$0xff]
  %v60 = vld [vmem:[%s1 + $0x128] sm:$0xff]
  %v61 = vld [vmem:[%s1 + $0x130] sm:$0xff]
  %v62 = vld [vmem:[%s1 + $0x138] sm:$0xff]
  %v63 = vld [vmem:[%s1 + $0x140] sm:$0xff]
  %v64 = vld [vmem:[%s1 + $0x148] sm:$0xff]
  %v65 = vld [vmem:[%s1 + $0x150] sm:$0xff]
  %v66 = vld [vmem:[%s1 + $0x158] sm:$0xff]
  %v67 = vld [vmem:[%s1 + $0x160] sm:$0xff]
  %v68 = vld [vmem:[%s1 + $0x168] sm:$0xff]
  %v69 = vld [vmem:[%s1 + $0x170] sm:$0xff]
  %v70 = vld [vmem:[%s1 + $0x178] sm:$0xff]
  %v71 = vld [vmem:[%s1 + $0x180] sm:$0xff]
  %v72 = vld [vmem:[%s1 + $0x188] sm:$0xff]
  %v73 = vld [vmem:[%s1 + $0x190] sm:$0xff]
  %v74 = vld [vmem:[%s1 + $0x198] sm:$0xff]
  %v75 = vld [vmem:[%s1 + $0x1a0] sm:$0xff]
  %v76 = vld [vmem:[%s1 + $0x1a8] sm:$0xff]
  %v77 = vld [vmem:[%s1 + $0x1b0] sm:$0xff]
  %v78 = vld [vmem:[%s1 + $0x1b8] sm:$0xff]
  %v79 = vld [vmem:[%s1 + $0x1c0] sm:$0xff]
  %v80 = vld [vmem:[%s1 + $0x1c8] sm:$0xff]
  %v81 = vld [vmem:[%s1 + $0x1d0] sm:$0xff]
  %v82 = vld [vmem:[%s1 + $0x1d8] sm:$0xff]
  %v83 = vld [vmem:[%s1 + $0x1e0] sm:$0xff]
  %v84 = vld [vmem:[%s1 + $0x1e8] sm:$0xff]
  %v85 = vld [vmem:[%s1 + $0x1f0] sm:$0xff]
  %v86 = vld [vmem:[%s1 + $0x1f8] sm:$0xff]
  %v87 = vld [vmem:[%s1 + $0x200] sm:$0xff]
  %v88 = vld [vmem:[%s1 + $0x208] sm:$0xff]
  %v89 = vld [vmem:[%s1 + $0x210] sm:$0xff]
  %v90 = vld [vmem:[%s1 + $0x218] sm:$0xff]
  %v91 = vld [vmem:[%s1 + $0x220] sm:$0xff]
  %v92 = vld [vmem:[%s1 + $0x228] sm:$0xff]
  %v93 = vld [vmem:[%s1 + $0x230] sm:$0xff]
  %v94 = vld [vmem:[%s1 + $0x238] sm:$0xff]
  %v95 = vld [vmem:[%s1 + $0x240] sm:$0xff]
  %v96 = vld [vmem:[%s1 + $0x248] sm:$0xff]
  %v97 = vld [vmem:[%s1 + $0x250] sm:$0xff]
  %v98 = vld [vmem:[%s1 + $0x258] sm:$0xff]
  %v99 = vld [vmem:[%s1 + $0x260] sm:$0xff]
  %v100 = vld [vmem:[%s1 + $0x268] sm:$0xff]
  %v101 = vld [vmem:[%s1 + $0x270] sm:$0xff]
  %v102 = vld [vmem:[%s1 + $0x278] sm:$0xff]
  %v103 = vld [vmem:[%s1 + $0x280] sm:$0xff]
  %v104 = vld [vmem:[%s1 + $0x288] sm:$0xff]
  %v105 = vld [vmem:[%s1 + $0x290] sm:$0xff]
  %v106 = vld [vmem:[%s1 + $0x298] sm:$0xff]
  %v107 = vld [vmem:[%s1 + $0x2a0] sm:$0xff]
  %v108 = vld [vmem:[%s1 + $0x2a8] sm:$0xff]
  %v109 = vld [vmem:[%s1 + $0x2b0] sm:$0xff]
  %v110 = vld [vmem:[%s1 + $0x2b8] sm:$0xff]
  %v111 = vld [vmem:[%s1 + $0x2c0] sm:$0xff]
  %v112 = vld [vmem:[%s1 + $0x2c8] sm:$0xff]
  %v113 = vld [vmem:[%s1 + $0x2d0] sm:$0xff]
  %v114 = vld [vmem:[%s1 + $0x2d8] sm:$0xff]
  %v115 = vld [vmem:[%s1 + $0x2e0] sm:$0xff]
  %v116 = vld [vmem:[%s1 + $0x2e8] sm:$0xff]
  %v117 = vld [vmem:[%s1 + $0x2f0] sm:$0xff]
  %v118 = vld [vmem:[%s1 + $0x2f8] sm:$0xff]
  %v119 = vld [vmem:[%s1 + $0x300] sm:$0xff]
  %v120 = vld [vmem:[%s1 + $0x308] sm:$0xff]
  %v121 = vld [vmem:[%s1 + $0x310] sm:$0xff]
  %v122 = vld [vmem:[%s1 + $0x318] sm:$0xff]
  %v123 = vld [vmem:[%s1 + $0x320] sm:$0xff]
  %v124 = vld [vmem:[%s1 + $0x328] sm:$0xff]
  %v125 = vld [vmem:[%s1 + $0x330] sm:$0xff]
  %v126 = vld [vmem:[%s1 + $0x338] sm:$0xff]
  %v127 = vld [vmem:[%s1 + $0x340] sm:$0xff]
  %v128 = vld [vmem:[%s1 + $0x348] sm:$0xff]
  %v129 = vld [vmem:[%s1 + $0x350] sm:$0xff]
  %v130 = vld [vmem:[%s1 + $0x358] sm:$0xff]
  %v131 = vld [vmem:[%s2] sm:$0x3]
  %v133 = vlaneseq
  %v134 = vshrl.u32 %v133, 7
  %v135 = vsub.s32 0, %v134
  %v136 = vrot.slane %v131, %v135
  %v137 = vlaneseq
  %v138 = vshrl.u32 %v137, 7
  %v139 = vsub.s32 1, %v138
  %v140 = vrot.slane %v131, %v139
  %v151 = vunpack.c.l.b16 %v15
  %v152 = vunpack.c.h.b16 %v15
  %v153 = vunpack.c.l.b16 %v16
  %v154 = vunpack.c.h.b16 %v16
  %v155 = vunpack.c.l.b16 %v17
  %v156 = vunpack.c.h.b16 %v17
  %v157 = vunpack.c.l.b16 %v18
  %v158 = vunpack.c.l.b16 %v19
  %v159 = vunpack.c.h.b16 %v19
  %v160 = vunpack.c.l.b16 %v20
  %v161 = vunpack.c.h.b16 %v20
  %v162 = vunpack.c.l.b16 %v21
  %v163 = vunpack.c.h.b16 %v21
  %v164 = vunpack.c.l.b16 %v22
  %v165 = vpack.c.b16 %v158, %v151
  %v166 = vpack.c.b16 %v159, %v152
  %v167 = vpack.c.b16 %v160, %v153
  %v168 = vpack.c.b16 %v161, %v154
  %v169 = vpack.c.b16 %v162, %v155
  %v170 = vpack.c.b16 %v163, %v156
  %v171 = vpack.c.b16 %v164, %v157
  %v286 = vunpack.c.l.b16 %v23
  %v287 = vunpack.c.h.b16 %v23
  %v288 = vunpack.c.l.b16 %v24
  %v289 = vunpack.c.h.b16 %v24
  %v290 = vunpack.c.l.b16 %v25
  %v291 = vunpack.c.h.b16 %v25
  %v292 = vunpack.c.l.b16 %v26
  %v293 = vunpack.c.h.b16 %v26
  %v294 = vunpack.c.l.b16 %v27
  %v295 = vunpack.c.h.b16 %v27
  %v296 = vunpack.c.l.b16 %v28
  %v297 = vunpack.c.h.b16 %v28
  %v298 = vunpack.c.l.b16 %v29
  %v299 = vunpack.c.h.b16 %v29
  %v300 = vunpack.c.l.b16 %v30
  %v301 = vunpack.c.h.b16 %v30
  %v302 = vunpack.c.l.b16 %v31
  %v303 = vunpack.c.h.b16 %v31
  %v304 = vunpack.c.l.b16 %v32
  %v305 = vunpack.c.h.b16 %v32
  %v306 = vunpack.c.l.b16 %v33
  %v307 = vunpack.c.h.b16 %v33
  %v308 = vunpack.c.l.b16 %v34
  %v309 = vunpack.c.h.b16 %v34
  %v310 = vunpack.c.l.b16 %v35
  %v311 = vunpack.c.h.b16 %v35
  %v312 = vunpack.c.l.b16 %v36
  %v313 = vunpack.c.h.b16 %v36
  %v314 = vunpack.c.l.b16 %v37
  %v315 = vunpack.c.h.b16 %v37
  %v316 = vunpack.c.l.b16 %v38
  %v317 = vunpack.c.h.b16 %v38
  %v318 = vunpack.c.l.b16 %v39
  %v319 = vunpack.c.h.b16 %v39
  %v320 = vunpack.c.l.b16 %v40
  %v321 = vunpack.c.h.b16 %v40
  %v322 = vunpack.c.l.b16 %v41
  %v323 = vunpack.c.h.b16 %v41
  %v324 = vunpack.c.l.b16 %v42
  %v325 = vunpack.c.h.b16 %v42
  %v326 = vunpack.c.l.b16 %v43
  %v327 = vunpack.c.h.b16 %v43
  %v328 = vunpack.c.l.b16 %v44
  %v329 = vunpack.c.h.b16 %v44
  %v330 = vunpack.c.l.b16 %v45
  %v331 = vunpack.c.h.b16 %v45
  %v332 = vunpack.c.l.b16 %v46
  %v333 = vunpack.c.h.b16 %v46
  %v334 = vunpack.c.l.b16 %v47
  %v335 = vunpack.c.h.b16 %v47
  %v336 = vunpack.c.l.b16 %v48
  %v337 = vunpack.c.h.b16 %v48
  %v338 = vunpack.c.l.b16 %v49
  %v339 = vunpack.c.h.b16 %v49
  %v340 = vunpack.c.l.b16 %v50
  %v341 = vunpack.c.h.b16 %v50
  %v342 = vunpack.c.l.b16 %v51
  %v343 = vunpack.c.h.b16 %v51
  %v344 = vunpack.c.l.b16 %v52
  %v345 = vunpack.c.h.b16 %v52
  %v346 = vunpack.c.l.b16 %v53
  %v347 = vunpack.c.h.b16 %v53
  %v348 = vunpack.c.l.b16 %v54
  %v349 = vunpack.c.h.b16 %v54
  %v350 = vunpack.c.l.b16 %v55
  %v351 = vunpack.c.h.b16 %v55
  %v352 = vunpack.c.l.b16 %v56
  %v353 = vunpack.c.h.b16 %v56
  %v354 = vunpack.c.l.b16 %v57
  %v355 = vunpack.c.h.b16 %v57
  %v356 = vunpack.c.l.b16 %v58
  %v357 = vunpack.c.h.b16 %v58
  %v358 = vunpack.c.l.b16 %v59
  %v359 = vunpack.c.h.b16 %v59
  %v360 = vunpack.c.l.b16 %v60
  %v361 = vunpack.c.h.b16 %v60
  %v362 = vunpack.c.l.b16 %v61
  %v363 = vunpack.c.h.b16 %v61
  %v364 = vunpack.c.l.b16 %v62
  %v365 = vunpack.c.h.b16 %v62
  %v366 = vunpack.c.l.b16 %v63
  %v367 = vunpack.c.h.b16 %v63
  %v368 = vunpack.c.l.b16 %v64
  %v369 = vunpack.c.h.b16 %v64
  %v370 = vunpack.c.l.b16 %v65
  %v371 = vunpack.c.h.b16 %v65
  %v372 = vunpack.c.l.b16 %v66
  %v373 = vunpack.c.h.b16 %v66
  %v374 = vunpack.c.l.b16 %v67
  %v375 = vunpack.c.h.b16 %v67
  %v376 = vunpack.c.l.b16 %v68
  %v377 = vunpack.c.h.b16 %v68
  %v378 = vunpack.c.l.b16 %v69
  %v379 = vunpack.c.h.b16 %v69
  %v380 = vunpack.c.l.b16 %v70
  %v381 = vunpack.c.h.b16 %v70
  %v382 = vunpack.c.l.b16 %v71
  %v383 = vunpack.c.h.b16 %v71
  %v384 = vunpack.c.l.b16 %v72
  %v385 = vunpack.c.h.b16 %v72
  %v386 = vunpack.c.l.b16 %v73
  %v387 = vunpack.c.h.b16 %v73
  %v388 = vunpack.c.l.b16 %v74
  %v389 = vunpack.c.h.b16 %v74
  %v390 = vunpack.c.l.b16 %v75
  %v391 = vunpack.c.h.b16 %v75
  %v392 = vunpack.c.l.b16 %v76
  %v393 = vunpack.c.h.b16 %v76
  %v394 = vunpack.c.l.b16 %v77
  %v395 = vunpack.c.h.b16 %v77
  %v396 = vunpack.c.l.b16 %v78
  %v397 = vunpack.c.h.b16 %v78
  %v398 = vunpack.c.l.b16 %v79
  %v399 = vunpack.c.h.b16 %v79
  %v400 = vunpack.c.l.b16 %v80
  %v401 = vunpack.c.h.b16 %v80
  %v402 = vunpack.c.l.b16 %v81
  %v403 = vunpack.c.h.b16 %v81
  %v404 = vunpack.c.l.b16 %v82
  %v405 = vunpack.c.h.b16 %v82
  %v406 = vunpack.c.l.b16 %v83
  %v407 = vunpack.c.h.b16 %v83
  %v408 = vunpack.c.l.b16 %v84
  %v409 = vunpack.c.h.b16 %v84
  %v410 = vunpack.c.l.b16 %v85
  %v411 = vunpack.c.h.b16 %v85
  %v412 = vunpack.c.l.b16 %v86
  %v413 = vunpack.c.h.b16 %v86
  %v414 = vunpack.c.l.b16 %v87
  %v415 = vunpack.c.h.b16 %v87
  %v416 = vunpack.c.l.b16 %v88
  %v417 = vunpack.c.h.b16 %v88
  %v418 = vunpack.c.l.b16 %v89
  %v419 = vunpack.c.h.b16 %v89
  %v420 = vunpack.c.l.b16 %v90
  %v421 = vunpack.c.h.b16 %v90
  %v422 = vunpack.c.l.b16 %v91
  %v423 = vunpack.c.h.b16 %v91
  %v424 = vunpack.c.l.b16 %v92
  %v425 = vunpack.c.h.b16 %v92
  %v426 = vunpack.c.l.b16 %v93
  %v427 = vunpack.c.h.b16 %v93
  %v428 = vunpack.c.l.b16 %v94
  %v429 = vunpack.c.h.b16 %v94
  %v430 = vunpack.c.l.b16 %v95
  %v431 = vunpack.c.h.b16 %v95
  %v432 = vunpack.c.l.b16 %v96
  %v433 = vunpack.c.h.b16 %v96
  %v434 = vunpack.c.l.b16 %v97
  %v435 = vunpack.c.h.b16 %v97
  %v436 = vunpack.c.l.b16 %v98
  %v437 = vunpack.c.h.b16 %v98
  %v438 = vunpack.c.l.b16 %v99
  %v439 = vunpack.c.h.b16 %v99
  %v440 = vunpack.c.l.b16 %v100
  %v441 = vunpack.c.h.b16 %v100
  %v442 = vunpack.c.l.b16 %v101
  %v443 = vunpack.c.h.b16 %v101
  %v444 = vunpack.c.l.b16 %v102
  %v445 = vunpack.c.h.b16 %v102
  %v446 = vunpack.c.l.b16 %v103
  %v447 = vunpack.c.h.b16 %v103
  %v448 = vunpack.c.l.b16 %v104
  %v449 = vunpack.c.h.b16 %v104
  %v450 = vunpack.c.l.b16 %v105
  %v451 = vunpack.c.h.b16 %v105
  %v452 = vunpack.c.l.b16 %v106
  %v453 = vunpack.c.h.b16 %v106
  %v454 = vunpack.c.l.b16 %v107
  %v455 = vunpack.c.h.b16 %v107
  %v456 = vunpack.c.l.b16 %v108
  %v457 = vunpack.c.h.b16 %v108
  %v458 = vunpack.c.l.b16 %v109
  %v459 = vunpack.c.h.b16 %v109
  %v460 = vunpack.c.l.b16 %v110
  %v461 = vunpack.c.h.b16 %v110
  %v462 = vunpack.c.l.b16 %v111
  %v463 = vunpack.c.h.b16 %v111
  %v464 = vunpack.c.l.b16 %v112
  %v465 = vunpack.c.h.b16 %v112
  %v466 = vunpack.c.l.b16 %v113
  %v467 = vunpack.c.h.b16 %v113
  %v468 = vunpack.c.l.b16 %v114
  %v469 = vunpack.c.h.b16 %v114
  %v470 = vunpack.c.l.b16 %v115
  %v471 = vunpack.c.h.b16 %v115
  %v472 = vunpack.c.l.b16 %v116
  %v473 = vunpack.c.h.b16 %v116
  %v474 = vunpack.c.l.b16 %v117
  %v475 = vunpack.c.h.b16 %v117
  %v476 = vunpack.c.l.b16 %v118
  %v477 = vunpack.c.h.b16 %v118
  %v478 = vunpack.c.l.b16 %v119
  %v479 = vunpack.c.h.b16 %v119
  %v480 = vunpack.c.l.b16 %v120
  %v481 = vunpack.c.h.b16 %v120
  %v482 = vunpack.c.l.b16 %v121
  %v483 = vunpack.c.h.b16 %v121
  %v484 = vunpack.c.l.b16 %v122
  %v485 = vunpack.c.h.b16 %v122
  %v486 = vunpack.c.l.b16 %v123
  %v487 = vunpack.c.h.b16 %v123
  %v488 = vunpack.c.l.b16 %v124
  %v489 = vunpack.c.h.b16 %v124
  %v490 = vunpack.c.l.b16 %v125
  %v491 = vunpack.c.h.b16 %v125
  %v492 = vunpack.c.l.b16 %v126
  %v493 = vunpack.c.h.b16 %v126
  %v494 = vunpack.c.l.b16 %v127
  %v495 = vunpack.c.h.b16 %v127
  %v496 = vunpack.c.l.b16 %v128
  %v497 = vunpack.c.h.b16 %v128
  %v498 = vunpack.c.l.b16 %v129
  %v499 = vunpack.c.h.b16 %v129
  %v500 = vunpack.c.l.b16 %v130
  %v501 = vunpack.c.h.b16 %v130
  %v502 = vpack.c.b16 %v288, %v286
  %v503 = vpack.c.b16 %v289, %v287
  %v504 = vpack.c.b16 %v292, %v290
  %v505 = vpack.c.b16 %v293, %v291
  %v506 = vpack.c.b16 %v296, %v294
  %v507 = vpack.c.b16 %v297, %v295
  %v508 = vpack.c.b16 %v300, %v298
  %v509 = vpack.c.b16 %v301, %v299
  %v510 = vpack.c.b16 %v304, %v302
  %v511 = vpack.c.b16 %v305, %v303
  %v512 = vpack.c.b16 %v308, %v306
  %v513 = vpack.c.b16 %v309, %v307
  %v514 = vpack.c.b16 %v312, %v310
  %v515 = vpack.c.b16 %v313, %v311
  %v516 = vpack.c.b16 %v316, %v314
  %v517 = vpack.c.b16 %v317, %v315
  %v518 = vpack.c.b16 %v320, %v318
  %v519 = vpack.c.b16 %v321, %v319
  %v520 = vpack.c.b16 %v324, %v322
  %v521 = vpack.c.b16 %v325, %v323
  %v522 = vpack.c.b16 %v328, %v326
  %v523 = vpack.c.b16 %v329, %v327
  %v524 = vpack.c.b16 %v332, %v330
  %v525 = vpack.c.b16 %v333, %v331
  %v526 = vpack.c.b16 %v336, %v334
  %v527 = vpack.c.b16 %v337, %v335
  %v528 = vpack.c.b16 %v340, %v338
  %v529 = vpack.c.b16 %v341, %v339
  %v530 = vpack.c.b16 %v344, %v342
  %v531 = vpack.c.b16 %v345, %v343
  %v532 = vpack.c.b16 %v348, %v346
  %v533 = vpack.c.b16 %v349, %v347
  %v534 = vpack.c.b16 %v352, %v350
  %v535 = vpack.c.b16 %v353, %v351
  %v536 = vpack.c.b16 %v356, %v354
  %v537 = vpack.c.b16 %v357, %v355
  %v538 = vpack.c.b16 %v360, %v358
  %v539 = vpack.c.b16 %v361, %v359
  %v540 = vpack.c.b16 %v364, %v362
  %v541 = vpack.c.b16 %v365, %v363
  %v542 = vpack.c.b16 %v368, %v366
  %v543 = vpack.c.b16 %v369, %v367
  %v544 = vpack.c.b16 %v372, %v370
  %v545 = vpack.c.b16 %v373, %v371
  %v546 = vpack.c.b16 %v376, %v374
  %v547 = vpack.c.b16 %v377, %v375
  %v548 = vpack.c.b16 %v380, %v378
  %v549 = vpack.c.b16 %v381, %v379
  %v550 = vpack.c.b16 %v384, %v382
  %v551 = vpack.c.b16 %v385, %v383
  %v552 = vpack.c.b16 %v388, %v386
  %v553 = vpack.c.b16 %v389, %v387
  %v554 = vpack.c.b16 %v392, %v390
  %v555 = vpack.c.b16 %v393, %v391
  %v556 = vpack.c.b16 %v396, %v394
  %v557 = vpack.c.b16 %v397, %v395
  %v558 = vpack.c.b16 %v400, %v398
  %v559 = vpack.c.b16 %v401, %v399
  %v560 = vpack.c.b16 %v404, %v402
  %v561 = vpack.c.b16 %v405, %v403
  %v562 = vpack.c.b16 %v408, %v406
  %v563 = vpack.c.b16 %v409, %v407
  %v564 = vpack.c.b16 %v412, %v410
  %v565 = vpack.c.b16 %v413, %v411
  %v566 = vpack.c.b16 %v416, %v414
  %v567 = vpack.c.b16 %v417, %v415
  %v568 = vpack.c.b16 %v420, %v418
  %v569 = vpack.c.b16 %v421, %v419
  %v570 = vpack.c.b16 %v424, %v422
  %v571 = vpack.c.b16 %v425, %v423
  %v572 = vpack.c.b16 %v428, %v426
  %v573 = vpack.c.b16 %v429, %v427
  %v574 = vpack.c.b16 %v432, %v430
  %v575 = vpack.c.b16 %v433, %v431
  %v576 = vpack.c.b16 %v436, %v434
  %v577 = vpack.c.b16 %v437, %v435
  %v578 = vpack.c.b16 %v440, %v438
  %v579 = vpack.c.b16 %v441, %v439
  %v580 = vpack.c.b16 %v444, %v442
  %v581 = vpack.c.b16 %v445, %v443
  %v582 = vpack.c.b16 %v448, %v446
  %v583 = vpack.c.b16 %v449, %v447
  %v584 = vpack.c.b16 %v452, %v450
  %v585 = vpack.c.b16 %v453, %v451
  %v586 = vpack.c.b16 %v456, %v454
  %v587 = vpack.c.b16 %v457, %v455
  %v588 = vpack.c.b16 %v460, %v458
  %v589 = vpack.c.b16 %v461, %v459
  %v590 = vpack.c.b16 %v464, %v462
  %v591 = vpack.c.b16 %v465, %v463
  %v592 = vpack.c.b16 %v468, %v466
  %v593 = vpack.c.b16 %v469, %v467
  %v594 = vpack.c.b16 %v472, %v470
  %v595 = vpack.c.b16 %v473, %v471
  %v596 = vpack.c.b16 %v476, %v474
  %v597 = vpack.c.b16 %v477, %v475
  %v598 = vpack.c.b16 %v480, %v478
  %v599 = vpack.c.b16 %v481, %v479
  %v600 = vpack.c.b16 %v484, %v482
  %v601 = vpack.c.b16 %v485, %v483
  %v602 = vpack.c.b16 %v488, %v486
  %v603 = vpack.c.b16 %v489, %v487
  %v604 = vpack.c.b16 %v492, %v490
  %v605 = vpack.c.b16 %v493, %v491
  %v606 = vpack.c.b16 %v496, %v494
  %v607 = vpack.c.b16 %v497, %v495
  %v608 = vpack.c.b16 %v500, %v498
  %v609 = vpack.c.b16 %v501, %v499
  %vm718 = vcmask 785408
  %v720 = vsel %vm718, %v171, 0
  %722 = vmatprep.subr.bf16.mxu0 %v517
  %723 = vmatpush1.bf16.msra.mxu0 %v516
  %724 = vmatprep.subr.bf16.mxu0 %v515
  %725 = vmatpush1.bf16.msra.mxu0 %v514
  %726 = vmatprep.subr.bf16.mxu0 %v513
  %727 = vmatpush1.bf16.msra.mxu0 %v512
  %728 = vmatprep.subr.bf16.mxu0 %v511
  %729 = vmatpush1.bf16.msra.mxu0 %v510
  %730 = vmatprep.subr.bf16.mxu0 %v509
  %731 = vmatpush1.bf16.msra.mxu0 %v508
  %732 = vmatprep.subr.bf16.mxu0 %v507
  %733 = vmatpush1.bf16.msra.mxu0 %v506
  %734 = vmatprep.subr.bf16.mxu0 %v505
  %735 = vmatpush1.bf16.msra.mxu0 %v504
  %736 = vmatprep.subr.bf16.mxu0 %v503
  %737 = vmatpush1.bf16.msra.mxu0 %v502
  %738 = vmatprep.subr.bf16.mxu0 %v533
  %739 = vmatpush2.bf16.msra.mxu0 %v532
  %740 = vmatprep.subr.bf16.mxu0 %v531
  %741 = vmatpush2.bf16.msra.mxu0 %v530
  %742 = vmatprep.subr.bf16.mxu0 %v529
  %743 = vmatpush2.bf16.msra.mxu0 %v528
  %744 = vmatprep.subr.bf16.mxu0 %v527
  %745 = vmatpush2.bf16.msra.mxu0 %v526
  %746 = vmatprep.subr.bf16.mxu0 %v525
  %747 = vmatpush2.bf16.msra.mxu0 %v524
  %748 = vmatprep.subr.bf16.mxu0 %v523
  %749 = vmatpush2.bf16.msra.mxu0 %v522
  %750 = vmatprep.subr.bf16.mxu0 %v521
  %751 = vmatpush2.bf16.msra.mxu0 %v520
  %752 = vmatprep.subr.bf16.mxu0 %v519
  %753 = vmatpush2.bf16.msra.mxu0 %v518
  %754 = vmatprep.mubr.bf16.mxu0 %v166
  %755 = vmatmul.mubr.bf16.gmra.mxu0 %v165
  %v756 = vpop.f32.mrf.mxu0
  %v757 = vadd.f32 %v136, %v756
  %v758 = vpop.f32.mrf.mxu0
  %v759 = vadd.f32 %v140, %v758
  %v760 = vpop.f32.mrf.mxu0
  %v761 = vadd.f32 %v136, %v760
  %v762 = vpop.f32.mrf.mxu0
  %v763 = vadd.f32 %v140, %v762
  %764 = vdwg.mxu0
  %765 = vmatprep.subr.bf16.mxu0 %v549
  %766 = vmatpush1.bf16.msra.mxu0 %v548
  %767 = vmatprep.subr.bf16.mxu0 %v547
  %768 = vmatpush1.bf16.msra.mxu0 %v546
  %769 = vmatprep.subr.bf16.mxu0 %v545
  %770 = vmatpush1.bf16.msra.mxu0 %v544
  %771 = vmatprep.subr.bf16.mxu0 %v543
  %772 = vmatpush1.bf16.msra.mxu0 %v542
  %773 = vmatprep.subr.bf16.mxu0 %v541
  %774 = vmatpush1.bf16.msra.mxu0 %v540
  %775 = vmatprep.subr.bf16.mxu0 %v539
  %776 = vmatpush1.bf16.msra.mxu0 %v538
  %777 = vmatprep.subr.bf16.mxu0 %v537
  %778 = vmatpush1.bf16.msra.mxu0 %v536
  %779 = vmatprep.subr.bf16.mxu0 %v535
  %780 = vmatpush1.bf16.msra.mxu0 %v534
  %781 = vmatprep.subr.bf16.mxu0 %v565
  %782 = vmatpush2.bf16.msra.mxu0 %v564
  %783 = vmatprep.subr.bf16.mxu0 %v563
  %784 = vmatpush2.bf16.msra.mxu0 %v562
  %785 = vmatprep.subr.bf16.mxu0 %v561
  %786 = vmatpush2.bf16.msra.mxu0 %v560
  %787 = vmatprep.subr.bf16.mxu0 %v559
  %788 = vmatpush2.bf16.msra.mxu0 %v558
  %789 = vmatprep.subr.bf16.mxu0 %v557
  %790 = vmatpush2.bf16.msra.mxu0 %v556
  %791 = vmatprep.subr.bf16.mxu0 %v555
  %792 = vmatpush2.bf16.msra.mxu0 %v554
  %793 = vmatprep.subr.bf16.mxu0 %v553
  %794 = vmatpush2.bf16.msra.mxu0 %v552
  %795 = vmatprep.subr.bf16.mxu0 %v551
  %796 = vmatpush2.bf16.msra.mxu0 %v550
  %797 = vmatprep.mubr.bf16.mxu0 %v168
  %798 = vmatmul.mubr.bf16.gmra.mxu0 %v167
  %v799 = vpop.f32.mrf.mxu0
  %v800 = vadd.f32 %v757, %v799
  %v801 = vpop.f32.mrf.mxu0
  %v802 = vadd.f32 %v759, %v801
  %v803 = vpop.f32.mrf.mxu0
  %v804 = vadd.f32 %v761, %v803
  %v805 = vpop.f32.mrf.mxu0
  %v806 = vadd.f32 %v763, %v805
  %807 = vdwg.mxu0
  %808 = vmatprep.subr.bf16.mxu0 %v581
  %809 = vmatpush1.bf16.msra.mxu0 %v580
  %810 = vmatprep.subr.bf16.mxu0 %v579
  %811 = vmatpush1.bf16.msra.mxu0 %v578
  %812 = vmatprep.subr.bf16.mxu0 %v577
  %813 = vmatpush1.bf16.msra.mxu0 %v576
  %814 = vmatprep.subr.bf16.mxu0 %v575
  %815 = vmatpush1.bf16.msra.mxu0 %v574
  %816 = vmatprep.subr.bf16.mxu0 %v573
  %817 = vmatpush1.bf16.msra.mxu0 %v572
  %818 = vmatprep.subr.bf16.mxu0 %v571
  %819 = vmatpush1.bf16.msra.mxu0 %v570
  %820 = vmatprep.subr.bf16.mxu0 %v569
  %821 = vmatpush1.bf16.msra.mxu0 %v568
  %822 = vmatprep.subr.bf16.mxu0 %v567
  %823 = vmatpush1.bf16.msra.mxu0 %v566
  %824 = vmatprep.subr.bf16.mxu0 %v597
  %825 = vmatpush2.bf16.msra.mxu0 %v596
  %826 = vmatprep.subr.bf16.mxu0 %v595
  %827 = vmatpush2.bf16.msra.mxu0 %v594
  %828 = vmatprep.subr.bf16.mxu0 %v593
  %829 = vmatpush2.bf16.msra.mxu0 %v592
  %830 = vmatprep.subr.bf16.mxu0 %v591
  %831 = vmatpush2.bf16.msra.mxu0 %v590
  %832 = vmatprep.subr.bf16.mxu0 %v589
  %833 = vmatpush2.bf16.msra.mxu0 %v588
  %834 = vmatprep.subr.bf16.mxu0 %v587
  %835 = vmatpush2.bf16.msra.mxu0 %v586
  %836 = vmatprep.subr.bf16.mxu0 %v585
  %837 = vmatpush2.bf16.msra.mxu0 %v584
  %838 = vmatprep.subr.bf16.mxu0 %v583
  %839 = vmatpush2.bf16.msra.mxu0 %v582
  %840 = vmatprep.mubr.bf16.mxu0 %v170
  %841 = vmatmul.mubr.bf16.gmra.mxu0 %v169
  %v842 = vpop.f32.mrf.mxu0
  %v843 = vadd.f32 %v800, %v842
  %v844 = vpop.f32.mrf.mxu0
  %v845 = vadd.f32 %v802, %v844
  %v846 = vpop.f32.mrf.mxu0
  %v847 = vadd.f32 %v804, %v846
  %v848 = vpop.f32.mrf.mxu0
  %v849 = vadd.f32 %v806, %v848
  %850 = vdwg.mxu0
  %851 = vmatprep.subr.bf16.mxu0 0
  %852 = vmatpush1.bf16.msra.mxu0 0
  %853 = vmatprep.subr.bf16.mxu0 0
  %854 = vmatpush1.bf16.msra.mxu0 0
  %855 = vmatprep.subr.bf16.mxu0 %v609
  %856 = vmatpush1.bf16.msra.mxu0 %v608
  %857 = vmatprep.subr.bf16.mxu0 %v607
  %858 = vmatpush1.bf16.msra.mxu0 %v606
  %859 = vmatprep.subr.bf16.mxu0 %v605
  %860 = vmatpush1.bf16.msra.mxu0 %v604
  %861 = vmatprep.subr.bf16.mxu0 %v603
  %862 = vmatpush1.bf16.msra.mxu0 %v602
  %863 = vmatprep.subr.bf16.mxu0 %v601
  %864 = vmatpush1.bf16.msra.mxu0 %v600
  %865 = vmatprep.subr.bf16.mxu0 %v599
  %866 = vmatpush1.bf16.msra.mxu0 %v598
  %867 = vmatprep.subr.bf16.mxu0 0
  %868 = vmatpush2.bf16.msra.mxu0 0
  %869 = vmatprep.subr.bf16.mxu0 0
  %870 = vmatpush2.bf16.msra.mxu0 0
  %871 = vmatprep.subr.bf16.mxu0 0
  %872 = vmatpush2.bf16.msra.mxu0 0
  %873 = vmatprep.subr.bf16.mxu0 0
  %874 = vmatpush2.bf16.msra.mxu0 0
  %875 = vmatprep.subr.bf16.mxu0 0
  %876 = vmatpush2.bf16.msra.mxu0 0
  %877 = vmatprep.subr.bf16.mxu0 0
  %878 = vmatpush2.bf16.msra.mxu0 0
  %879 = vmatprep.subr.bf16.mxu0 0
  %880 = vmatpush2.bf16.msra.mxu0 0
  %881 = vmatprep.subr.bf16.mxu0 0
  %882 = vmatpush2.bf16.msra.mxu0 0
  %883 = vmatprep.mubr.bf16.mxu0 0
  %884 = vmatmul.mubr.bf16.gmra.mxu0 %v720
  %v885 = vpop.f32.mrf.mxu0
  %v886 = vadd.f32 %v843, %v885
  %v887 = vpop.f32.mrf.mxu0
  %v888 = vadd.f32 %v845, %v887
  %v889 = vpop.f32.mrf.mxu0
  %v890 = vadd.f32 %v847, %v889
  %v891 = vpop.f32.mrf.mxu0
  %v892 = vadd.f32 %v849, %v891
  %893 = vdwg.mxu0
  %v894 = vpack.c.bf16 %v890, %v886
  %v895 = vpack.c.bf16 %v892, %v888
  %v898 = vunpack.c.l.b16 %v894
  %v899 = vunpack.c.l.b16 %v895
  %v900 = vunpack.c.h.b16 %v894
  %v901 = vunpack.c.h.b16 %v895
  %v902 = vpack.c.b16 %v899, %v898
  %v903 = vpack.c.b16 %v901, %v900
  %906 = vst [vmem:[%s3] sm:$0xff] %v902
  %907 = vst [vmem:[%s3 + $0x8] sm:$0xff] %v903
  // Predicated region
  $region14: #{cnn_embedding_forward.6} parent=0 // pred_check
    _
  $region15: #{cnn_embedding_forward.6} parent=0 // pred_check_branch
    %909 = sbr.rel (0) target = $region17
  $region16: #{cnn_embedding_forward.6} parent=0 // pred_region
    _
  $region17: #{cnn_embedding_forward.6} parent=0 // pred_fallthru
    _
  // Predicated region
  $region18: #{cnn_embedding_forward.6} parent=0 // pred_check
    _
  $region19: #{cnn_embedding_forward.6} parent=0 // pred_check_branch
    %911 = sbr.rel (0) target = $region21
  $region20: #{cnn_embedding_forward.6} parent=0 // pred_region
    _
  $region21: #{cnn_embedding_forward.6} parent=0 // pred_fallthru
    _

// kernel: cnn_embedding_forward.7
$region0: #{cnn_embedding_forward.7}
  #allocation0 [shape = 'u32[]', space=smem, size = 0x4, offset = 0x4, fixed_abs, tag = 'smem constant byte address 0x4 - core index']
  #allocation1 [shape = 'u32[144,128]{1,0:T(1,128)}', space=vmem, size = 0x12000, scoped, tag = 'internal scratch']
  %s0 = inlined_call_operand.vmem [shape: bf16[16,1728], index: 0, kind: input, shape index: {}]
  %s1 = inlined_call_operand.vmem [shape: bf16[1728,384], index: 1, kind: input, shape index: {}]
  %s2 = inlined_call_operand.vmem [shape: f32[1,384], index: 2, kind: input, shape index: {}]
  %s3 = inlined_call_operand.vmem [shape: bf16[384,256], index: 3, kind: input, shape index: {}]
  %s4 = inlined_call_operand.vmem [shape: f32[1,256], index: 4, kind: input, shape index: {}]
  %s5 = inlined_call_operand.vmem [shape: f32[16,256], index: 5, kind: output, shape index: {}]
  %s6 = sld [smem:[#allocation0]]
  $region30: #{cnn_embedding_forward.7} parent=0
    _
  %s8 = ssub.s32 1, %s6
  %s9 = scalar_select 0, %s8, %s6
  // Predicated region
  $region2: #{cnn_embedding_forward.7} parent=0 // pred_check
    _
  $region3: #{cnn_embedding_forward.7} parent=0 // pred_check_branch
    %11 = sbr.rel (0) target = $region5
  $region4: #{cnn_embedding_forward.7} parent=0 // pred_region
    _
  $region5: #{cnn_embedding_forward.7} parent=0 // pred_fallthru
    _
  // Predicated region
  $region6: #{cnn_embedding_forward.7} parent=0 // pred_check
    _
  $region7: #{cnn_embedding_forward.7} parent=0 // pred_check_branch
    %13 = sbr.rel (0) target = $region9
  $region8: #{cnn_embedding_forward.7} parent=0 // pred_region
    _
  $region9: #{cnn_embedding_forward.7} parent=0 // pred_fallthru
    _
  // Predicated region
  $region10: #{cnn_embedding_forward.7} parent=0 // pred_check
    _
  $region11: #{cnn_embedding_forward.7} parent=0 // pred_check_branch
    %15 = sbr.rel (0) target = $region13
  $region12: #{cnn_embedding_forward.7} parent=0 // pred_region
    _
  $region13: #{cnn_embedding_forward.7} parent=0 // pred_fallthru
    _
  // Predicated region
  $region14: #{cnn_embedding_forward.7} parent=0 // pred_check
    _
  $region15: #{cnn_embedding_forward.7} parent=0 // pred_check_branch
    %17 = sbr.rel (0) target = $region17
  $region16: #{cnn_embedding_forward.7} parent=0 // pred_region
    _
  $region17: #{cnn_embedding_forward.7} parent=0 // pred_fallthru
    _
  // Predicated region
  $region18: #{cnn_embedding_forward.7} parent=0 // pred_check
    _
  $region19: #{cnn_embedding_forward.7} parent=0 // pred_check_branch
    %19 = sbr.rel (0) target = $region21
  $region20: #{cnn_embedding_forward.7} parent=0 // pred_region
    _
  $region21: #{cnn_embedding_forward.7} parent=0 // pred_fallthru
    _
  %v21 = vld [vmem:[%s0] sm:$0xff]
  %v22 = vld [vmem:[%s0 + $0x8] sm:$0xff]
  %v23 = vld [vmem:[%s0 + $0x10] sm:$0xff]
  %v24 = vld [vmem:[%s0 + $0x18] sm:$0xff]
  %v25 = vld [vmem:[%s0 + $0x20] sm:$0xff]
  %v26 = vld [vmem:[%s0 + $0x28] sm:$0xff]
  %v27 = vld [vmem:[%s0 + $0x30] sm:$0xff]
  %v28 = vld [vmem:[%s0 + $0x38] sm:$0xff]
  %v29 = vld [vmem:[%s0 + $0x40] sm:$0xff]
  %v30 = vld [vmem:[%s0 + $0x48] sm:$0xff]
  %v31 = vld [vmem:[%s0 + $0x50] sm:$0xff]
  %v32 = vld [vmem:[%s0 + $0x58] sm:$0xff]
  %v33 = vld [vmem:[%s0 + $0x60] sm:$0xff]
  %v34 = vld [vmem:[%s0 + $0x68] sm:$0xff]
  %v35 = vld [vmem:[%s1] sm:$0xff]
  %v36 = vld [vmem:[%s1 + $0x8] sm:$0xf]
  %v37 = vld [vmem:[%s1 + $0xc] sm:$0xff]
  %v38 = vld [vmem:[%s1 + $0x14] sm:$0xf]
  %v39 = vld [vmem:[%s1 + $0x18] sm:$0xff]
  %v40 = vld [vmem:[%s1 + $0x20] sm:$0xf]
  %v41 = vld [vmem:[%s1 + $0x24] sm:$0xff]
  %v42 = vld [vmem:[%s1 + $0x2c] sm:$0xf]
  %v43 = vld [vmem:[%s1 + $0x30] sm:$0xff]
  %v44 = vld [vmem:[%s1 + $0x38] sm:$0xf]
  %v45 = vld [vmem:[%s1 + $0x3c] sm:$0xff]
  %v46 = vld [vmem:[%s1 + $0x44] sm:$0xf]
  %v47 = vld [vmem:[%s1 + $0x48] sm:$0xff]
  %v48 = vld [vmem:[%s1 + $0x50] sm:$0xf]
  %v49 = vld [vmem:[%s1 + $0x54] sm:$0xff]
  %v50 = vld [vmem:[%s1 + $0x5c] sm:$0xf]
  %v51 = vld [vmem:[%s1 + $0x60] sm:$0xff]
  %v52 = vld [vmem:[%s1 + $0x68] sm:$0xf]
  %v53 = vld [vmem:[%s1 + $0x6c] sm:$0xff]
  %v54 = vld [vmem:[%s1 + $0x74] sm:$0xf]
  %v55 = vld [vmem:[%s1 + $0x78] sm:$0xff]
  %v56 = vld [vmem:[%s1 + $0x80] sm:$0xf]
  %v57 = vld [vmem:[%s1 + $0x84] sm:$0xff]
  %v58 = vld [vmem:[%s1 + $0x8c] sm:$0xf]
  %v59 = vld [vmem:[%s1 + $0x90] sm:$0xff]
  %v60 = vld [vmem:[%s1 + $0x98] sm:$0xf]
  %v61 = vld [vmem:[%s1 + $0x9c] sm:$0xff]
  %v62 = vld [vmem:[%s1 + $0xa4] sm:$0xf]
  %v63 = vld [vmem:[%s1 + $0xa8] sm:$0xff]
  %v64 = vld [vmem:[%s1 + $0xb0] sm:$0xf]
  %v65 = vld [vmem:[%s1 + $0xb4] sm:$0xff]
  %v66 = vld [vmem:[%s1 + $0xbc] sm:$0xf]
  %v67 = vld [vmem:[%s1 + $0xc0] sm:$0xff]
  %v68 = vld [vmem:[%s1 + $0xc8] sm:$0xf]
  %v69 = vld [vmem:[%s1 + $0xcc] sm:$0xff]
  %v70 = vld [vmem:[%s1 + $0xd4] sm:$0xf]
  %v71 = vld [vmem:[%s1 + $0xd8] sm:$0xff]
  %v72 = vld [vmem:[%s1 + $0xe0] sm:$0xf]
  %v73 = vld [vmem:[%s1 + $0xe4] sm:$0xff]
  %v74 = vld [vmem:[%s1 + $0xec] sm:$0xf]
  %v75 = vld [vmem:[%s1 + $0xf0] sm:$0xff]
  %v76 = vld [vmem:[%s1 + $0xf8] sm:$0xf]
  %v77 = vld [vmem:[%s1 + $0xfc] sm:$0xff]
  %v78 = vld [vmem:[%s1 + $0x104] sm:$0xf]
  %v79 = vld [vmem:[%s1 + $0x108] sm:$0xff]
  %v80 = vld [vmem:[%s1 + $0x110] sm:$0xf]
  %v81 = vld [vmem:[%s1 + $0x114] sm:$0xff]
  %v82 = vld [vmem:[%s1 + $0x11c] sm:$0xf]
  %v83 = vld [vmem:[%s1 + $0x120] sm:$0xff]
  %v84 = vld [vmem:[%s1 + $0x128] sm:$0xf]
  %v85 = vld [vmem:[%s1 + $0x12c] sm:$0xff]
  %v86 = vld [vmem:[%s1 + $0x134] sm:$0xf]
  %v87 = vld [vmem:[%s1 + $0x138] sm:$0xff]
  %v88 = vld [vmem:[%s1 + $0x140] sm:$0xf]
  %v89 = vld [vmem:[%s1 + $0x144] sm:$0xff]
  %v90 = vld [vmem:[%s1 + $0x14c] sm:$0xf]
  %v91 = vld [vmem:[%s1 + $0x150] sm:$0xff]
  %v92 = vld [vmem:[%s1 + $0x158] sm:$0xf]
  %v93 = vld [vmem:[%s1 + $0x15c] sm:$0xff]
  %v94 = vld [vmem:[%s1 + $0x164] sm:$0xf]
  %v95 = vld [vmem:[%s1 + $0x168] sm:$0xff]
  %v96 = vld [vmem:[%s1 + $0x170] sm:$0xf]
  %v97 = vld [vmem:[%s1 + $0x174] sm:$0xff]
  %v98 = vld [vmem:[%s1 + $0x17c] sm:$0xf]
  %v99 = vld [vmem:[%s1 + $0x180] sm:$0xff]
  %v100 = vld [vmem:[%s1 + $0x188] sm:$0xf]
  %v101 = vld [vmem:[%s1 + $0x18c] sm:$0xff]
  %v102 = vld [vmem:[%s1 + $0x194] sm:$0xf]
  %v103 = vld [vmem:[%s1 + $0x198] sm:$0xff]
  %v104 = vld [vmem:[%s1 + $0x1a0] sm:$0xf]
  %v105 = vld [vmem:[%s1 + $0x1a4] sm:$0xff]
  %v106 = vld [vmem:[%s1 + $0x1ac] sm:$0xf]
  %v107 = vld [vmem:[%s1 + $0x1b0] sm:$0xff]
  %v108 = vld [vmem:[%s1 + $0x1b8] sm:$0xf]
  %v109 = vld [vmem:[%s1 + $0x1bc] sm:$0xff]
  %v110 = vld [vmem:[%s1 + $0x1c4] sm:$0xf]
  %v111 = vld [vmem:[%s1 + $0x1c8] sm:$0xff]
  %v112 = vld [vmem:[%s1 + $0x1d0] sm:$0xf]
  %v113 = vld [vmem:[%s1 + $0x1d4] sm:$0xff]
  %v114 = vld [vmem:[%s1 + $0x1dc] sm:$0xf]
  %v115 = vld [vmem:[%s1 + $0x1e0] sm:$0xff]
  %v116 = vld [vmem:[%s1 + $0x1e8] sm:$0xf]
  %v117 = vld [vmem:[%s1 + $0x1ec] sm:$0xff]
  %v118 = vld [vmem:[%s1 + $0x1f4] sm:$0xf]
  %v119 = vld [vmem:[%s1 + $0x1f8] sm:$0xff]
  %v120 = vld [vmem:[%s1 + $0x200] sm:$0xf]
  %v121 = vld [vmem:[%s1 + $0x204] sm:$0xff]
  %v122 = vld [vmem:[%s1 + $0x20c] sm:$0xf]
  %v123 = vld [vmem:[%s1 + $0x210] sm:$0xff]
  %v124 = vld [vmem:[%s1 + $0x218] sm:$0xf]
  %v125 = vld [vmem:[%s1 + $0x21c] sm:$0xff]
  %v126 = vld [vmem:[%s1 + $0x224] sm:$0xf]
  %v127 = vld [vmem:[%s1 + $0x228] sm:$0xff]
  %v128 = vld [vmem:[%s1 + $0x230] sm:$0xf]
  %v129 = vld [vmem:[%s1 + $0x234] sm:$0xff]
  %v130 = vld [vmem:[%s1 + $0x23c] sm:$0xf]
  %v131 = vld [vmem:[%s1 + $0x240] sm:$0xff]
  %v132 = vld [vmem:[%s1 + $0x248] sm:$0xf]
  %v133 = vld [vmem:[%s1 + $0x24c] sm:$0xff]
  %v134 = vld [vmem:[%s1 + $0x254] sm:$0xf]
  %v135 = vld [vmem:[%s1 + $0x258] sm:$0xff]
  %v136 = vld [vmem:[%s1 + $0x260] sm:$0xf]
  %v137 = vld [vmem:[%s1 + $0x264] sm:$0xff]
  %v138 = vld [vmem:[%s1 + $0x26c] sm:$0xf]
  %v139 = vld [vmem:[%s1 + $0x270] sm:$0xff]
  %v140 = vld [vmem:[%s1 + $0x278] sm:$0xf]
  %v141 = vld [vmem:[%s1 + $0x27c] sm:$0xff]
  %v142 = vld [vmem:[%s1 + $0x284] sm:$0xf]
  %v143 = vld [vmem:[%s1 + $0x288] sm:$0xff]
  %v144 = vld [vmem:[%s1 + $0x290] sm:$0xf]
  %v145 = vld [vmem:[%s1 + $0x294] sm:$0xff]
  %v146 = vld [vmem:[%s1 + $0x29c] sm:$0xf]
  %v147 = vld [vmem:[%s1 + $0x2a0] sm:$0xff]
  %v148 = vld [vmem:[%s1 + $0x2a8] sm:$0xf]
  %v149 = vld [vmem:[%s1 + $0x2ac] sm:$0xff]
  %v150 = vld [vmem:[%s1 + $0x2b4] sm:$0xf]
  %v151 = vld [vmem:[%s1 + $0x2b8] sm:$0xff]
  %v152 = vld [vmem:[%s1 + $0x2c0] sm:$0xf]
  %v153 = vld [vmem:[%s1 + $0x2c4] sm:$0xff]
  %v154 = vld [vmem:[%s1 + $0x2cc] sm:$0xf]
  %v155 = vld [vmem:[%s1 + $0x2d0] sm:$0xff]
  %v156 = vld [vmem:[%s1 + $0x2d8] sm:$0xf]
  %v157 = vld [vmem:[%s1 + $0x2dc] sm:$0xff]
  %v158 = vld [vmem:[%s1 + $0x2e4] sm:$0xf]
  %v159 = vld [vmem:[%s1 + $0x2e8] sm:$0xff]
  %v160 = vld [vmem:[%s1 + $0x2f0] sm:$0xf]
  %v161 = vld [vmem:[%s1 + $0x2f4] sm:$0xff]
  %v162 = vld [vmem:[%s1 + $0x2fc] sm:$0xf]
  %v163 = vld [vmem:[%s1 + $0x300] sm:$0xff]
  %v164 = vld [vmem:[%s1 + $0x308] sm:$0xf]
  %v165 = vld [vmem:[%s1 + $0x30c] sm:$0xff]
  %v166 = vld [vmem:[%s1 + $0x314] sm:$0xf]
  %v167 = vld [vmem:[%s1 + $0x318] sm:$0xff]
  %v168 = vld [vmem:[%s1 + $0x320] sm:$0xf]
  %v169 = vld [vmem:[%s1 + $0x324] sm:$0xff]
  %v170 = vld [vmem:[%s1 + $0x32c] sm:$0xf]
  %v171 = vld [vmem:[%s1 + $0x330] sm:$0xff]
  %v172 = vld [vmem:[%s1 + $0x338] sm:$0xf]
  %v173 = vld [vmem:[%s1 + $0x33c] sm:$0xff]
  %v174 = vld [vmem:[%s1 + $0x344] sm:$0xf]
  %v175 = vld [vmem:[%s1 + $0x348] sm:$0xff]
  %v176 = vld [vmem:[%s1 + $0x350] sm:$0xf]
  %v177 = vld [vmem:[%s1 + $0x354] sm:$0xff]
  %v178 = vld [vmem:[%s1 + $0x35c] sm:$0xf]
  %v179 = vld [vmem:[%s1 + $0x360] sm:$0xff]
  %v180 = vld [vmem:[%s1 + $0x368] sm:$0xf]
  %v181 = vld [vmem:[%s1 + $0x36c] sm:$0xff]
  %v182 = vld [vmem:[%s1 + $0x374] sm:$0xf]
  %v183 = vld [vmem:[%s1 + $0x378] sm:$0xff]
  %v184 = vld [vmem:[%s1 + $0x380] sm:$0xf]
  %v185 = vld [vmem:[%s1 + $0x384] sm:$0xff]
  %v186 = vld [vmem:[%s1 + $0x38c] sm:$0xf]
  %v187 = vld [vmem:[%s1 + $0x390] sm:$0xff]
  %v188 = vld [vmem:[%s1 + $0x398] sm:$0xf]
  %v189 = vld [vmem:[%s1 + $0x39c] sm:$0xff]
  %v190 = vld [vmem:[%s1 + $0x3a4] sm:$0xf]
  %v191 = vld [vmem:[%s1 + $0x3a8] sm:$0xff]
  %v192 = vld [vmem:[%s1 + $0x3b0] sm:$0xf]
  %v193 = vld [vmem:[%s1 + $0x3b4] sm:$0xff]
  %v194 = vld [vmem:[%s1 + $0x3bc] sm:$0xf]
  %v195 = vld [vmem:[%s1 + $0x3c0] sm:$0xff]
  %v196 = vld [vmem:[%s1 + $0x3c8] sm:$0xf]
  %v197 = vld [vmem:[%s1 + $0x3cc] sm:$0xff]
  %v198 = vld [vmem:[%s1 + $0x3d4] sm:$0xf]
  %v199 = vld [vmem:[%s1 + $0x3d8] sm:$0xff]
  %v200 = vld [vmem:[%s1 + $0x3e0] sm:$0xf]
  %v201 = vld [vmem:[%s1 + $0x3e4] sm:$0xff]
  %v202 = vld [vmem:[%s1 + $0x3ec] sm:$0xf]
  %v203 = vld [vmem:[%s1 + $0x3f0] sm:$0xff]
  %v204 = vld [vmem:[%s1 + $0x3f8] sm:$0xf]
  %v205 = vld [vmem:[%s1 + $0x3fc] sm:$0xff]
  %v206 = vld [vmem:[%s1 + $0x404] sm:$0xf]
  %v207 = vld [vmem:[%s1 + $0x408] sm:$0xff]
  %v208 = vld [vmem:[%s1 + $0x410] sm:$0xf]
  %v209 = vld [vmem:[%s1 + $0x414] sm:$0xff]
  %v210 = vld [vmem:[%s1 + $0x41c] sm:$0xf]
  %v211 = vld [vmem:[%s1 + $0x420] sm:$0xff]
  %v212 = vld [vmem:[%s1 + $0x428] sm:$0xf]
  %v213 = vld [vmem:[%s1 + $0x42c] sm:$0xff]
  %v214 = vld [vmem:[%s1 + $0x434] sm:$0xf]
  %v215 = vld [vmem:[%s1 + $0x438] sm:$0xff]
  %v216 = vld [vmem:[%s1 + $0x440] sm:$0xf]
  %v217 = vld [vmem:[%s1 + $0x444] sm:$0xff]
  %v218 = vld [vmem:[%s1 + $0x44c] sm:$0xf]
  %v219 = vld [vmem:[%s1 + $0x450] sm:$0xff]
  %v220 = vld [vmem:[%s1 + $0x458] sm:$0xf]
  %v221 = vld [vmem:[%s1 + $0x45c] sm:$0xff]
  %v222 = vld [vmem:[%s1 + $0x464] sm:$0xf]
  %v223 = vld [vmem:[%s1 + $0x468] sm:$0xff]
  %v224 = vld [vmem:[%s1 + $0x470] sm:$0xf]
  %v225 = vld [vmem:[%s1 + $0x474] sm:$0xff]
  %v226 = vld [vmem:[%s1 + $0x47c] sm:$0xf]
  %v227 = vld [vmem:[%s1 + $0x480] sm:$0xff]
  %v228 = vld [vmem:[%s1 + $0x488] sm:$0xf]
  %v229 = vld [vmem:[%s1 + $0x48c] sm:$0xff]
  %v230 = vld [vmem:[%s1 + $0x494] sm:$0xf]
  %v231 = vld [vmem:[%s1 + $0x498] sm:$0xff]
  %v232 = vld [vmem:[%s1 + $0x4a0] sm:$0xf]
  %v233 = vld [vmem:[%s1 + $0x4a4] sm:$0xff]
  %v234 = vld [vmem:[%s1 + $0x4ac] sm:$0xf]
  %v235 = vld [vmem:[%s1 + $0x4b0] sm:$0xff]
  %v236 = vld [vmem:[%s1 + $0x4b8] sm:$0xf]
  %v237 = vld [vmem:[%s1 + $0x4bc] sm:$0xff]
  %v238 = vld [vmem:[%s1 + $0x4c4] sm:$0xf]
  %v239 = vld [vmem:[%s1 + $0x4c8] sm:$0xff]
  %v240 = vld [vmem:[%s1 + $0x4d0] sm:$0xf]
  %v241 = vld [vmem:[%s1 + $0x4d4] sm:$0xff]
  %v242 = vld [vmem:[%s1 + $0x4dc] sm:$0xf]
  %v243 = vld [vmem:[%s1 + $0x4e0] sm:$0xff]
  %v244 = vld [vmem:[%s1 + $0x4e8] sm:$0xf]
  %v245 = vld [vmem:[%s1 + $0x4ec] sm:$0xff]
  %v246 = vld [vmem:[%s1 + $0x4f4] sm:$0xf]
  %v247 = vld [vmem:[%s1 + $0x4f8] sm:$0xff]
  %v248 = vld [vmem:[%s1 + $0x500] sm:$0xf]
  %v249 = vld [vmem:[%s1 + $0x504] sm:$0xff]
  %v250 = vld [vmem:[%s1 + $0x50c] sm:$0xf]
  %v251 = vld [vmem:[%s1 + $0x510] sm:$0xff]
  %v252 = vld [vmem:[%s1 + $0x518] sm:$0xf]
  %v253 = vld [vmem:[%s1 + $0x51c] sm:$0xff]
  %v254 = vld [vmem:[%s1 + $0x524] sm:$0xf]
  %v255 = vld [vmem:[%s1 + $0x528] sm:$0xff]
  %v256 = vld [vmem:[%s1 + $0x530] sm:$0xf]
  %v257 = vld [vmem:[%s1 + $0x534] sm:$0xff]
  %v258 = vld [vmem:[%s1 + $0x53c] sm:$0xf]
  %v259 = vld [vmem:[%s1 + $0x540] sm:$0xff]
  %v260 = vld [vmem:[%s1 + $0x548] sm:$0xf]
  %v261 = vld [vmem:[%s1 + $0x54c] sm:$0xff]
  %v262 = vld [vmem:[%s1 + $0x554] sm:$0xf]
  %v263 = vld [vmem:[%s1 + $0x558] sm:$0xff]
  %v264 = vld [vmem:[%s1 + $0x560] sm:$0xf]
  %v265 = vld [vmem:[%s1 + $0x564] sm:$0xff]
  %v266 = vld [vmem:[%s1 + $0x56c] sm:$0xf]
  %v267 = vld [vmem:[%s1 + $0x570] sm:$0xff]
  %v268 = vld [vmem:[%s1 + $0x578] sm:$0xf]
  %v269 = vld [vmem:[%s1 + $0x57c] sm:$0xff]
  %v270 = vld [vmem:[%s1 + $0x584] sm:$0xf]
  %v271 = vld [vmem:[%s1 + $0x588] sm:$0xff]
  %v272 = vld [vmem:[%s1 + $0x590] sm:$0xf]
  %v273 = vld [vmem:[%s1 + $0x594] sm:$0xff]
  %v274 = vld [vmem:[%s1 + $0x59c] sm:$0xf]
  %v275 = vld [vmem:[%s1 + $0x5a0] sm:$0xff]
  %v276 = vld [vmem:[%s1 + $0x5a8] sm:$0xf]
  %v277 = vld [vmem:[%s1 + $0x5ac] sm:$0xff]
  %v278 = vld [vmem:[%s1 + $0x5b4] sm:$0xf]
  %v279 = vld [vmem:[%s1 + $0x5b8] sm:$0xff]
  %v280 = vld [vmem:[%s1 + $0x5c0] sm:$0xf]
  %v281 = vld [vmem:[%s1 + $0x5c4] sm:$0xff]
  %v282 = vld [vmem:[%s1 + $0x5cc] sm:$0xf]
  %v283 = vld [vmem:[%s1 + $0x5d0] sm:$0xff]
  %v284 = vld [vmem:[%s1 + $0x5d8] sm:$0xf]
  %v285 = vld [vmem:[%s1 + $0x5dc] sm:$0xff]
  %v286 = vld [vmem:[%s1 + $0x5e4] sm:$0xf]
  %v287 = vld [vmem:[%s1 + $0x5e8] sm:$0xff]
  %v288 = vld [vmem:[%s1 + $0x5f0] sm:$0xf]
  %v289 = vld [vmem:[%s1 + $0x5f4] sm:$0xff]
  %v290 = vld [vmem:[%s1 + $0x5fc] sm:$0xf]
  %v291 = vld [vmem:[%s1 + $0x600] sm:$0xff]
  %v292 = vld [vmem:[%s1 + $0x608] sm:$0xf]
  %v293 = vld [vmem:[%s1 + $0x60c] sm:$0xff]
  %v294 = vld [vmem:[%s1 + $0x614] sm:$0xf]
  %v295 = vld [vmem:[%s1 + $0x618] sm:$0xff]
  %v296 = vld [vmem:[%s1 + $0x620] sm:$0xf]
  %v297 = vld [vmem:[%s1 + $0x624] sm:$0xff]
  %v298 = vld [vmem:[%s1 + $0x62c] sm:$0xf]
  %v299 = vld [vmem:[%s1 + $0x630] sm:$0xff]
  %v300 = vld [vmem:[%s1 + $0x638] sm:$0xf]
  %v301 = vld [vmem:[%s1 + $0x63c] sm:$0xff]
  %v302 = vld [vmem:[%s1 + $0x644] sm:$0xf]
  %v303 = vld [vmem:[%s1 + $0x648] sm:$0xff]
  %v304 = vld [vmem:[%s1 + $0x650] sm:$0xf]
  %v305 = vld [vmem:[%s1 + $0x654] sm:$0xff]
  %v306 = vld [vmem:[%s1 + $0x65c] sm:$0xf]
  %v307 = vld [vmem:[%s1 + $0x660] sm:$0xff]
  %v308 = vld [vmem:[%s1 + $0x668] sm:$0xf]
  %v309 = vld [vmem:[%s1 + $0x66c] sm:$0xff]
  %v310 = vld [vmem:[%s1 + $0x674] sm:$0xf]
  %v311 = vld [vmem:[%s1 + $0x678] sm:$0xff]
  %v312 = vld [vmem:[%s1 + $0x680] sm:$0xf]
  %v313 = vld [vmem:[%s1 + $0x684] sm:$0xff]
  %v314 = vld [vmem:[%s1 + $0x68c] sm:$0xf]
  %v315 = vld [vmem:[%s1 + $0x690] sm:$0xff]
  %v316 = vld [vmem:[%s1 + $0x698] sm:$0xf]
  %v317 = vld [vmem:[%s1 + $0x69c] sm:$0xff]
  %v318 = vld [vmem:[%s1 + $0x6a4] sm:$0xf]
  %v319 = vld [vmem:[%s1 + $0x6a8] sm:$0xff]
  %v320 = vld [vmem:[%s1 + $0x6b0] sm:$0xf]
  %v321 = vld [vmem:[%s1 + $0x6b4] sm:$0xff]
  %v322 = vld [vmem:[%s1 + $0x6bc] sm:$0xf]
  %v323 = vld [vmem:[%s1 + $0x6c0] sm:$0xff]
  %v324 = vld [vmem:[%s1 + $0x6c8] sm:$0xf]
  %v325 = vld [vmem:[%s1 + $0x6cc] sm:$0xff]
  %v326 = vld [vmem:[%s1 + $0x6d4] sm:$0xf]
  %v327 = vld [vmem:[%s1 + $0x6d8] sm:$0xff]
  %v328 = vld [vmem:[%s1 + $0x6e0] sm:$0xf]
  %v329 = vld [vmem:[%s1 + $0x6e4] sm:$0xff]
  %v330 = vld [vmem:[%s1 + $0x6ec] sm:$0xf]
  %v331 = vld [vmem:[%s1 + $0x6f0] sm:$0xff]
  %v332 = vld [vmem:[%s1 + $0x6f8] sm:$0xf]
  %v333 = vld [vmem:[%s1 + $0x6fc] sm:$0xff]
  %v334 = vld [vmem:[%s1 + $0x704] sm:$0xf]
  %v335 = vld [vmem:[%s1 + $0x708] sm:$0xff]
  %v336 = vld [vmem:[%s1 + $0x710] sm:$0xf]
  %v337 = vld [vmem:[%s1 + $0x714] sm:$0xff]
  %v338 = vld [vmem:[%s1 + $0x71c] sm:$0xf]
  %v339 = vld [vmem:[%s1 + $0x720] sm:$0xff]
  %v340 = vld [vmem:[%s1 + $0x728] sm:$0xf]
  %v341 = vld [vmem:[%s1 + $0x72c] sm:$0xff]
  %v342 = vld [vmem:[%s1 + $0x734] sm:$0xf]
  %v343 = vld [vmem:[%s1 + $0x738] sm:$0xff]
  %v344 = vld [vmem:[%s1 + $0x740] sm:$0xf]
  %v345 = vld [vmem:[%s1 + $0x744] sm:$0xff]
  %v346 = vld [vmem:[%s1 + $0x74c] sm:$0xf]
  %v347 = vld [vmem:[%s1 + $0x750] sm:$0xff]
  %v348 = vld [vmem:[%s1 + $0x758] sm:$0xf]
  %v349 = vld [vmem:[%s1 + $0x75c] sm:$0xff]
  %v350 = vld [vmem:[%s1 + $0x764] sm:$0xf]
  %v351 = vld [vmem:[%s1 + $0x768] sm:$0xff]
  %v352 = vld [vmem:[%s1 + $0x770] sm:$0xf]
  %v353 = vld [vmem:[%s1 + $0x774] sm:$0xff]
  %v354 = vld [vmem:[%s1 + $0x77c] sm:$0xf]
  %v355 = vld [vmem:[%s1 + $0x780] sm:$0xff]
  %v356 = vld [vmem:[%s1 + $0x788] sm:$0xf]
  %v357 = vld [vmem:[%s1 + $0x78c] sm:$0xff]
  %v358 = vld [vmem:[%s1 + $0x794] sm:$0xf]
  %v359 = vld [vmem:[%s1 + $0x798] sm:$0xff]
  %v360 = vld [vmem:[%s1 + $0x7a0] sm:$0xf]
  %v361 = vld [vmem:[%s1 + $0x7a4] sm:$0xff]
  %v362 = vld [vmem:[%s1 + $0x7ac] sm:$0xf]
  %v363 = vld [vmem:[%s1 + $0x7b0] sm:$0xff]
  %v364 = vld [vmem:[%s1 + $0x7b8] sm:$0xf]
  %v365 = vld [vmem:[%s1 + $0x7bc] sm:$0xff]
  %v366 = vld [vmem:[%s1 + $0x7c4] sm:$0xf]
  %v367 = vld [vmem:[%s1 + $0x7c8] sm:$0xff]
  %v368 = vld [vmem:[%s1 + $0x7d0] sm:$0xf]
  %v369 = vld [vmem:[%s1 + $0x7d4] sm:$0xff]
  %v370 = vld [vmem:[%s1 + $0x7dc] sm:$0xf]
  %v371 = vld [vmem:[%s1 + $0x7e0] sm:$0xff]
  %v372 = vld [vmem:[%s1 + $0x7e8] sm:$0xf]
  %v373 = vld [vmem:[%s1 + $0x7ec] sm:$0xff]
  %v374 = vld [vmem:[%s1 + $0x7f4] sm:$0xf]
  %v375 = vld [vmem:[%s1 + $0x7f8] sm:$0xff]
  %v376 = vld [vmem:[%s1 + $0x800] sm:$0xf]
  %v377 = vld [vmem:[%s1 + $0x804] sm:$0xff]
  %v378 = vld [vmem:[%s1 + $0x80c] sm:$0xf]
  %v379 = vld [vmem:[%s1 + $0x810] sm:$0xff]
  %v380 = vld [vmem:[%s1 + $0x818] sm:$0xf]
  %v381 = vld [vmem:[%s1 + $0x81c] sm:$0xff]
  %v382 = vld [vmem:[%s1 + $0x824] sm:$0xf]
  %v383 = vld [vmem:[%s1 + $0x828] sm:$0xff]
  %v384 = vld [vmem:[%s1 + $0x830] sm:$0xf]
  %v385 = vld [vmem:[%s1 + $0x834] sm:$0xff]
  %v386 = vld [vmem:[%s1 + $0x83c] sm:$0xf]
  %v387 = vld [vmem:[%s1 + $0x840] sm:$0xff]
  %v388 = vld [vmem:[%s1 + $0x848] sm:$0xf]
  %v389 = vld [vmem:[%s1 + $0x84c] sm:$0xff]
  %v390 = vld [vmem:[%s1 + $0x854] sm:$0xf]
  %v391 = vld [vmem:[%s1 + $0x858] sm:$0xff]
  %v392 = vld [vmem:[%s1 + $0x860] sm:$0xf]
  %v393 = vld [vmem:[%s1 + $0x864] sm:$0xff]
  %v394 = vld [vmem:[%s1 + $0x86c] sm:$0xf]
  %v395 = vld [vmem:[%s1 + $0x870] sm:$0xff]
  %v396 = vld [vmem:[%s1 + $0x878] sm:$0xf]
  %v397 = vld [vmem:[%s1 + $0x87c] sm:$0xff]
  %v398 = vld [vmem:[%s1 + $0x884] sm:$0xf]
  %v399 = vld [vmem:[%s1 + $0x888] sm:$0xff]
  %v400 = vld [vmem:[%s1 + $0x890] sm:$0xf]
  %v401 = vld [vmem:[%s1 + $0x894] sm:$0xff]
  %v402 = vld [vmem:[%s1 + $0x89c] sm:$0xf]
  %v403 = vld [vmem:[%s1 + $0x8a0] sm:$0xff]
  %v404 = vld [vmem:[%s1 + $0x8a8] sm:$0xf]
  %v405 = vld [vmem:[%s1 + $0x8ac] sm:$0xff]
  %v406 = vld [vmem:[%s1 + $0x8b4] sm:$0xf]
  %v407 = vld [vmem:[%s1 + $0x8b8] sm:$0xff]
  %v408 = vld [vmem:[%s1 + $0x8c0] sm:$0xf]
  %v409 = vld [vmem:[%s1 + $0x8c4] sm:$0xff]
  %v410 = vld [vmem:[%s1 + $0x8cc] sm:$0xf]
  %v411 = vld [vmem:[%s1 + $0x8d0] sm:$0xff]
  %v412 = vld [vmem:[%s1 + $0x8d8] sm:$0xf]
  %v413 = vld [vmem:[%s1 + $0x8dc] sm:$0xff]
  %v414 = vld [vmem:[%s1 + $0x8e4] sm:$0xf]
  %v415 = vld [vmem:[%s1 + $0x8e8] sm:$0xff]
  %v416 = vld [vmem:[%s1 + $0x8f0] sm:$0xf]
  %v417 = vld [vmem:[%s1 + $0x8f4] sm:$0xff]
  %v418 = vld [vmem:[%s1 + $0x8fc] sm:$0xf]
  %v419 = vld [vmem:[%s1 + $0x900] sm:$0xff]
  %v420 = vld [vmem:[%s1 + $0x908] sm:$0xf]
  %v421 = vld [vmem:[%s1 + $0x90c] sm:$0xff]
  %v422 = vld [vmem:[%s1 + $0x914] sm:$0xf]
  %v423 = vld [vmem:[%s1 + $0x918] sm:$0xff]
  %v424 = vld [vmem:[%s1 + $0x920] sm:$0xf]
  %v425 = vld [vmem:[%s1 + $0x924] sm:$0xff]
  %v426 = vld [vmem:[%s1 + $0x92c] sm:$0xf]
  %v427 = vld [vmem:[%s1 + $0x930] sm:$0xff]
  %v428 = vld [vmem:[%s1 + $0x938] sm:$0xf]
  %v429 = vld [vmem:[%s1 + $0x93c] sm:$0xff]
  %v430 = vld [vmem:[%s1 + $0x944] sm:$0xf]
  %v431 = vld [vmem:[%s1 + $0x948] sm:$0xff]
  %v432 = vld [vmem:[%s1 + $0x950] sm:$0xf]
  %v433 = vld [vmem:[%s1 + $0x954] sm:$0xff]
  %v434 = vld [vmem:[%s1 + $0x95c] sm:$0xf]
  %v435 = vld [vmem:[%s1 + $0x960] sm:$0xff]
  %v436 = vld [vmem:[%s1 + $0x968] sm:$0xf]
  %v437 = vld [vmem:[%s1 + $0x96c] sm:$0xff]
  %v438 = vld [vmem:[%s1 + $0x974] sm:$0xf]
  %v439 = vld [vmem:[%s1 + $0x978] sm:$0xff]
  %v440 = vld [vmem:[%s1 + $0x980] sm:$0xf]
  %v441 = vld [vmem:[%s1 + $0x984] sm:$0xff]
  %v442 = vld [vmem:[%s1 + $0x98c] sm:$0xf]
  %v443 = vld [vmem:[%s1 + $0x990] sm:$0xff]
  %v444 = vld [vmem:[%s1 + $0x998] sm:$0xf]
  %v445 = vld [vmem:[%s1 + $0x99c] sm:$0xff]
  %v446 = vld [vmem:[%s1 + $0x9a4] sm:$0xf]
  %v447 = vld [vmem:[%s1 + $0x9a8] sm:$0xff]
  %v448 = vld [vmem:[%s1 + $0x9b0] sm:$0xf]
  %v449 = vld [vmem:[%s1 + $0x9b4] sm:$0xff]
  %v450 = vld [vmem:[%s1 + $0x9bc] sm:$0xf]
  %v451 = vld [vmem:[%s1 + $0x9c0] sm:$0xff]
  %v452 = vld [vmem:[%s1 + $0x9c8] sm:$0xf]
  %v453 = vld [vmem:[%s1 + $0x9cc] sm:$0xff]
  %v454 = vld [vmem:[%s1 + $0x9d4] sm:$0xf]
  %v455 = vld [vmem:[%s1 + $0x9d8] sm:$0xff]
  %v456 = vld [vmem:[%s1 + $0x9e0] sm:$0xf]
  %v457 = vld [vmem:[%s1 + $0x9e4] sm:$0xff]
  %v458 = vld [vmem:[%s1 + $0x9ec] sm:$0xf]
  %v459 = vld [vmem:[%s1 + $0x9f0] sm:$0xff]
  %v460 = vld [vmem:[%s1 + $0x9f8] sm:$0xf]
  %v461 = vld [vmem:[%s1 + $0x9fc] sm:$0xff]
  %v462 = vld [vmem:[%s1 + $0xa04] sm:$0xf]
  %v463 = vld [vmem:[%s1 + $0xa08] sm:$0xff]
  %v464 = vld [vmem:[%s1 + $0xa10] sm:$0xf]
  %v465 = vld [vmem:[%s1 + $0xa14] sm:$0xff]
  %v466 = vld [vmem:[%s1 + $0xa1c] sm:$0xf]
  %v467 = vld [vmem:[%s2] sm:$0x7]
  %v469 = vlaneseq
  %v470 = vshrl.u32 %v469, 7
  %v471 = vsub.s32 0, %v470
  %v472 = vrot.slane %v467, %v471
  %v473 = vlaneseq
  %v474 = vshrl.u32 %v473, 7
  %v475 = vsub.s32 1, %v474
  %v476 = vrot.slane %v467, %v475
  %v477 = vlaneseq
  %v478 = vshrl.u32 %v477, 7
  %v479 = vsub.s32 2, %v478
  %v480 = vrot.slane %v467, %v479
  %v498 = vunpack.c.l.b16 %v21
  %v499 = vunpack.c.h.b16 %v21
  %v500 = vunpack.c.l.b16 %v22
  %v501 = vunpack.c.h.b16 %v22
  %v502 = vunpack.c.l.b16 %v23
  %v503 = vunpack.c.h.b16 %v23
  %v504 = vunpack.c.l.b16 %v24
  %v505 = vunpack.c.h.b16 %v24
  %v506 = vunpack.c.l.b16 %v25
  %v507 = vunpack.c.h.b16 %v25
  %v508 = vunpack.c.l.b16 %v26
  %v509 = vunpack.c.h.b16 %v26
  %v510 = vunpack.c.l.b16 %v27
  %v511 = vunpack.c.h.b16 %v27
  %v512 = vunpack.c.l.b16 %v28
  %v513 = vunpack.c.h.b16 %v28
  %v514 = vunpack.c.l.b16 %v29
  %v515 = vunpack.c.h.b16 %v29
  %v516 = vunpack.c.l.b16 %v30
  %v517 = vunpack.c.h.b16 %v30
  %v518 = vunpack.c.l.b16 %v31
  %v519 = vunpack.c.h.b16 %v31
  %v520 = vunpack.c.l.b16 %v32
  %v521 = vunpack.c.h.b16 %v32
  %v522 = vunpack.c.l.b16 %v33
  %v523 = vunpack.c.h.b16 %v33
  %v524 = vunpack.c.l.b16 %v34
  %v525 = vunpack.c.h.b16 %v34
  %v526 = vpack.c.b16 %v512, %v498
  %v527 = vpack.c.b16 %v513, %v499
  %v528 = vpack.c.b16 %v514, %v500
  %v529 = vpack.c.b16 %v515, %v501
  %v530 = vpack.c.b16 %v516, %v502
  %v531 = vpack.c.b16 %v517, %v503
  %v532 = vpack.c.b16 %v518, %v504
  %v533 = vpack.c.b16 %v519, %v505
  %v534 = vpack.c.b16 %v520, %v506
  %v535 = vpack.c.b16 %v521, %v507
  %v536 = vpack.c.b16 %v522, %v508
  %v537 = vpack.c.b16 %v523, %v509
  %v538 = vpack.c.b16 %v524, %v510
  %v539 = vpack.c.b16 %v525, %v511
  %v985 = vunpack.c.l.b16 %v35
  %v986 = vunpack.c.h.b16 %v35
  %v987 = vunpack.c.l.b16 %v36
  %v988 = vunpack.c.l.b16 %v37
  %v989 = vunpack.c.h.b16 %v37
  %v990 = vunpack.c.l.b16 %v38
  %v991 = vunpack.c.l.b16 %v39
  %v992 = vunpack.c.h.b16 %v39
  %v993 = vunpack.c.l.b16 %v40
  %v994 = vunpack.c.l.b16 %v41
  %v995 = vunpack.c.h.b16 %v41
  %v996 = vunpack.c.l.b16 %v42
  %v997 = vunpack.c.l.b16 %v43
  %v998 = vunpack.c.h.b16 %v43
  %v999 = vunpack.c.l.b16 %v44
  %v1000 = vunpack.c.l.b16 %v45
  %v1001 = vunpack.c.h.b16 %v45
  %v1002 = vunpack.c.l.b16 %v46
  %v1003 = vunpack.c.l.b16 %v47
  %v1004 = vunpack.c.h.b16 %v47
  %v1005 = vunpack.c.l.b16 %v48
  %v1006 = vunpack.c.l.b16 %v49
  %v1007 = vunpack.c.h.b16 %v49
  %v1008 = vunpack.c.l.b16 %v50
  %v1009 = vunpack.c.l.b16 %v51
  %v1010 = vunpack.c.h.b16 %v51
  %v1011 = vunpack.c.l.b16 %v52
  %v1012 = vunpack.c.l.b16 %v53
  %v1013 = vunpack.c.h.b16 %v53
  %v1014 = vunpack.c.l.b16 %v54
  %v1015 = vunpack.c.l.b16 %v55
  %v1016 = vunpack.c.h.b16 %v55
  %v1017 = vunpack.c.l.b16 %v56
  %v1018 = vunpack.c.l.b16 %v57
  %v1019 = vunpack.c.h.b16 %v57
  %v1020 = vunpack.c.l.b16 %v58
  %v1021 = vunpack.c.l.b16 %v59
  %v1022 = vunpack.c.h.b16 %v59
  %v1023 = vunpack.c.l.b16 %v60
  %v1024 = vunpack.c.l.b16 %v61
  %v1025 = vunpack.c.h.b16 %v61
  %v1026 = vunpack.c.l.b16 %v62
  %v1027 = vunpack.c.l.b16 %v63
  %v1028 = vunpack.c.h.b16 %v63
  %v1029 = vunpack.c.l.b16 %v64
  %v1030 = vunpack.c.l.b16 %v65
  %v1031 = vunpack.c.h.b16 %v65
  %v1032 = vunpack.c.l.b16 %v66
  %v1033 = vunpack.c.l.b16 %v67
  %v1034 = vunpack.c.h.b16 %v67
  %v1035 = vunpack.c.l.b16 %v68
  %v1036 = vunpack.c.l.b16 %v69
  %v1037 = vunpack.c.h.b16 %v69
  %v1038 = vunpack.c.l.b16 %v70
  %v1039 = vunpack.c.l.b16 %v71
  %v1040 = vunpack.c.h.b16 %v71
  %v1041 = vunpack.c.l.b16 %v72
  %v1042 = vunpack.c.l.b16 %v73
  %v1043 = vunpack.c.h.b16 %v73
  %v1044 = vunpack.c.l.b16 %v74
  %v1045 = vunpack.c.l.b16 %v75
  %v1046 = vunpack.c.h.b16 %v75
  %v1047 = vunpack.c.l.b16 %v76
  %v1048 = vunpack.c.l.b16 %v77
  %v1049 = vunpack.c.h.b16 %v77
  %v1050 = vunpack.c.l.b16 %v78
  %v1051 = vunpack.c.l.b16 %v79
  %v1052 = vunpack.c.h.b16 %v79
  %v1053 = vunpack.c.l.b16 %v80
  %v1054 = vunpack.c.l.b16 %v81
  %v1055 = vunpack.c.h.b16 %v81
  %v1056 = vunpack.c.l.b16 %v82
  %v1057 = vunpack.c.l.b16 %v83
  %v1058 = vunpack.c.h.b16 %v83
  %v1059 = vunpack.c.l.b16 %v84
  %v1060 = vunpack.c.l.b16 %v85
  %v1061 = vunpack.c.h.b16 %v85
  %v1062 = vunpack.c.l.b16 %v86
  %v1063 = vunpack.c.l.b16 %v87
  %v1064 = vunpack.c.h.b16 %v87
  %v1065 = vunpack.c.l.b16 %v88
  %v1066 = vunpack.c.l.b16 %v89
  %v1067 = vunpack.c.h.b16 %v89
  %v1068 = vunpack.c.l.b16 %v90
  %v1069 = vunpack.c.l.b16 %v91
  %v1070 = vunpack.c.h.b16 %v91
  %v1071 = vunpack.c.l.b16 %v92
  %v1072 = vunpack.c.l.b16 %v93
  %v1073 = vunpack.c.h.b16 %v93
  %v1074 = vunpack.c.l.b16 %v94
  %v1075 = vunpack.c.l.b16 %v95
  %v1076 = vunpack.c.h.b16 %v95
  %v1077 = vunpack.c.l.b16 %v96
  %v1078 = vunpack.c.l.b16 %v97
  %v1079 = vunpack.c.h.b16 %v97
  %v1080 = vunpack.c.l.b16 %v98
  %v1081 = vunpack.c.l.b16 %v99
  %v1082 = vunpack.c.h.b16 %v99
  %v1083 = vunpack.c.l.b16 %v100
  %v1084 = vunpack.c.l.b16 %v101
  %v1085 = vunpack.c.h.b16 %v101
  %v1086 = vunpack.c.l.b16 %v102
  %v1087 = vunpack.c.l.b16 %v103
  %v1088 = vunpack.c.h.b16 %v103
  %v1089 = vunpack.c.l.b16 %v104
  %v1090 = vunpack.c.l.b16 %v105
  %v1091 = vunpack.c.h.b16 %v105
  %v1092 = vunpack.c.l.b16 %v106
  %v1093 = vunpack.c.l.b16 %v107
  %v1094 = vunpack.c.h.b16 %v107
  %v1095 = vunpack.c.l.b16 %v108
  %v1096 = vunpack.c.l.b16 %v109
  %v1097 = vunpack.c.h.b16 %v109
  %v1098 = vunpack.c.l.b16 %v110
  %v1099 = vunpack.c.l.b16 %v111
  %v1100 = vunpack.c.h.b16 %v111
  %v1101 = vunpack.c.l.b16 %v112
  %v1102 = vunpack.c.l.b16 %v113
  %v1103 = vunpack.c.h.b16 %v113
  %v1104 = vunpack.c.l.b16 %v114
  %v1105 = vunpack.c.l.b16 %v115
  %v1106 = vunpack.c.h.b16 %v115
  %v1107 = vunpack.c.l.b16 %v116
  %v1108 = vunpack.c.l.b16 %v117
  %v1109 = vunpack.c.h.b16 %v117
  %v1110 = vunpack.c.l.b16 %v118
  %v1111 = vunpack.c.l.b16 %v119
  %v1112 = vunpack.c.h.b16 %v119
  %v1113 = vunpack.c.l.b16 %v120
  %v1114 = vunpack.c.l.b16 %v121
  %v1115 = vunpack.c.h.b16 %v121
  %v1116 = vunpack.c.l.b16 %v122
  %v1117 = vunpack.c.l.b16 %v123
  %v1118 = vunpack.c.h.b16 %v123
  %v1119 = vunpack.c.l.b16 %v124
  %v1120 = vunpack.c.l.b16 %v125
  %v1121 = vunpack.c.h.b16 %v125
  %v1122 = vunpack.c.l.b16 %v126
  %v1123 = vunpack.c.l.b16 %v127
  %v1124 = vunpack.c.h.b16 %v127
  %v1125 = vunpack.c.l.b16 %v128
  %v1126 = vunpack.c.l.b16 %v129
  %v1127 = vunpack.c.h.b16 %v129
  %v1128 = vunpack.c.l.b16 %v130
  %v1129 = vunpack.c.l.b16 %v131
  %v1130 = vunpack.c.h.b16 %v131
  %v1131 = vunpack.c.l.b16 %v132
  %v1132 = vunpack.c.l.b16 %v133
  %v1133 = vunpack.c.h.b16 %v133
  %v1134 = vunpack.c.l.b16 %v134
  %v1135 = vunpack.c.l.b16 %v135
  %v1136 = vunpack.c.h.b16 %v135
  %v1137 = vunpack.c.l.b16 %v136
  %v1138 = vunpack.c.l.b16 %v137
  %v1139 = vunpack.c.h.b16 %v137
  %v1140 = vunpack.c.l.b16 %v138
  %v1141 = vunpack.c.l.b16 %v139
  %v1142 = vunpack.c.h.b16 %v139
  %v1143 = vunpack.c.l.b16 %v140
  %v1144 = vunpack.c.l.b16 %v141
  %v1145 = vunpack.c.h.b16 %v141
  %v1146 = vunpack.c.l.b16 %v142
  %v1147 = vunpack.c.l.b16 %v143
  %v1148 = vunpack.c.h.b16 %v143
  %v1149 = vunpack.c.l.b16 %v144
  %v1150 = vunpack.c.l.b16 %v145
  %v1151 = vunpack.c.h.b16 %v145
  %v1152 = vunpack.c.l.b16 %v146
  %v1153 = vunpack.c.l.b16 %v147
  %v1154 = vunpack.c.h.b16 %v147
  %v1155 = vunpack.c.l.b16 %v148
  %v1156 = vunpack.c.l.b16 %v149
  %v1157 = vunpack.c.h.b16 %v149
  %v1158 = vunpack.c.l.b16 %v150
  %v1159 = vunpack.c.l.b16 %v151
  %v1160 = vunpack.c.h.b16 %v151
  %v1161 = vunpack.c.l.b16 %v152
  %v1162 = vunpack.c.l.b16 %v153
  %v1163 = vunpack.c.h.b16 %v153
  %v1164 = vunpack.c.l.b16 %v154
  %v1165 = vunpack.c.l.b16 %v155
  %v1166 = vunpack.c.h.b16 %v155
  %v1167 = vunpack.c.l.b16 %v156
  %v1168 = vunpack.c.l.b16 %v157
  %v1169 = vunpack.c.h.b16 %v157
  %v1170 = vunpack.c.l.b16 %v158
  %v1171 = vunpack.c.l.b16 %v159
  %v1172 = vunpack.c.h.b16 %v159
  %v1173 = vunpack.c.l.b16 %v160
  %v1174 = vunpack.c.l.b16 %v161
  %v1175 = vunpack.c.h.b16 %v161
  %v1176 = vunpack.c.l.b16 %v162
  %v1177 = vunpack.c.l.b16 %v163
  %v1178 = vunpack.c.h.b16 %v163
  %v1179 = vunpack.c.l.b16 %v164
  %v1180 = vunpack.c.l.b16 %v165
  %v1181 = vunpack.c.h.b16 %v165
  %v1182 = vunpack.c.l.b16 %v166
  %v1183 = vunpack.c.l.b16 %v167
  %v1184 = vunpack.c.h.b16 %v167
  %v1185 = vunpack.c.l.b16 %v168
  %v1186 = vunpack.c.l.b16 %v169
  %v1187 = vunpack.c.h.b16 %v169
  %v1188 = vunpack.c.l.b16 %v170
  %v1189 = vunpack.c.l.b16 %v171
  %v1190 = vunpack.c.h.b16 %v171
  %v1191 = vunpack.c.l.b16 %v172
  %v1192 = vunpack.c.l.b16 %v173
  %v1193 = vunpack.c.h.b16 %v173
  %v1194 = vunpack.c.l.b16 %v174
  %v1195 = vunpack.c.l.b16 %v175
  %v1196 = vunpack.c.h.b16 %v175
  %v1197 = vunpack.c.l.b16 %v176
  %v1198 = vunpack.c.l.b16 %v177
  %v1199 = vunpack.c.h.b16 %v177
  %v1200 = vunpack.c.l.b16 %v178
  %v1201 = vunpack.c.l.b16 %v179
  %v1202 = vunpack.c.h.b16 %v179
  %v1203 = vunpack.c.l.b16 %v180
  %v1204 = vunpack.c.l.b16 %v181
  %v1205 = vunpack.c.h.b16 %v181
  %v1206 = vunpack.c.l.b16 %v182
  %v1207 = vunpack.c.l.b16 %v183
  %v1208 = vunpack.c.h.b16 %v183
  %v1209 = vunpack.c.l.b16 %v184
  %v1210 = vunpack.c.l.b16 %v185
  %v1211 = vunpack.c.h.b16 %v185
  %v1212 = vunpack.c.l.b16 %v186
  %v1213 = vunpack.c.l.b16 %v187
  %v1214 = vunpack.c.h.b16 %v187
  %v1215 = vunpack.c.l.b16 %v188
  %v1216 = vunpack.c.l.b16 %v189
  %v1217 = vunpack.c.h.b16 %v189
  %v1218 = vunpack.c.l.b16 %v190
  %v1219 = vunpack.c.l.b16 %v191
  %v1220 = vunpack.c.h.b16 %v191
  %v1221 = vunpack.c.l.b16 %v192
  %v1222 = vunpack.c.l.b16 %v193
  %v1223 = vunpack.c.h.b16 %v193
  %v1224 = vunpack.c.l.b16 %v194
  %v1225 = vunpack.c.l.b16 %v195
  %v1226 = vunpack.c.h.b16 %v195
  %v1227 = vunpack.c.l.b16 %v196
  %v1228 = vunpack.c.l.b16 %v197
  %v1229 = vunpack.c.h.b16 %v197
  %v1230 = vunpack.c.l.b16 %v198
  %v1231 = vunpack.c.l.b16 %v199
  %v1232 = vunpack.c.h.b16 %v199
  %v1233 = vunpack.c.l.b16 %v200
  %v1234 = vunpack.c.l.b16 %v201
  %v1235 = vunpack.c.h.b16 %v201
  %v1236 = vunpack.c.l.b16 %v202
  %v1237 = vunpack.c.l.b16 %v203
  %v1238 = vunpack.c.h.b16 %v203
  %v1239 = vunpack.c.l.b16 %v204
  %v1240 = vunpack.c.l.b16 %v205
  %v1241 = vunpack.c.h.b16 %v205
  %v1242 = vunpack.c.l.b16 %v206
  %v1243 = vunpack.c.l.b16 %v207
  %v1244 = vunpack.c.h.b16 %v207
  %v1245 = vunpack.c.l.b16 %v208
  %v1246 = vunpack.c.l.b16 %v209
  %v1247 = vunpack.c.h.b16 %v209
  %v1248 = vunpack.c.l.b16 %v210
  %v1249 = vunpack.c.l.b16 %v211
  %v1250 = vunpack.c.h.b16 %v211
  %v1251 = vunpack.c.l.b16 %v212
  %v1252 = vunpack.c.l.b16 %v213
  %v1253 = vunpack.c.h.b16 %v213
  %v1254 = vunpack.c.l.b16 %v214
  %v1255 = vunpack.c.l.b16 %v215
  %v1256 = vunpack.c.h.b16 %v215
  %v1257 = vunpack.c.l.b16 %v216
  %v1258 = vunpack.c.l.b16 %v217
  %v1259 = vunpack.c.h.b16 %v217
  %v1260 = vunpack.c.l.b16 %v218
  %v1261 = vunpack.c.l.b16 %v219
  %v1262 = vunpack.c.h.b16 %v219
  %v1263 = vunpack.c.l.b16 %v220
  %v1264 = vunpack.c.l.b16 %v221
  %v1265 = vunpack.c.h.b16 %v221
  %v1266 = vunpack.c.l.b16 %v222
  %v1267 = vunpack.c.l.b16 %v223
  %v1268 = vunpack.c.h.b16 %v223
  %v1269 = vunpack.c.l.b16 %v224
  %v1270 = vunpack.c.l.b16 %v225
  %v1271 = vunpack.c.h.b16 %v225
  %v1272 = vunpack.c.l.b16 %v226
  %v1273 = vunpack.c.l.b16 %v227
  %v1274 = vunpack.c.h.b16 %v227
  %v1275 = vunpack.c.l.b16 %v228
  %v1276 = vunpack.c.l.b16 %v229
  %v1277 = vunpack.c.h.b16 %v229
  %v1278 = vunpack.c.l.b16 %v230
  %v1279 = vunpack.c.l.b16 %v231
  %v1280 = vunpack.c.h.b16 %v231
  %v1281 = vunpack.c.l.b16 %v232
  %v1282 = vunpack.c.l.b16 %v233
  %v1283 = vunpack.c.h.b16 %v233
  %v1284 = vunpack.c.l.b16 %v234
  %v1285 = vunpack.c.l.b16 %v235
  %v1286 = vunpack.c.h.b16 %v235
  %v1287 = vunpack.c.l.b16 %v236
  %v1288 = vunpack.c.l.b16 %v237
  %v1289 = vunpack.c.h.b16 %v237
  %v1290 = vunpack.c.l.b16 %v238
  %v1291 = vunpack.c.l.b16 %v239
  %v1292 = vunpack.c.h.b16 %v239
  %v1293 = vunpack.c.l.b16 %v240
  %v1294 = vunpack.c.l.b16 %v241
  %v1295 = vunpack.c.h.b16 %v241
  %v1296 = vunpack.c.l.b16 %v242
  %v1297 = vunpack.c.l.b16 %v243
  %v1298 = vunpack.c.h.b16 %v243
  %v1299 = vunpack.c.l.b16 %v244
  %v1300 = vunpack.c.l.b16 %v245
  %v1301 = vunpack.c.h.b16 %v245
  %v1302 = vunpack.c.l.b16 %v246
  %v1303 = vunpack.c.l.b16 %v247
  %v1304 = vunpack.c.h.b16 %v247
  %v1305 = vunpack.c.l.b16 %v248
  %v1306 = vunpack.c.l.b16 %v249
  %v1307 = vunpack.c.h.b16 %v249
  %v1308 = vunpack.c.l.b16 %v250
  %v1309 = vunpack.c.l.b16 %v251
  %v1310 = vunpack.c.h.b16 %v251
  %v1311 = vunpack.c.l.b16 %v252
  %v1312 = vunpack.c.l.b16 %v253
  %v1313 = vunpack.c.h.b16 %v253
  %v1314 = vunpack.c.l.b16 %v254
  %v1315 = vunpack.c.l.b16 %v255
  %v1316 = vunpack.c.h.b16 %v255
  %v1317 = vunpack.c.l.b16 %v256
  %v1318 = vunpack.c.l.b16 %v257
  %v1319 = vunpack.c.h.b16 %v257
  %v1320 = vunpack.c.l.b16 %v258
  %v1321 = vunpack.c.l.b16 %v259
  %v1322 = vunpack.c.h.b16 %v259
  %v1323 = vunpack.c.l.b16 %v260
  %v1324 = vunpack.c.l.b16 %v261
  %v1325 = vunpack.c.h.b16 %v261
  %v1326 = vunpack.c.l.b16 %v262
  %v1327 = vunpack.c.l.b16 %v263
  %v1328 = vunpack.c.h.b16 %v263
  %v1329 = vunpack.c.l.b16 %v264
  %v1330 = vunpack.c.l.b16 %v265
  %v1331 = vunpack.c.h.b16 %v265
  %v1332 = vunpack.c.l.b16 %v266
  %v1333 = vunpack.c.l.b16 %v267
  %v1334 = vunpack.c.h.b16 %v267
  %v1335 = vunpack.c.l.b16 %v268
  %v1336 = vunpack.c.l.b16 %v269
  %v1337 = vunpack.c.h.b16 %v269
  %v1338 = vunpack.c.l.b16 %v270
  %v1339 = vunpack.c.l.b16 %v271
  %v1340 = vunpack.c.h.b16 %v271
  %v1341 = vunpack.c.l.b16 %v272
  %v1342 = vunpack.c.l.b16 %v273
  %v1343 = vunpack.c.h.b16 %v273
  %v1344 = vunpack.c.l.b16 %v274
  %v1345 = vunpack.c.l.b16 %v275
  %v1346 = vunpack.c.h.b16 %v275
  %v1347 = vunpack.c.l.b16 %v276
  %v1348 = vunpack.c.l.b16 %v277
  %v1349 = vunpack.c.h.b16 %v277
  %v1350 = vunpack.c.l.b16 %v278
  %v1351 = vunpack.c.l.b16 %v279
  %v1352 = vunpack.c.h.b16 %v279
  %v1353 = vunpack.c.l.b16 %v280
  %v1354 = vunpack.c.l.b16 %v281
  %v1355 = vunpack.c.h.b16 %v281
  %v1356 = vunpack.c.l.b16 %v282
  %v1357 = vunpack.c.l.b16 %v283
  %v1358 = vunpack.c.h.b16 %v283
  %v1359 = vunpack.c.l.b16 %v284
  %v1360 = vunpack.c.l.b16 %v285
  %v1361 = vunpack.c.h.b16 %v285
  %v1362 = vunpack.c.l.b16 %v286
  %v1363 = vunpack.c.l.b16 %v287
  %v1364 = vunpack.c.h.b16 %v287
  %v1365 = vunpack.c.l.b16 %v288
  %v1366 = vunpack.c.l.b16 %v289
  %v1367 = vunpack.c.h.b16 %v289
  %v1368 = vunpack.c.l.b16 %v290
  %v1369 = vunpack.c.l.b16 %v291
  %v1370 = vunpack.c.h.b16 %v291
  %v1371 = vunpack.c.l.b16 %v292
  %v1372 = vunpack.c.l.b16 %v293
  %v1373 = vunpack.c.h.b16 %v293
  %v1374 = vunpack.c.l.b16 %v294
  %v1375 = vunpack.c.l.b16 %v295
  %v1376 = vunpack.c.h.b16 %v295
  %v1377 = vunpack.c.l.b16 %v296
  %v1378 = vunpack.c.l.b16 %v297
  %v1379 = vunpack.c.h.b16 %v297
  %v1380 = vunpack.c.l.b16 %v298
  %v1381 = vunpack.c.l.b16 %v299
  %v1382 = vunpack.c.h.b16 %v299
  %v1383 = vunpack.c.l.b16 %v300
  %v1384 = vunpack.c.l.b16 %v301
  %v1385 = vunpack.c.h.b16 %v301
  %v1386 = vunpack.c.l.b16 %v302
  %v1387 = vunpack.c.l.b16 %v303
  %v1388 = vunpack.c.h.b16 %v303
  %v1389 = vunpack.c.l.b16 %v304
  %v1390 = vunpack.c.l.b16 %v305
  %v1391 = vunpack.c.h.b16 %v305
  %v1392 = vunpack.c.l.b16 %v306
  %v1393 = vunpack.c.l.b16 %v307
  %v1394 = vunpack.c.h.b16 %v307
  %v1395 = vunpack.c.l.b16 %v308
  %v1396 = vunpack.c.l.b16 %v309
  %v1397 = vunpack.c.h.b16 %v309
  %v1398 = vunpack.c.l.b16 %v310
  %v1399 = vunpack.c.l.b16 %v311
  %v1400 = vunpack.c.h.b16 %v311
  %v1401 = vunpack.c.l.b16 %v312
  %v1402 = vunpack.c.l.b16 %v313
  %v1403 = vunpack.c.h.b16 %v313
  %v1404 = vunpack.c.l.b16 %v314
  %v1405 = vunpack.c.l.b16 %v315
  %v1406 = vunpack.c.h.b16 %v315
  %v1407 = vunpack.c.l.b16 %v316
  %v1408 = vunpack.c.l.b16 %v317
  %v1409 = vunpack.c.h.b16 %v317
  %v1410 = vunpack.c.l.b16 %v318
  %v1411 = vunpack.c.l.b16 %v319
  %v1412 = vunpack.c.h.b16 %v319
  %v1413 = vunpack.c.l.b16 %v320
  %v1414 = vunpack.c.l.b16 %v321
  %v1415 = vunpack.c.h.b16 %v321
  %v1416 = vunpack.c.l.b16 %v322
  %v1417 = vunpack.c.l.b16 %v323
  %v1418 = vunpack.c.h.b16 %v323
  %v1419 = vunpack.c.l.b16 %v324
  %v1420 = vunpack.c.l.b16 %v325
  %v1421 = vunpack.c.h.b16 %v325
  %v1422 = vunpack.c.l.b16 %v326
  %v1423 = vunpack.c.l.b16 %v327
  %v1424 = vunpack.c.h.b16 %v327
  %v1425 = vunpack.c.l.b16 %v328
  %v1426 = vunpack.c.l.b16 %v329
  %v1427 = vunpack.c.h.b16 %v329
  %v1428 = vunpack.c.l.b16 %v330
  %v1429 = vunpack.c.l.b16 %v331
  %v1430 = vunpack.c.h.b16 %v331
  %v1431 = vunpack.c.l.b16 %v332
  %v1432 = vunpack.c.l.b16 %v333
  %v1433 = vunpack.c.h.b16 %v333
  %v1434 = vunpack.c.l.b16 %v334
  %v1435 = vunpack.c.l.b16 %v335
  %v1436 = vunpack.c.h.b16 %v335
  %v1437 = vunpack.c.l.b16 %v336
  %v1438 = vunpack.c.l.b16 %v337
  %v1439 = vunpack.c.h.b16 %v337
  %v1440 = vunpack.c.l.b16 %v338
  %v1441 = vunpack.c.l.b16 %v339
  %v1442 = vunpack.c.h.b16 %v339
  %v1443 = vunpack.c.l.b16 %v340
  %v1444 = vunpack.c.l.b16 %v341
  %v1445 = vunpack.c.h.b16 %v341
  %v1446 = vunpack.c.l.b16 %v342
  %v1447 = vunpack.c.l.b16 %v343
  %v1448 = vunpack.c.h.b16 %v343
  %v1449 = vunpack.c.l.b16 %v344
  %v1450 = vunpack.c.l.b16 %v345
  %v1451 = vunpack.c.h.b16 %v345
  %v1452 = vunpack.c.l.b16 %v346
  %v1453 = vunpack.c.l.b16 %v347
  %v1454 = vunpack.c.h.b16 %v347
  %v1455 = vunpack.c.l.b16 %v348
  %v1456 = vunpack.c.l.b16 %v349
  %v1457 = vunpack.c.h.b16 %v349
  %v1458 = vunpack.c.l.b16 %v350
  %v1459 = vunpack.c.l.b16 %v351
  %v1460 = vunpack.c.h.b16 %v351
  %v1461 = vunpack.c.l.b16 %v352
  %v1462 = vunpack.c.l.b16 %v353
  %v1463 = vunpack.c.h.b16 %v353
  %v1464 = vunpack.c.l.b16 %v354
  %v1465 = vunpack.c.l.b16 %v355
  %v1466 = vunpack.c.h.b16 %v355
  %v1467 = vunpack.c.l.b16 %v356
  %v1468 = vunpack.c.l.b16 %v357
  %v1469 = vunpack.c.h.b16 %v357
  %v1470 = vunpack.c.l.b16 %v358
  %v1471 = vunpack.c.l.b16 %v359
  %v1472 = vunpack.c.h.b16 %v359
  %v1473 = vunpack.c.l.b16 %v360
  %v1474 = vunpack.c.l.b16 %v361
  %v1475 = vunpack.c.h.b16 %v361
  %v1476 = vunpack.c.l.b16 %v362
  %v1477 = vunpack.c.l.b16 %v363
  %v1478 = vunpack.c.h.b16 %v363
  %v1479 = vunpack.c.l.b16 %v364
  %v1480 = vunpack.c.l.b16 %v365
  %v1481 = vunpack.c.h.b16 %v365
  %v1482 = vunpack.c.l.b16 %v366
  %v1483 = vunpack.c.l.b16 %v367
  %v1484 = vunpack.c.h.b16 %v367
  %v1485 = vunpack.c.l.b16 %v368
  %v1486 = vunpack.c.l.b16 %v369
  %v1487 = vunpack.c.h.b16 %v369
  %v1488 = vunpack.c.l.b16 %v370
  %v1489 = vunpack.c.l.b16 %v371
  %v1490 = vunpack.c.h.b16 %v371
  %v1491 = vunpack.c.l.b16 %v372
  %v1492 = vunpack.c.l.b16 %v373
  %v1493 = vunpack.c.h.b16 %v373
  %v1494 = vunpack.c.l.b16 %v374
  %v1495 = vunpack.c.l.b16 %v375
  %v1496 = vunpack.c.h.b16 %v375
  %v1497 = vunpack.c.l.b16 %v376
  %v1498 = vunpack.c.l.b16 %v377
  %v1499 = vunpack.c.h.b16 %v377
  %v1500 = vunpack.c.l.b16 %v378
  %v1501 = vunpack.c.l.b16 %v379
  %v1502 = vunpack.c.h.b16 %v379
  %v1503 = vunpack.c.l.b16 %v380
  %v1504 = vunpack.c.l.b16 %v381
  %v1505 = vunpack.c.h.b16 %v381
  %v1506 = vunpack.c.l.b16 %v382
  %v1507 = vunpack.c.l.b16 %v383
  %v1508 = vunpack.c.h.b16 %v383
  %v1509 = vunpack.c.l.b16 %v384
  %v1510 = vunpack.c.l.b16 %v385
  %v1511 = vunpack.c.h.b16 %v385
  %v1512 = vunpack.c.l.b16 %v386
  %v1513 = vunpack.c.l.b16 %v387
  %v1514 = vunpack.c.h.b16 %v387
  %v1515 = vunpack.c.l.b16 %v388
  %v1516 = vunpack.c.l.b16 %v389
  %v1517 = vunpack.c.h.b16 %v389
  %v1518 = vunpack.c.l.b16 %v390
  %v1519 = vunpack.c.l.b16 %v391
  %v1520 = vunpack.c.h.b16 %v391
  %v1521 = vunpack.c.l.b16 %v392
  %v1522 = vunpack.c.l.b16 %v393
  %v1523 = vunpack.c.h.b16 %v393
  %v1524 = vunpack.c.l.b16 %v394
  %v1525 = vunpack.c.l.b16 %v395
  %v1526 = vunpack.c.h.b16 %v395
  %v1527 = vunpack.c.l.b16 %v396
  %v1528 = vunpack.c.l.b16 %v397
  %v1529 = vunpack.c.h.b16 %v397
  %v1530 = vunpack.c.l.b16 %v398
  %v1531 = vunpack.c.l.b16 %v399
  %v1532 = vunpack.c.h.b16 %v399
  %v1533 = vunpack.c.l.b16 %v400
  %v1534 = vunpack.c.l.b16 %v401
  %v1535 = vunpack.c.h.b16 %v401
  %v1536 = vunpack.c.l.b16 %v402
  %v1537 = vunpack.c.l.b16 %v403
  %v1538 = vunpack.c.h.b16 %v403
  %v1539 = vunpack.c.l.b16 %v404
  %v1540 = vunpack.c.l.b16 %v405
  %v1541 = vunpack.c.h.b16 %v405
  %v1542 = vunpack.c.l.b16 %v406
  %v1543 = vunpack.c.l.b16 %v407
  %v1544 = vunpack.c.h.b16 %v407
  %v1545 = vunpack.c.l.b16 %v408
  %v1546 = vunpack.c.l.b16 %v409
  %v1547 = vunpack.c.h.b16 %v409
  %v1548 = vunpack.c.l.b16 %v410
  %v1549 = vunpack.c.l.b16 %v411
  %v1550 = vunpack.c.h.b16 %v411
  %v1551 = vunpack.c.l.b16 %v412
  %v1552 = vunpack.c.l.b16 %v413
  %v1553 = vunpack.c.h.b16 %v413
  %v1554 = vunpack.c.l.b16 %v414
  %v1555 = vunpack.c.l.b16 %v415
  %v1556 = vunpack.c.h.b16 %v415
  %v1557 = vunpack.c.l.b16 %v416
  %v1558 = vunpack.c.l.b16 %v417
  %v1559 = vunpack.c.h.b16 %v417
  %v1560 = vunpack.c.l.b16 %v418
  %v1561 = vunpack.c.l.b16 %v419
  %v1562 = vunpack.c.h.b16 %v419
  %v1563 = vunpack.c.l.b16 %v420
  %v1564 = vunpack.c.l.b16 %v421
  %v1565 = vunpack.c.h.b16 %v421
  %v1566 = vunpack.c.l.b16 %v422
  %v1567 = vunpack.c.l.b16 %v423
  %v1568 = vunpack.c.h.b16 %v423
  %v1569 = vunpack.c.l.b16 %v424
  %v1570 = vunpack.c.l.b16 %v425
  %v1571 = vunpack.c.h.b16 %v425
  %v1572 = vunpack.c.l.b16 %v426
  %v1573 = vunpack.c.l.b16 %v427
  %v1574 = vunpack.c.h.b16 %v427
  %v1575 = vunpack.c.l.b16 %v428
  %v1576 = vunpack.c.l.b16 %v429
  %v1577 = vunpack.c.h.b16 %v429
  %v1578 = vunpack.c.l.b16 %v430
  %v1579 = vunpack.c.l.b16 %v431
  %v1580 = vunpack.c.h.b16 %v431
  %v1581 = vunpack.c.l.b16 %v432
  %v1582 = vunpack.c.l.b16 %v433
  %v1583 = vunpack.c.h.b16 %v433
  %v1584 = vunpack.c.l.b16 %v434
  %v1585 = vunpack.c.l.b16 %v435
  %v1586 = vunpack.c.h.b16 %v435
  %v1587 = vunpack.c.l.b16 %v436
  %v1588 = vunpack.c.l.b16 %v437
  %v1589 = vunpack.c.h.b16 %v437
  %v1590 = vunpack.c.l.b16 %v438
  %v1591 = vunpack.c.l.b16 %v439
  %v1592 = vunpack.c.h.b16 %v439
  %v1593 = vunpack.c.l.b16 %v440
  %v1594 = vunpack.c.l.b16 %v441
  %v1595 = vunpack.c.h.b16 %v441
  %v1596 = vunpack.c.l.b16 %v442
  %v1597 = vunpack.c.l.b16 %v443
  %v1598 = vunpack.c.h.b16 %v443
  %v1599 = vunpack.c.l.b16 %v444
  %v1600 = vunpack.c.l.b16 %v445
  %v1601 = vunpack.c.h.b16 %v445
  %v1602 = vunpack.c.l.b16 %v446
  %v1603 = vunpack.c.l.b16 %v447
  %v1604 = vunpack.c.h.b16 %v447
  %v1605 = vunpack.c.l.b16 %v448
  %v1606 = vunpack.c.l.b16 %v449
  %v1607 = vunpack.c.h.b16 %v449
  %v1608 = vunpack.c.l.b16 %v450
  %v1609 = vunpack.c.l.b16 %v451
  %v1610 = vunpack.c.h.b16 %v451
  %v1611 = vunpack.c.l.b16 %v452
  %v1612 = vunpack.c.l.b16 %v453
  %v1613 = vunpack.c.h.b16 %v453
  %v1614 = vunpack.c.l.b16 %v454
  %v1615 = vunpack.c.l.b16 %v455
  %v1616 = vunpack.c.h.b16 %v455
  %v1617 = vunpack.c.l.b16 %v456
  %v1618 = vunpack.c.l.b16 %v457
  %v1619 = vunpack.c.h.b16 %v457
  %v1620 = vunpack.c.l.b16 %v458
  %v1621 = vunpack.c.l.b16 %v459
  %v1622 = vunpack.c.h.b16 %v459
  %v1623 = vunpack.c.l.b16 %v460
  %v1624 = vunpack.c.l.b16 %v461
  %v1625 = vunpack.c.h.b16 %v461
  %v1626 = vunpack.c.l.b16 %v462
  %v1627 = vunpack.c.l.b16 %v463
  %v1628 = vunpack.c.h.b16 %v463
  %v1629 = vunpack.c.l.b16 %v464
  %v1630 = vunpack.c.l.b16 %v465
  %v1631 = vunpack.c.h.b16 %v465
  %v1632 = vunpack.c.l.b16 %v466
  %v1633 = vpack.c.b16 %v988, %v985
  %v1634 = vpack.c.b16 %v989, %v986
  %v1635 = vpack.c.b16 %v990, %v987
  %v1636 = vpack.c.b16 %v994, %v991
  %v1637 = vpack.c.b16 %v995, %v992
  %v1638 = vpack.c.b16 %v996, %v993
  %v1639 = vpack.c.b16 %v1000, %v997
  %v1640 = vpack.c.b16 %v1001, %v998
  %v1641 = vpack.c.b16 %v1002, %v999
  %v1642 = vpack.c.b16 %v1006, %v1003
  %v1643 = vpack.c.b16 %v1007, %v1004
  %v1644 = vpack.c.b16 %v1008, %v1005
  %v1645 = vpack.c.b16 %v1012, %v1009
  %v1646 = vpack.c.b16 %v1013, %v1010
  %v1647 = vpack.c.b16 %v1014, %v1011
  %v1648 = vpack.c.b16 %v1018, %v1015
  %v1649 = vpack.c.b16 %v1019, %v1016
  %v1650 = vpack.c.b16 %v1020, %v1017
  %v1651 = vpack.c.b16 %v1024, %v1021
  %v1652 = vpack.c.b16 %v1025, %v1022
  %v1653 = vpack.c.b16 %v1026, %v1023
  %v1654 = vpack.c.b16 %v1030, %v1027
  %v1655 = vpack.c.b16 %v1031, %v1028
  %v1656 = vpack.c.b16 %v1032, %v1029
  %v1657 = vpack.c.b16 %v1036, %v1033
  %v1658 = vpack.c.b16 %v1037, %v1034
  %v1659 = vpack.c.b16 %v1038, %v1035
  %v1660 = vpack.c.b16 %v1042, %v1039
  %v1661 = vpack.c.b16 %v1043, %v1040
  %v1662 = vpack.c.b16 %v1044, %v1041
  %v1663 = vpack.c.b16 %v1048, %v1045
  %v1664 = vpack.c.b16 %v1049, %v1046
  %v1665 = vpack.c.b16 %v1050, %v1047
  %v1666 = vpack.c.b16 %v1054, %v1051
  %v1667 = vpack.c.b16 %v1055, %v1052
  %v1668 = vpack.c.b16 %v1056, %v1053
  %v1669 = vpack.c.b16 %v1060, %v1057
  %v1670 = vpack.c.b16 %v1061, %v1058
  %v1671 = vpack.c.b16 %v1062, %v1059
  %v1672 = vpack.c.b16 %v1066, %v1063
  %v1673 = vpack.c.b16 %v1067, %v1064
  %v1674 = vpack.c.b16 %v1068, %v1065
  %v1675 = vpack.c.b16 %v1072, %v1069
  %v1676 = vpack.c.b16 %v1073, %v1070
  %v1677 = vpack.c.b16 %v1074, %v1071
  %v1678 = vpack.c.b16 %v1078, %v1075
  %v1679 = vpack.c.b16 %v1079, %v1076
  %v1680 = vpack.c.b16 %v1080, %v1077
  %v1681 = vpack.c.b16 %v1084, %v1081
  %v1682 = vpack.c.b16 %v1085, %v1082
  %v1683 = vpack.c.b16 %v1086, %v1083
  %v1684 = vpack.c.b16 %v1090, %v1087
  %v1685 = vpack.c.b16 %v1091, %v1088
  %v1686 = vpack.c.b16 %v1092, %v1089
  %v1687 = vpack.c.b16 %v1096, %v1093
  %v1688 = vpack.c.b16 %v1097, %v1094
  %v1689 = vpack.c.b16 %v1098, %v1095
  %v1690 = vpack.c.b16 %v1102, %v1099
  %v1691 = vpack.c.b16 %v1103, %v1100
  %v1692 = vpack.c.b16 %v1104, %v1101
  %v1693 = vpack.c.b16 %v1108, %v1105
  %v1694 = vpack.c.b16 %v1109, %v1106
  %v1695 = vpack.c.b16 %v1110, %v1107
  %v1696 = vpack.c.b16 %v1114, %v1111
  %v1697 = vpack.c.b16 %v1115, %v1112
  %v1698 = vpack.c.b16 %v1116, %v1113
  %v1699 = vpack.c.b16 %v1120, %v1117
  %v1700 = vpack.c.b16 %v1121, %v1118
  %v1701 = vpack.c.b16 %v1122, %v1119
  %v1702 = vpack.c.b16 %v1126, %v1123
  %v1703 = vpack.c.b16 %v1127, %v1124
  %v1704 = vpack.c.b16 %v1128, %v1125
  %v1705 = vpack.c.b16 %v1132, %v1129
  %v1706 = vpack.c.b16 %v1133, %v1130
  %v1707 = vpack.c.b16 %v1134, %v1131
  %v1708 = vpack.c.b16 %v1138, %v1135
  %v1709 = vpack.c.b16 %v1139, %v1136
  %v1710 = vpack.c.b16 %v1140, %v1137
  %v1711 = vpack.c.b16 %v1144, %v1141
  %v1712 = vpack.c.b16 %v1145, %v1142
  %v1713 = vpack.c.b16 %v1146, %v1143
  %v1714 = vpack.c.b16 %v1150, %v1147
  %v1715 = vpack.c.b16 %v1151, %v1148
  %v1716 = vpack.c.b16 %v1152, %v1149
  %v1717 = vpack.c.b16 %v1156, %v1153
  %v1718 = vpack.c.b16 %v1157, %v1154
  %v1719 = vpack.c.b16 %v1158, %v1155
  %v1720 = vpack.c.b16 %v1162, %v1159
  %v1721 = vpack.c.b16 %v1163, %v1160
  %v1722 = vpack.c.b16 %v1164, %v1161
  %v1723 = vpack.c.b16 %v1168, %v1165
  %v1724 = vpack.c.b16 %v1169, %v1166
  %v1725 = vpack.c.b16 %v1170, %v1167
  %v1726 = vpack.c.b16 %v1174, %v1171
  %v1727 = vpack.c.b16 %v1175, %v1172
  %v1728 = vpack.c.b16 %v1176, %v1173
  %v1729 = vpack.c.b16 %v1180, %v1177
  %v1730 = vpack.c.b16 %v1181, %v1178
  %v1731 = vpack.c.b16 %v1182, %v1179
  %v1732 = vpack.c.b16 %v1186, %v1183
  %v1733 = vpack.c.b16 %v1187, %v1184
  %v1734 = vpack.c.b16 %v1188, %v1185
  %v1735 = vpack.c.b16 %v1192, %v1189
  %v1736 = vpack.c.b16 %v1193, %v1190
  %v1737 = vpack.c.b16 %v1194, %v1191
  %v1738 = vpack.c.b16 %v1198, %v1195
  %v1739 = vpack.c.b16 %v1199, %v1196
  %v1740 = vpack.c.b16 %v1200, %v1197
  %v1741 = vpack.c.b16 %v1204, %v1201
  %v1742 = vpack.c.b16 %v1205, %v1202
  %v1743 = vpack.c.b16 %v1206, %v1203
  %v1744 = vpack.c.b16 %v1210, %v1207
  %v1745 = vpack.c.b16 %v1211, %v1208
  %v1746 = vpack.c.b16 %v1212, %v1209
  %v1747 = vpack.c.b16 %v1216, %v1213
  %v1748 = vpack.c.b16 %v1217, %v1214
  %v1749 = vpack.c.b16 %v1218, %v1215
  %v1750 = vpack.c.b16 %v1222, %v1219
  %v1751 = vpack.c.b16 %v1223, %v1220
  %v1752 = vpack.c.b16 %v1224, %v1221
  %v1753 = vpack.c.b16 %v1228, %v1225
  %v1754 = vpack.c.b16 %v1229, %v1226
  %v1755 = vpack.c.b16 %v1230, %v1227
  %v1756 = vpack.c.b16 %v1234, %v1231
  %v1757 = vpack.c.b16 %v1235, %v1232
  %v1758 = vpack.c.b16 %v1236, %v1233
  %v1759 = vpack.c.b16 %v1240, %v1237
  %v1760 = vpack.c.b16 %v1241, %v1238
  %v1761 = vpack.c.b16 %v1242, %v1239
  %v1762 = vpack.c.b16 %v1246, %v1243
  %v1763 = vpack.c.b16 %v1247, %v1244
  %v1764 = vpack.c.b16 %v1248, %v1245
  %v1765 = vpack.c.b16 %v1252, %v1249
  %v1766 = vpack.c.b16 %v1253, %v1250
  %v1767 = vpack.c.b16 %v1254, %v1251
  %v1768 = vpack.c.b16 %v1258, %v1255
  %v1769 = vpack.c.b16 %v1259, %v1256
  %v1770 = vpack.c.b16 %v1260, %v1257
  %v1771 = vpack.c.b16 %v1264, %v1261
  %v1772 = vpack.c.b16 %v1265, %v1262
  %v1773 = vpack.c.b16 %v1266, %v1263
  %v1774 = vpack.c.b16 %v1270, %v1267
  %v1775 = vpack.c.b16 %v1271, %v1268
  %v1776 = vpack.c.b16 %v1272, %v1269
  %v1777 = vpack.c.b16 %v1276, %v1273
  %v1778 = vpack.c.b16 %v1277, %v1274
  %v1779 = vpack.c.b16 %v1278, %v1275
  %v1780 = vpack.c.b16 %v1282, %v1279
  %v1781 = vpack.c.b16 %v1283, %v1280
  %v1782 = vpack.c.b16 %v1284, %v1281
  %v1783 = vpack.c.b16 %v1288, %v1285
  %v1784 = vpack.c.b16 %v1289, %v1286
  %v1785 = vpack.c.b16 %v1290, %v1287
  %v1786 = vpack.c.b16 %v1294, %v1291
  %v1787 = vpack.c.b16 %v1295, %v1292
  %v1788 = vpack.c.b16 %v1296, %v1293
  %v1789 = vpack.c.b16 %v1300, %v1297
  %v1790 = vpack.c.b16 %v1301, %v1298
  %v1791 = vpack.c.b16 %v1302, %v1299
  %v1792 = vpack.c.b16 %v1306, %v1303
  %v1793 = vpack.c.b16 %v1307, %v1304
  %v1794 = vpack.c.b16 %v1308, %v1305
  %v1795 = vpack.c.b16 %v1312, %v1309
  %v1796 = vpack.c.b16 %v1313, %v1310
  %v1797 = vpack.c.b16 %v1314, %v1311
  %v1798 = vpack.c.b16 %v1318, %v1315
  %v1799 = vpack.c.b16 %v1319, %v1316
  %v1800 = vpack.c.b16 %v1320, %v1317
  %v1801 = vpack.c.b16 %v1324, %v1321
  %v1802 = vpack.c.b16 %v1325, %v1322
  %v1803 = vpack.c.b16 %v1326, %v1323
  %v1804 = vpack.c.b16 %v1330, %v1327
  %v1805 = vpack.c.b16 %v1331, %v1328
  %v1806 = vpack.c.b16 %v1332, %v1329
  %v1807 = vpack.c.b16 %v1336, %v1333
  %v1808 = vpack.c.b16 %v1337, %v1334
  %v1809 = vpack.c.b16 %v1338, %v1335
  %v1810 = vpack.c.b16 %v1342, %v1339
  %v1811 = vpack.c.b16 %v1343, %v1340
  %v1812 = vpack.c.b16 %v1344, %v1341
  %v1813 = vpack.c.b16 %v1348, %v1345
  %v1814 = vpack.c.b16 %v1349, %v1346
  %v1815 = vpack.c.b16 %v1350, %v1347
  %v1816 = vpack.c.b16 %v1354, %v1351
  %v1817 = vpack.c.b16 %v1355, %v1352
  %v1818 = vpack.c.b16 %v1356, %v1353
  %v1819 = vpack.c.b16 %v1360, %v1357
  %v1820 = vpack.c.b16 %v1361, %v1358
  %v1821 = vpack.c.b16 %v1362, %v1359
  %v1822 = vpack.c.b16 %v1366, %v1363
  %v1823 = vpack.c.b16 %v1367, %v1364
  %v1824 = vpack.c.b16 %v1368, %v1365
  %v1825 = vpack.c.b16 %v1372, %v1369
  %v1826 = vpack.c.b16 %v1373, %v1370
  %v1827 = vpack.c.b16 %v1374, %v1371
  %v1828 = vpack.c.b16 %v1378, %v1375
  %v1829 = vpack.c.b16 %v1379, %v1376
  %v1830 = vpack.c.b16 %v1380, %v1377
  %v1831 = vpack.c.b16 %v1384, %v1381
  %v1832 = vpack.c.b16 %v1385, %v1382
  %v1833 = vpack.c.b16 %v1386, %v1383
  %v1834 = vpack.c.b16 %v1390, %v1387
  %v1835 = vpack.c.b16 %v1391, %v1388
  %v1836 = vpack.c.b16 %v1392, %v1389
  %v1837 = vpack.c.b16 %v1396, %v1393
  %v1838 = vpack.c.b16 %v1397, %v1394
  %v1839 = vpack.c.b16 %v1398, %v1395
  %v1840 = vpack.c.b16 %v1402, %v1399
  %v1841 = vpack.c.b16 %v1403, %v1400
  %v1842 = vpack.c.b16 %v1404, %v1401
  %v1843 = vpack.c.b16 %v1408, %v1405
  %v1844 = vpack.c.b16 %v1409, %v1406
  %v1845 = vpack.c.b16 %v1410, %v1407
  %v1846 = vpack.c.b16 %v1414, %v1411
  %v1847 = vpack.c.b16 %v1415, %v1412
  %v1848 = vpack.c.b16 %v1416, %v1413
  %v1849 = vpack.c.b16 %v1420, %v1417
  %v1850 = vpack.c.b16 %v1421, %v1418
  %v1851 = vpack.c.b16 %v1422, %v1419
  %v1852 = vpack.c.b16 %v1426, %v1423
  %v1853 = vpack.c.b16 %v1427, %v1424
  %v1854 = vpack.c.b16 %v1428, %v1425
  %v1855 = vpack.c.b16 %v1432, %v1429
  %v1856 = vpack.c.b16 %v1433, %v1430
  %v1857 = vpack.c.b16 %v1434, %v1431
  %v1858 = vpack.c.b16 %v1438, %v1435
  %v1859 = vpack.c.b16 %v1439, %v1436
  %v1860 = vpack.c.b16 %v1440, %v1437
  %v1861 = vpack.c.b16 %v1444, %v1441
  %v1862 = vpack.c.b16 %v1445, %v1442
  %v1863 = vpack.c.b16 %v1446, %v1443
  %v1864 = vpack.c.b16 %v1450, %v1447
  %v1865 = vpack.c.b16 %v1451, %v1448
  %v1866 = vpack.c.b16 %v1452, %v1449
  %v1867 = vpack.c.b16 %v1456, %v1453
  %v1868 = vpack.c.b16 %v1457, %v1454
  %v1869 = vpack.c.b16 %v1458, %v1455
  %v1870 = vpack.c.b16 %v1462, %v1459
  %v1871 = vpack.c.b16 %v1463, %v1460
  %v1872 = vpack.c.b16 %v1464, %v1461
  %v1873 = vpack.c.b16 %v1468, %v1465
  %v1874 = vpack.c.b16 %v1469, %v1466
  %v1875 = vpack.c.b16 %v1470, %v1467
  %v1876 = vpack.c.b16 %v1474, %v1471
  %v1877 = vpack.c.b16 %v1475, %v1472
  %v1878 = vpack.c.b16 %v1476, %v1473
  %v1879 = vpack.c.b16 %v1480, %v1477
  %v1880 = vpack.c.b16 %v1481, %v1478
  %v1881 = vpack.c.b16 %v1482, %v1479
  %v1882 = vpack.c.b16 %v1486, %v1483
  %v1883 = vpack.c.b16 %v1487, %v1484
  %v1884 = vpack.c.b16 %v1488, %v1485
  %v1885 = vpack.c.b16 %v1492, %v1489
  %v1886 = vpack.c.b16 %v1493, %v1490
  %v1887 = vpack.c.b16 %v1494, %v1491
  %v1888 = vpack.c.b16 %v1498, %v1495
  %v1889 = vpack.c.b16 %v1499, %v1496
  %v1890 = vpack.c.b16 %v1500, %v1497
  %v1891 = vpack.c.b16 %v1504, %v1501
  %v1892 = vpack.c.b16 %v1505, %v1502
  %v1893 = vpack.c.b16 %v1506, %v1503
  %v1894 = vpack.c.b16 %v1510, %v1507
  %v1895 = vpack.c.b16 %v1511, %v1508
  %v1896 = vpack.c.b16 %v1512, %v1509
  %v1897 = vpack.c.b16 %v1516, %v1513
  %v1898 = vpack.c.b16 %v1517, %v1514
  %v1899 = vpack.c.b16 %v1518, %v1515
  %v1900 = vpack.c.b16 %v1522, %v1519
  %v1901 = vpack.c.b16 %v1523, %v1520
  %v1902 = vpack.c.b16 %v1524, %v1521
  %v1903 = vpack.c.b16 %v1528, %v1525
  %v1904 = vpack.c.b16 %v1529, %v1526
  %v1905 = vpack.c.b16 %v1530, %v1527
  %v1906 = vpack.c.b16 %v1534, %v1531
  %v1907 = vpack.c.b16 %v1535, %v1532
  %v1908 = vpack.c.b16 %v1536, %v1533
  %v1909 = vpack.c.b16 %v1540, %v1537
  %v1910 = vpack.c.b16 %v1541, %v1538
  %v1911 = vpack.c.b16 %v1542, %v1539
  %v1912 = vpack.c.b16 %v1546, %v1543
  %v1913 = vpack.c.b16 %v1547, %v1544
  %v1914 = vpack.c.b16 %v1548, %v1545
  %v1915 = vpack.c.b16 %v1552, %v1549
  %v1916 = vpack.c.b16 %v1553, %v1550
  %v1917 = vpack.c.b16 %v1554, %v1551
  %v1918 = vpack.c.b16 %v1558, %v1555
  %v1919 = vpack.c.b16 %v1559, %v1556
  %v1920 = vpack.c.b16 %v1560, %v1557
  %v1921 = vpack.c.b16 %v1564, %v1561
  %v1922 = vpack.c.b16 %v1565, %v1562
  %v1923 = vpack.c.b16 %v1566, %v1563
  %v1924 = vpack.c.b16 %v1570, %v1567
  %v1925 = vpack.c.b16 %v1571, %v1568
  %v1926 = vpack.c.b16 %v1572, %v1569
  %v1927 = vpack.c.b16 %v1576, %v1573
  %v1928 = vpack.c.b16 %v1577, %v1574
  %v1929 = vpack.c.b16 %v1578, %v1575
  %v1930 = vpack.c.b16 %v1582, %v1579
  %v1931 = vpack.c.b16 %v1583, %v1580
  %v1932 = vpack.c.b16 %v1584, %v1581
  %v1933 = vpack.c.b16 %v1588, %v1585
  %v1934 = vpack.c.b16 %v1589, %v1586
  %v1935 = vpack.c.b16 %v1590, %v1587
  %v1936 = vpack.c.b16 %v1594, %v1591
  %v1937 = vpack.c.b16 %v1595, %v1592
  %v1938 = vpack.c.b16 %v1596, %v1593
  %v1939 = vpack.c.b16 %v1600, %v1597
  %v1940 = vpack.c.b16 %v1601, %v1598
  %v1941 = vpack.c.b16 %v1602, %v1599
  %v1942 = vpack.c.b16 %v1606, %v1603
  %v1943 = vpack.c.b16 %v1607, %v1604
  %v1944 = vpack.c.b16 %v1608, %v1605
  %v1945 = vpack.c.b16 %v1612, %v1609
  %v1946 = vpack.c.b16 %v1613, %v1610
  %v1947 = vpack.c.b16 %v1614, %v1611
  %v1948 = vpack.c.b16 %v1618, %v1615
  %v1949 = vpack.c.b16 %v1619, %v1616
  %v1950 = vpack.c.b16 %v1620, %v1617
  %v1951 = vpack.c.b16 %v1624, %v1621
  %v1952 = vpack.c.b16 %v1625, %v1622
  %v1953 = vpack.c.b16 %v1626, %v1623
  %v1954 = vpack.c.b16 %v1630, %v1627
  %v1955 = vpack.c.b16 %v1631, %v1628
  %v1956 = vpack.c.b16 %v1632, %v1629
  %vm2281 = vcmask 523264
  %v2283 = vsel %vm2281, %v539, 0
  %2285 = vmatprep.subr.bf16.mxu0 %v1655
  %2286 = vmatpush1.bf16.msra.mxu0 %v1654
  %2287 = vmatprep.subr.bf16.mxu0 %v1652
  %2288 = vmatpush1.bf16.msra.mxu0 %v1651
  %2289 = vmatprep.subr.bf16.mxu0 %v1649
  %2290 = vmatpush1.bf16.msra.mxu0 %v1648
  %2291 = vmatprep.subr.bf16.mxu0 %v1646
  %2292 = vmatpush1.bf16.msra.mxu0 %v1645
  %2293 = vmatprep.subr.bf16.mxu0 %v1643
  %2294 = vmatpush1.bf16.msra.mxu0 %v1642
  %2295 = vmatprep.subr.bf16.mxu0 %v1640
  %2296 = vmatpush1.bf16.msra.mxu0 %v1639
  %2297 = vmatprep.subr.bf16.mxu0 %v1637
  %2298 = vmatpush1.bf16.msra.mxu0 %v1636
  %2299 = vmatprep.subr.bf16.mxu0 %v1634
  %2300 = vmatpush1.bf16.msra.mxu0 %v1633
  %2301 = vmatprep.subr.bf16.mxu0 %v1679
  %2302 = vmatpush2.bf16.msra.mxu0 %v1678
  %2303 = vmatprep.subr.bf16.mxu0 %v1676
  %2304 = vmatpush2.bf16.msra.mxu0 %v1675
  %2305 = vmatprep.subr.bf16.mxu0 %v1673
  %2306 = vmatpush2.bf16.msra.mxu0 %v1672
  %2307 = vmatprep.subr.bf16.mxu0 %v1670
  %2308 = vmatpush2.bf16.msra.mxu0 %v1669
  %2309 = vmatprep.subr.bf16.mxu0 %v1667
  %2310 = vmatpush2.bf16.msra.mxu0 %v1666
  %2311 = vmatprep.subr.bf16.mxu0 %v1664
  %2312 = vmatpush2.bf16.msra.mxu0 %v1663
  %2313 = vmatprep.subr.bf16.mxu0 %v1661
  %2314 = vmatpush2.bf16.msra.mxu0 %v1660
  %2315 = vmatprep.subr.bf16.mxu0 %v1658
  %2316 = vmatpush2.bf16.msra.mxu0 %v1657
  %2317 = vmatprep.mubr.bf16.mxu0 %v527
  %2318 = vmatmul.mubr.bf16.gmra.mxu0 %v526
  %v2319 = vpop.f32.mrf.mxu0
  %v2320 = vadd.f32 %v472, %v2319
  %v2321 = vpop.f32.mrf.mxu0
  %v2322 = vadd.f32 %v476, %v2321
  %v2323 = vpop.f32.mrf.mxu0
  %v2324 = vadd.f32 %v472, %v2323
  %v2325 = vpop.f32.mrf.mxu0
  %v2326 = vadd.f32 %v476, %v2325
  %2327 = vdwg.mxu0
  %2328 = vmatprep.subr.bf16.mxu0 %v1703
  %2329 = vmatpush1.bf16.msra.mxu0 %v1702
  %2330 = vmatprep.subr.bf16.mxu0 %v1700
  %2331 = vmatpush1.bf16.msra.mxu0 %v1699
  %2332 = vmatprep.subr.bf16.mxu0 %v1697
  %2333 = vmatpush1.bf16.msra.mxu0 %v1696
  %2334 = vmatprep.subr.bf16.mxu0 %v1694
  %2335 = vmatpush1.bf16.msra.mxu0 %v1693
  %2336 = vmatprep.subr.bf16.mxu0 %v1691
  %2337 = vmatpush1.bf16.msra.mxu0 %v1690
  %2338 = vmatprep.subr.bf16.mxu0 %v1688
  %2339 = vmatpush1.bf16.msra.mxu0 %v1687
  %2340 = vmatprep.subr.bf16.mxu0 %v1685
  %2341 = vmatpush1.bf16.msra.mxu0 %v1684
  %2342 = vmatprep.subr.bf16.mxu0 %v1682
  %2343 = vmatpush1.bf16.msra.mxu0 %v1681
  %2344 = vmatprep.subr.bf16.mxu0 %v1727
  %2345 = vmatpush2.bf16.msra.mxu0 %v1726
  %2346 = vmatprep.subr.bf16.mxu0 %v1724
  %2347 = vmatpush2.bf16.msra.mxu0 %v1723
  %2348 = vmatprep.subr.bf16.mxu0 %v1721
  %2349 = vmatpush2.bf16.msra.mxu0 %v1720
  %2350 = vmatprep.subr.bf16.mxu0 %v1718
  %2351 = vmatpush2.bf16.msra.mxu0 %v1717
  %2352 = vmatprep.subr.bf16.mxu0 %v1715
  %2353 = vmatpush2.bf16.msra.mxu0 %v1714
  %2354 = vmatprep.subr.bf16.mxu0 %v1712
  %2355 = vmatpush2.bf16.msra.mxu0 %v1711
  %2356 = vmatprep.subr.bf16.mxu0 %v1709
  %2357 = vmatpush2.bf16.msra.mxu0 %v1708
  %2358 = vmatprep.subr.bf16.mxu0 %v1706
  %2359 = vmatpush2.bf16.msra.mxu0 %v1705
  %2360 = vmatprep.mubr.bf16.mxu0 %v529
  %2361 = vmatmul.mubr.bf16.gmra.mxu0 %v528
  %v2362 = vpop.f32.mrf.mxu0
  %v2363 = vadd.f32 %v2320, %v2362
  %v2364 = vpop.f32.mrf.mxu0
  %v2365 = vadd.f32 %v2322, %v2364
  %v2366 = vpop.f32.mrf.mxu0
  %v2367 = vadd.f32 %v2324, %v2366
  %v2368 = vpop.f32.mrf.mxu0
  %v2369 = vadd.f32 %v2326, %v2368
  %2370 = vdwg.mxu0
  %2371 = vmatprep.subr.bf16.mxu0 %v1751
  %2372 = vmatpush1.bf16.msra.mxu0 %v1750
  %2373 = vmatprep.subr.bf16.mxu0 %v1748
  %2374 = vmatpush1.bf16.msra.mxu0 %v1747
  %2375 = vmatprep.subr.bf16.mxu0 %v1745
  %2376 = vmatpush1.bf16.msra.mxu0 %v1744
  %2377 = vmatprep.subr.bf16.mxu0 %v1742
  %2378 = vmatpush1.bf16.msra.mxu0 %v1741
  %2379 = vmatprep.subr.bf16.mxu0 %v1739
  %2380 = vmatpush1.bf16.msra.mxu0 %v1738
  %2381 = vmatprep.subr.bf16.mxu0 %v1736
  %2382 = vmatpush1.bf16.msra.mxu0 %v1735
  %2383 = vmatprep.subr.bf16.mxu0 %v1733
  %2384 = vmatpush1.bf16.msra.mxu0 %v1732
  %2385 = vmatprep.subr.bf16.mxu0 %v1730
  %2386 = vmatpush1.bf16.msra.mxu0 %v1729
  %2387 = vmatprep.subr.bf16.mxu0 %v1775
  %2388 = vmatpush2.bf16.msra.mxu0 %v1774
  %2389 = vmatprep.subr.bf16.mxu0 %v1772
  %2390 = vmatpush2.bf16.msra.mxu0 %v1771
  %2391 = vmatprep.subr.bf16.mxu0 %v1769
  %2392 = vmatpush2.bf16.msra.mxu0 %v1768
  %2393 = vmatprep.subr.bf16.mxu0 %v1766
  %2394 = vmatpush2.bf16.msra.mxu0 %v1765
  %2395 = vmatprep.subr.bf16.mxu0 %v1763
  %2396 = vmatpush2.bf16.msra.mxu0 %v1762
  %2397 = vmatprep.subr.bf16.mxu0 %v1760
  %2398 = vmatpush2.bf16.msra.mxu0 %v1759
  %2399 = vmatprep.subr.bf16.mxu0 %v1757
  %2400 = vmatpush2.bf16.msra.mxu0 %v1756
  %2401 = vmatprep.subr.bf16.mxu0 %v1754
  %2402 = vmatpush2.bf16.msra.mxu0 %v1753
  %2403 = vmatprep.mubr.bf16.mxu0 %v531
  %2404 = vmatmul.mubr.bf16.gmra.mxu0 %v530
  %v2405 = vpop.f32.mrf.mxu0
  %v2406 = vadd.f32 %v2363, %v2405
  %v2407 = vpop.f32.mrf.mxu0
  %v2408 = vadd.f32 %v2365, %v2407
  %v2409 = vpop.f32.mrf.mxu0
  %v2410 = vadd.f32 %v2367, %v2409
  %v2411 = vpop.f32.mrf.mxu0
  %v2412 = vadd.f32 %v2369, %v2411
  %2413 = vdwg.mxu0
  %2414 = vmatprep.subr.bf16.mxu0 %v1799
  %2415 = vmatpush1.bf16.msra.mxu0 %v1798
  %2416 = vmatprep.subr.bf16.mxu0 %v1796
  %2417 = vmatpush1.bf16.msra.mxu0 %v1795
  %2418 = vmatprep.subr.bf16.mxu0 %v1793
  %2419 = vmatpush1.bf16.msra.mxu0 %v1792
  %2420 = vmatprep.subr.bf16.mxu0 %v1790
  %2421 = vmatpush1.bf16.msra.mxu0 %v1789
  %2422 = vmatprep.subr.bf16.mxu0 %v1787
  %2423 = vmatpush1.bf16.msra.mxu0 %v1786
  %2424 = vmatprep.subr.bf16.mxu0 %v1784
  %2425 = vmatpush1.bf16.msra.mxu0 %v1783
  %2426 = vmatprep.subr.bf16.mxu0 %v1781
  %2427 = vmatpush1.bf16.msra.mxu0 %v1780
  %2428 = vmatprep.subr.bf16.mxu0 %v1778
  %2429 = vmatpush1.bf16.msra.mxu0 %v1777
  %2430 = vmatprep.subr.bf16.mxu0 %v1823
  %2431 = vmatpush2.bf16.msra.mxu0 %v1822
  %2432 = vmatprep.subr.bf16.mxu0 %v1820
  %2433 = vmatpush2.bf16.msra.mxu0 %v1819
  %2434 = vmatprep.subr.bf16.mxu0 %v1817
  %2435 = vmatpush2.bf16.msra.mxu0 %v1816
  %2436 = vmatprep.subr.bf16.mxu0 %v1814
  %2437 = vmatpush2.bf16.msra.mxu0 %v1813
  %2438 = vmatprep.subr.bf16.mxu0 %v1811
  %2439 = vmatpush2.bf16.msra.mxu0 %v1810
  %2440 = vmatprep.subr.bf16.mxu0 %v1808
  %2441 = vmatpush2.bf16.msra.mxu0 %v1807
  %2442 = vmatprep.subr.bf16.mxu0 %v1805
  %2443 = vmatpush2.bf16.msra.mxu0 %v1804
  %2444 = vmatprep.subr.bf16.mxu0 %v1802
  %2445 = vmatpush2.bf16.msra.mxu0 %v1801
  %2446 = vmatprep.mubr.bf16.mxu0 %v533
  %2447 = vmatmul.mubr.bf16.gmra.mxu0 %v532
  %v2448 = vpop.f32.mrf.mxu0
  %v2449 = vadd.f32 %v2406, %v2448
  %v2450 = vpop.f32.mrf.mxu0
  %v2451 = vadd.f32 %v2408, %v2450
  %v2452 = vpop.f32.mrf.mxu0
  %v2453 = vadd.f32 %v2410, %v2452
  %v2454 = vpop.f32.mrf.mxu0
  %v2455 = vadd.f32 %v2412, %v2454
  %2456 = vdwg.mxu0
  %2457 = vmatprep.subr.bf16.mxu0 %v1847
  %2458 = vmatpush1.bf16.msra.mxu0 %v1846
  %2459 = vmatprep.subr.bf16.mxu0 %v1844
  %2460 = vmatpush1.bf16.msra.mxu0 %v1843
  %2461 = vmatprep.subr.bf16.mxu0 %v1841
  %2462 = vmatpush1.bf16.msra.mxu0 %v1840
  %2463 = vmatprep.subr.bf16.mxu0 %v1838
  %2464 = vmatpush1.bf16.msra.mxu0 %v1837
  %2465 = vmatprep.subr.bf16.mxu0 %v1835
  %2466 = vmatpush1.bf16.msra.mxu0 %v1834
  %2467 = vmatprep.subr.bf16.mxu0 %v1832
  %2468 = vmatpush1.bf16.msra.mxu0 %v1831
  %2469 = vmatprep.subr.bf16.mxu0 %v1829
  %2470 = vmatpush1.bf16.msra.mxu0 %v1828
  %2471 = vmatprep.subr.bf16.mxu0 %v1826
  %2472 = vmatpush1.bf16.msra.mxu0 %v1825
  %2473 = vmatprep.subr.bf16.mxu0 %v1871
  %2474 = vmatpush2.bf16.msra.mxu0 %v1870
  %2475 = vmatprep.subr.bf16.mxu0 %v1868
  %2476 = vmatpush2.bf16.msra.mxu0 %v1867
  %2477 = vmatprep.subr.bf16.mxu0 %v1865
  %2478 = vmatpush2.bf16.msra.mxu0 %v1864
  %2479 = vmatprep.subr.bf16.mxu0 %v1862
  %2480 = vmatpush2.bf16.msra.mxu0 %v1861
  %2481 = vmatprep.subr.bf16.mxu0 %v1859
  %2482 = vmatpush2.bf16.msra.mxu0 %v1858
  %2483 = vmatprep.subr.bf16.mxu0 %v1856
  %2484 = vmatpush2.bf16.msra.mxu0 %v1855
  %2485 = vmatprep.subr.bf16.mxu0 %v1853
  %2486 = vmatpush2.bf16.msra.mxu0 %v1852
  %2487 = vmatprep.subr.bf16.mxu0 %v1850
  %2488 = vmatpush2.bf16.msra.mxu0 %v1849
  %2489 = vmatprep.mubr.bf16.mxu0 %v535
  %2490 = vmatmul.mubr.bf16.gmra.mxu0 %v534
  %v2491 = vpop.f32.mrf.mxu0
  %v2492 = vadd.f32 %v2449, %v2491
  %v2493 = vpop.f32.mrf.mxu0
  %v2494 = vadd.f32 %v2451, %v2493
  %v2495 = vpop.f32.mrf.mxu0
  %v2496 = vadd.f32 %v2453, %v2495
  %v2497 = vpop.f32.mrf.mxu0
  %v2498 = vadd.f32 %v2455, %v2497
  %2499 = vdwg.mxu0
  %2500 = vmatprep.subr.bf16.mxu0 %v1895
  %2501 = vmatpush1.bf16.msra.mxu0 %v1894
  %2502 = vmatprep.subr.bf16.mxu0 %v1892
  %2503 = vmatpush1.bf16.msra.mxu0 %v1891
  %2504 = vmatprep.subr.bf16.mxu0 %v1889
  %2505 = vmatpush1.bf16.msra.mxu0 %v1888
  %2506 = vmatprep.subr.bf16.mxu0 %v1886
  %2507 = vmatpush1.bf16.msra.mxu0 %v1885
  %2508 = vmatprep.subr.bf16.mxu0 %v1883
  %2509 = vmatpush1.bf16.msra.mxu0 %v1882
  %2510 = vmatprep.subr.bf16.mxu0 %v1880
  %2511 = vmatpush1.bf16.msra.mxu0 %v1879
  %2512 = vmatprep.subr.bf16.mxu0 %v1877
  %2513 = vmatpush1.bf16.msra.mxu0 %v1876
  %2514 = vmatprep.subr.bf16.mxu0 %v1874
  %2515 = vmatpush1.bf16.msra.mxu0 %v1873
  %2516 = vmatprep.subr.bf16.mxu0 %v1919
  %2517 = vmatpush2.bf16.msra.mxu0 %v1918
  %2518 = vmatprep.subr.bf16.mxu0 %v1916
  %2519 = vmatpush2.bf16.msra.mxu0 %v1915
  %2520 = vmatprep.subr.bf16.mxu0 %v1913
  %2521 = vmatpush2.bf16.msra.mxu0 %v1912
  %2522 = vmatprep.subr.bf16.mxu0 %v1910
  %2523 = vmatpush2.bf16.msra.mxu0 %v1909
  %2524 = vmatprep.subr.bf16.mxu0 %v1907
  %2525 = vmatpush2.bf16.msra.mxu0 %v1906
  %2526 = vmatprep.subr.bf16.mxu0 %v1904
  %2527 = vmatpush2.bf16.msra.mxu0 %v1903
  %2528 = vmatprep.subr.bf16.mxu0 %v1901
  %2529 = vmatpush2.bf16.msra.mxu0 %v1900
  %2530 = vmatprep.subr.bf16.mxu0 %v1898
  %2531 = vmatpush2.bf16.msra.mxu0 %v1897
  %2532 = vmatprep.mubr.bf16.mxu0 %v537
  %2533 = vmatmul.mubr.bf16.gmra.mxu0 %v536
  %v2534 = vpop.f32.mrf.mxu0
  %v2535 = vadd.f32 %v2492, %v2534
  %v2536 = vpop.f32.mrf.mxu0
  %v2537 = vadd.f32 %v2494, %v2536
  %v2538 = vpop.f32.mrf.mxu0
  %v2539 = vadd.f32 %v2496, %v2538
  %v2540 = vpop.f32.mrf.mxu0
  %v2541 = vadd.f32 %v2498, %v2540
  %2542 = vdwg.mxu0
  %2543 = vmatprep.subr.bf16.mxu0 %v1943
  %2544 = vmatpush1.bf16.msra.mxu0 %v1942
  %2545 = vmatprep.subr.bf16.mxu0 %v1940
  %2546 = vmatpush1.bf16.msra.mxu0 %v1939
  %2547 = vmatprep.subr.bf16.mxu0 %v1937
  %2548 = vmatpush1.bf16.msra.mxu0 %v1936
  %2549 = vmatprep.subr.bf16.mxu0 %v1934
  %2550 = vmatpush1.bf16.msra.mxu0 %v1933
  %2551 = vmatprep.subr.bf16.mxu0 %v1931
  %2552 = vmatpush1.bf16.msra.mxu0 %v1930
  %2553 = vmatprep.subr.bf16.mxu0 %v1928
  %2554 = vmatpush1.bf16.msra.mxu0 %v1927
  %2555 = vmatprep.subr.bf16.mxu0 %v1925
  %2556 = vmatpush1.bf16.msra.mxu0 %v1924
  %2557 = vmatprep.subr.bf16.mxu0 %v1922
  %2558 = vmatpush1.bf16.msra.mxu0 %v1921
  %2559 = vmatprep.subr.bf16.mxu0 0
  %2560 = vmatpush2.bf16.msra.mxu0 0
  %2561 = vmatprep.subr.bf16.mxu0 0
  %2562 = vmatpush2.bf16.msra.mxu0 0
  %2563 = vmatprep.subr.bf16.mxu0 0
  %2564 = vmatpush2.bf16.msra.mxu0 0
  %2565 = vmatprep.subr.bf16.mxu0 0
  %2566 = vmatpush2.bf16.msra.mxu0 0
  %2567 = vmatprep.subr.bf16.mxu0 %v1955
  %2568 = vmatpush2.bf16.msra.mxu0 %v1954
  %2569 = vmatprep.subr.bf16.mxu0 %v1952
  %2570 = vmatpush2.bf16.msra.mxu0 %v1951
  %2571 = vmatprep.subr.bf16.mxu0 %v1949
  %2572 = vmatpush2.bf16.msra.mxu0 %v1948
  %2573 = vmatprep.subr.bf16.mxu0 %v1946
  %2574 = vmatpush2.bf16.msra.mxu0 %v1945
  %2575 = vmatprep.mubr.bf16.mxu0 %v2283
  %2576 = vmatmul.mubr.bf16.gmra.mxu0 %v538
  %v2577 = vpop.f32.mrf.mxu0
  %v2578 = vadd.f32 %v2535, %v2577
  %v2579 = vpop.f32.mrf.mxu0
  %v2580 = vadd.f32 %v2537, %v2579
  %v2581 = vpop.f32.mrf.mxu0
  %v2582 = vadd.f32 %v2539, %v2581
  %v2583 = vpop.f32.mrf.mxu0
  %v2584 = vadd.f32 %v2541, %v2583
  %2585 = vdwg.mxu0
  %2586 = vmatprep.subr.bf16.mxu0 0
  %2587 = vmatpush1.bf16.msra.mxu0 %v1656
  %2588 = vmatprep.subr.bf16.mxu0 0
  %2589 = vmatpush1.bf16.msra.mxu0 %v1653
  %2590 = vmatprep.subr.bf16.mxu0 0
  %2591 = vmatpush1.bf16.msra.mxu0 %v1650
  %2592 = vmatprep.subr.bf16.mxu0 0
  %2593 = vmatpush1.bf16.msra.mxu0 %v1647
  %2594 = vmatprep.subr.bf16.mxu0 0
  %2595 = vmatpush1.bf16.msra.mxu0 %v1644
  %2596 = vmatprep.subr.bf16.mxu0 0
  %2597 = vmatpush1.bf16.msra.mxu0 %v1641
  %2598 = vmatprep.subr.bf16.mxu0 0
  %2599 = vmatpush1.bf16.msra.mxu0 %v1638
  %2600 = vmatprep.subr.bf16.mxu0 0
  %2601 = vmatpush1.bf16.msra.mxu0 %v1635
  %2602 = vmatprep.subr.bf16.mxu0 0
  %2603 = vmatpush2.bf16.msra.mxu0 %v1680
  %2604 = vmatprep.subr.bf16.mxu0 0
  %2605 = vmatpush2.bf16.msra.mxu0 %v1677
  %2606 = vmatprep.subr.bf16.mxu0 0
  %2607 = vmatpush2.bf16.msra.mxu0 %v1674
  %2608 = vmatprep.subr.bf16.mxu0 0
  %2609 = vmatpush2.bf16.msra.mxu0 %v1671
  %2610 = vmatprep.subr.bf16.mxu0 0
  %2611 = vmatpush2.bf16.msra.mxu0 %v1668
  %2612 = vmatprep.subr.bf16.mxu0 0
  %2613 = vmatpush2.bf16.msra.mxu0 %v1665
  %2614 = vmatprep.subr.bf16.mxu0 0
  %2615 = vmatpush2.bf16.msra.mxu0 %v1662
  %2616 = vmatprep.subr.bf16.mxu0 0
  %2617 = vmatpush2.bf16.msra.mxu0 %v1659
  %2618 = vmatprep.mubr.bf16.mxu0 %v527
  %2619 = vmatmul.mubr.bf16.gmra.mxu0 %v526
  %v2620 = vpop.f32.mrf.mxu0
  %v2621 = vadd.f32 %v480, %v2620
  %v2622 = vpop.f32.mrf.mxu0
  %v2623 = vpop.f32.mrf.mxu0
  %v2624 = vadd.f32 %v480, %v2623
  %v2625 = vpop.f32.mrf.mxu0
  %2626 = vdwg.mxu0
  %2627 = vmatprep.subr.bf16.mxu0 0
  %2628 = vmatpush1.bf16.msra.mxu0 %v1704
  %2629 = vmatprep.subr.bf16.mxu0 0
  %2630 = vmatpush1.bf16.msra.mxu0 %v1701
  %2631 = vmatprep.subr.bf16.mxu0 0
  %2632 = vmatpush1.bf16.msra.mxu0 %v1698
  %2633 = vmatprep.subr.bf16.mxu0 0
  %2634 = vmatpush1.bf16.msra.mxu0 %v1695
  %2635 = vmatprep.subr.bf16.mxu0 0
  %2636 = vmatpush1.bf16.msra.mxu0 %v1692
  %2637 = vmatprep.subr.bf16.mxu0 0
  %2638 = vmatpush1.bf16.msra.mxu0 %v1689
  %2639 = vmatprep.subr.bf16.mxu0 0
  %2640 = vmatpush1.bf16.msra.mxu0 %v1686
  %2641 = vmatprep.subr.bf16.mxu0 0
  %2642 = vmatpush1.bf16.msra.mxu0 %v1683
  %2643 = vmatprep.subr.bf16.mxu0 0
  %2644 = vmatpush2.bf16.msra.mxu0 %v1728
  %2645 = vmatprep.subr.bf16.mxu0 0
  %2646 = vmatpush2.bf16.msra.mxu0 %v1725
  %2647 = vmatprep.subr.bf16.mxu0 0
  %2648 = vmatpush2.bf16.msra.mxu0 %v1722
  %2649 = vmatprep.subr.bf16.mxu0 0
  %2650 = vmatpush2.bf16.msra.mxu0 %v1719
  %2651 = vmatprep.subr.bf16.mxu0 0
  %2652 = vmatpush2.bf16.msra.mxu0 %v1716
  %2653 = vmatprep.subr.bf16.mxu0 0
  %2654 = vmatpush2.bf16.msra.mxu0 %v1713
  %2655 = vmatprep.subr.bf16.mxu0 0
  %2656 = vmatpush2.bf16.msra.mxu0 %v1710
  %2657 = vmatprep.subr.bf16.mxu0 0
  %2658 = vmatpush2.bf16.msra.mxu0 %v1707
  %2659 = vmatprep.mubr.bf16.mxu0 %v529
  %2660 = vmatmul.mubr.bf16.gmra.mxu0 %v528
  %v2661 = vpop.f32.mrf.mxu0
  %v2662 = vadd.f32 %v2621, %v2661
  %v2663 = vpop.f32.mrf.mxu0
  %v2664 = vpop.f32.mrf.mxu0
  %v2665 = vadd.f32 %v2624, %v2664
  %v2666 = vpop.f32.mrf.mxu0
  %2667 = vdwg.mxu0
  %2668 = vmatprep.subr.bf16.mxu0 0
  %2669 = vmatpush1.bf16.msra.mxu0 %v1752
  %2670 = vmatprep.subr.bf16.mxu0 0
  %2671 = vmatpush1.bf16.msra.mxu0 %v1749
  %2672 = vmatprep.subr.bf16.mxu0 0
  %2673 = vmatpush1.bf16.msra.mxu0 %v1746
  %2674 = vmatprep.subr.bf16.mxu0 0
  %2675 = vmatpush1.bf16.msra.mxu0 %v1743
  %2676 = vmatprep.subr.bf16.mxu0 0
  %2677 = vmatpush1.bf16.msra.mxu0 %v1740
  %2678 = vmatprep.subr.bf16.mxu0 0
  %2679 = vmatpush1.bf16.msra.mxu0 %v1737
  %2680 = vmatprep.subr.bf16.mxu0 0
  %2681 = vmatpush1.bf16.msra.mxu0 %v1734
  %2682 = vmatprep.subr.bf16.mxu0 0
  %2683 = vmatpush1.bf16.msra.mxu0 %v1731
  %2684 = vmatprep.subr.bf16.mxu0 0
  %2685 = vmatpush2.bf16.msra.mxu0 %v1776
  %2686 = vmatprep.subr.bf16.mxu0 0
  %2687 = vmatpush2.bf16.msra.mxu0 %v1773
  %2688 = vmatprep.subr.bf16.mxu0 0
  %2689 = vmatpush2.bf16.msra.mxu0 %v1770
  %2690 = vmatprep.subr.bf16.mxu0 0
  %2691 = vmatpush2.bf16.msra.mxu0 %v1767
  %2692 = vmatprep.subr.bf16.mxu0 0
  %2693 = vmatpush2.bf16.msra.mxu0 %v1764
  %2694 = vmatprep.subr.bf16.mxu0 0
  %2695 = vmatpush2.bf16.msra.mxu0 %v1761
  %2696 = vmatprep.subr.bf16.mxu0 0
  %2697 = vmatpush2.bf16.msra.mxu0 %v1758
  %2698 = vmatprep.subr.bf16.mxu0 0
  %2699 = vmatpush2.bf16.msra.mxu0 %v1755
  %2700 = vmatprep.mubr.bf16.mxu0 %v531
  %2701 = vmatmul.mubr.bf16.gmra.mxu0 %v530
  %v2702 = vpop.f32.mrf.mxu0
  %v2703 = vadd.f32 %v2662, %v2702
  %v2704 = vpop.f32.mrf.mxu0
  %v2705 = vpop.f32.mrf.mxu0
  %v2706 = vadd.f32 %v2665, %v2705
  %v2707 = vpop.f32.mrf.mxu0
  %2708 = vdwg.mxu0
  %2709 = vmatprep.subr.bf16.mxu0 0
  %2710 = vmatpush1.bf16.msra.mxu0 %v1800
  %2711 = vmatprep.subr.bf16.mxu0 0
  %2712 = vmatpush1.bf16.msra.mxu0 %v1797
  %2713 = vmatprep.subr.bf16.mxu0 0
  %2714 = vmatpush1.bf16.msra.mxu0 %v1794
  %2715 = vmatprep.subr.bf16.mxu0 0
  %2716 = vmatpush1.bf16.msra.mxu0 %v1791
  %2717 = vmatprep.subr.bf16.mxu0 0
  %2718 = vmatpush1.bf16.msra.mxu0 %v1788
  %2719 = vmatprep.subr.bf16.mxu0 0
  %2720 = vmatpush1.bf16.msra.mxu0 %v1785
  %2721 = vmatprep.subr.bf16.mxu0 0
  %2722 = vmatpush1.bf16.msra.mxu0 %v1782
  %2723 = vmatprep.subr.bf16.mxu0 0
  %2724 = vmatpush1.bf16.msra.mxu0 %v1779
  %2725 = vmatprep.subr.bf16.mxu0 0
  %2726 = vmatpush2.bf16.msra.mxu0 %v1824
  %2727 = vmatprep.subr.bf16.mxu0 0
  %2728 = vmatpush2.bf16.msra.mxu0 %v1821
  %2729 = vmatprep.subr.bf16.mxu0 0
  %2730 = vmatpush2.bf16.msra.mxu0 %v1818
  %2731 = vmatprep.subr.bf16.mxu0 0
  %2732 = vmatpush2.bf16.msra.mxu0 %v1815
  %2733 = vmatprep.subr.bf16.mxu0 0
  %2734 = vmatpush2.bf16.msra.mxu0 %v1812
  %2735 = vmatprep.subr.bf16.mxu0 0
  %2736 = vmatpush2.bf16.msra.mxu0 %v1809
  %2737 = vmatprep.subr.bf16.mxu0 0
  %2738 = vmatpush2.bf16.msra.mxu0 %v1806
  %2739 = vmatprep.subr.bf16.mxu0 0
  %2740 = vmatpush2.bf16.msra.mxu0 %v1803
  %2741 = vmatprep.mubr.bf16.mxu0 %v533
  %2742 = vmatmul.mubr.bf16.gmra.mxu0 %v532
  %v2743 = vpop.f32.mrf.mxu0
  %v2744 = vadd.f32 %v2703, %v2743
  %v2745 = vpop.f32.mrf.mxu0
  %v2746 = vpop.f32.mrf.mxu0
  %v2747 = vadd.f32 %v2706, %v2746
  %v2748 = vpop.f32.mrf.mxu0
  %2749 = vdwg.mxu0
  %2750 = vmatprep.subr.bf16.mxu0 0
  %2751 = vmatpush1.bf16.msra.mxu0 %v1848
  %2752 = vmatprep.subr.bf16.mxu0 0
  %2753 = vmatpush1.bf16.msra.mxu0 %v1845
  %2754 = vmatprep.subr.bf16.mxu0 0
  %2755 = vmatpush1.bf16.msra.mxu0 %v1842
  %2756 = vmatprep.subr.bf16.mxu0 0
  %2757 = vmatpush1.bf16.msra.mxu0 %v1839
  %2758 = vmatprep.subr.bf16.mxu0 0
  %2759 = vmatpush1.bf16.msra.mxu0 %v1836
  %2760 = vmatprep.subr.bf16.mxu0 0
  %2761 = vmatpush1.bf16.msra.mxu0 %v1833
  %2762 = vmatprep.subr.bf16.mxu0 0
  %2763 = vmatpush1.bf16.msra.mxu0 %v1830
  %2764 = vmatprep.subr.bf16.mxu0 0
  %2765 = vmatpush1.bf16.msra.mxu0 %v1827
  %2766 = vmatprep.subr.bf16.mxu0 0
  %2767 = vmatpush2.bf16.msra.mxu0 %v1872
  %2768 = vmatprep.subr.bf16.mxu0 0
  %2769 = vmatpush2.bf16.msra.mxu0 %v1869
  %2770 = vmatprep.subr.bf16.mxu0 0
  %2771 = vmatpush2.bf16.msra.mxu0 %v1866
  %2772 = vmatprep.subr.bf16.mxu0 0
  %2773 = vmatpush2.bf16.msra.mxu0 %v1863
  %2774 = vmatprep.subr.bf16.mxu0 0
  %2775 = vmatpush2.bf16.msra.mxu0 %v1860
  %2776 = vmatprep.subr.bf16.mxu0 0
  %2777 = vmatpush2.bf16.msra.mxu0 %v1857
  %2778 = vmatprep.subr.bf16.mxu0 0
  %2779 = vmatpush2.bf16.msra.mxu0 %v1854
  %2780 = vmatprep.subr.bf16.mxu0 0
  %2781 = vmatpush2.bf16.msra.mxu0 %v1851
  %2782 = vmatprep.mubr.bf16.mxu0 %v535
  %2783 = vmatmul.mubr.bf16.gmra.mxu0 %v534
  %v2784 = vpop.f32.mrf.mxu0
  %v2785 = vadd.f32 %v2744, %v2784
  %v2786 = vpop.f32.mrf.mxu0
  %v2787 = vpop.f32.mrf.mxu0
  %v2788 = vadd.f32 %v2747, %v2787
  %v2789 = vpop.f32.mrf.mxu0
  %2790 = vdwg.mxu0
  %2791 = vmatprep.subr.bf16.mxu0 0
  %2792 = vmatpush1.bf16.msra.mxu0 %v1896
  %2793 = vmatprep.subr.bf16.mxu0 0
  %2794 = vmatpush1.bf16.msra.mxu0 %v1893
  %2795 = vmatprep.subr.bf16.mxu0 0
  %2796 = vmatpush1.bf16.msra.mxu0 %v1890
  %2797 = vmatprep.subr.bf16.mxu0 0
  %2798 = vmatpush1.bf16.msra.mxu0 %v1887
  %2799 = vmatprep.subr.bf16.mxu0 0
  %2800 = vmatpush1.bf16.msra.mxu0 %v1884
  %2801 = vmatprep.subr.bf16.mxu0 0
  %2802 = vmatpush1.bf16.msra.mxu0 %v1881
  %2803 = vmatprep.subr.bf16.mxu0 0
  %2804 = vmatpush1.bf16.msra.mxu0 %v1878
  %2805 = vmatprep.subr.bf16.mxu0 0
  %2806 = vmatpush1.bf16.msra.mxu0 %v1875
  %2807 = vmatprep.subr.bf16.mxu0 0
  %2808 = vmatpush2.bf16.msra.mxu0 %v1920
  %2809 = vmatprep.subr.bf16.mxu0 0
  %2810 = vmatpush2.bf16.msra.mxu0 %v1917
  %2811 = vmatprep.subr.bf16.mxu0 0
  %2812 = vmatpush2.bf16.msra.mxu0 %v1914
  %2813 = vmatprep.subr.bf16.mxu0 0
  %2814 = vmatpush2.bf16.msra.mxu0 %v1911
  %2815 = vmatprep.subr.bf16.mxu0 0
  %2816 = vmatpush2.bf16.msra.mxu0 %v1908
  %2817 = vmatprep.subr.bf16.mxu0 0
  %2818 = vmatpush2.bf16.msra.mxu0 %v1905
  %2819 = vmatprep.subr.bf16.mxu0 0
  %2820 = vmatpush2.bf16.msra.mxu0 %v1902
  %2821 = vmatprep.subr.bf16.mxu0 0
  %2822 = vmatpush2.bf16.msra.mxu0 %v1899
  %2823 = vmatprep.mubr.bf16.mxu0 %v537
  %2824 = vmatmul.mubr.bf16.gmra.mxu0 %v536
  %v2825 = vpop.f32.mrf.mxu0
  %v2826 = vadd.f32 %v2785, %v2825
  %v2827 = vpop.f32.mrf.mxu0
  %v2828 = vpop.f32.mrf.mxu0
  %v2829 = vadd.f32 %v2788, %v2828
  %v2830 = vpop.f32.mrf.mxu0
  %2831 = vdwg.mxu0
  %2832 = vmatprep.subr.bf16.mxu0 0
  %2833 = vmatpush1.bf16.msra.mxu0 %v1944
  %2834 = vmatprep.subr.bf16.mxu0 0
  %2835 = vmatpush1.bf16.msra.mxu0 %v1941
  %2836 = vmatprep.subr.bf16.mxu0 0
  %2837 = vmatpush1.bf16.msra.mxu0 %v1938
  %2838 = vmatprep.subr.bf16.mxu0 0
  %2839 = vmatpush1.bf16.msra.mxu0 %v1935
  %2840 = vmatprep.subr.bf16.mxu0 0
  %2841 = vmatpush1.bf16.msra.mxu0 %v1932
  %2842 = vmatprep.subr.bf16.mxu0 0
  %2843 = vmatpush1.bf16.msra.mxu0 %v1929
  %2844 = vmatprep.subr.bf16.mxu0 0
  %2845 = vmatpush1.bf16.msra.mxu0 %v1926
  %2846 = vmatprep.subr.bf16.mxu0 0
  %2847 = vmatpush1.bf16.msra.mxu0 %v1923
  %2848 = vmatprep.subr.bf16.mxu0 0
  %2849 = vmatpush2.bf16.msra.mxu0 0
  %2850 = vmatprep.subr.bf16.mxu0 0
  %2851 = vmatpush2.bf16.msra.mxu0 0
  %2852 = vmatprep.subr.bf16.mxu0 0
  %2853 = vmatpush2.bf16.msra.mxu0 0
  %2854 = vmatprep.subr.bf16.mxu0 0
  %2855 = vmatpush2.bf16.msra.mxu0 0
  %2856 = vmatprep.subr.bf16.mxu0 0
  %2857 = vmatpush2.bf16.msra.mxu0 %v1956
  %2858 = vmatprep.subr.bf16.mxu0 0
  %2859 = vmatpush2.bf16.msra.mxu0 %v1953
  %2860 = vmatprep.subr.bf16.mxu0 0
  %2861 = vmatpush2.bf16.msra.mxu0 %v1950
  %2862 = vmatprep.subr.bf16.mxu0 0
  %2863 = vmatpush2.bf16.msra.mxu0 %v1947
  %2864 = vmatprep.mubr.bf16.mxu0 %v2283
  %2865 = vmatmul.mubr.bf16.gmra.mxu0 %v538
  %v2866 = vpop.f32.mrf.mxu0
  %v2867 = vadd.f32 %v2826, %v2866
  %v2868 = vpop.f32.mrf.mxu0
  %v2869 = vpop.f32.mrf.mxu0
  %v2870 = vadd.f32 %v2829, %v2869
  %v2871 = vpop.f32.mrf.mxu0
  %2872 = vdwg.mxu0
  %v2873 = vpack.c.bf16 %v2582, %v2578
  %v2874 = vpack.c.bf16 %v2584, %v2580
  %v2875 = vpack.c.bf16 %v2870, %v2867
  %v2876 = vld [vmem:[%s3] sm:$0xff]
  %v2877 = vld [vmem:[%s3 + $0x8] sm:$0xff]
  %v2878 = vld [vmem:[%s3 + $0x10] sm:$0xff]
  %v2879 = vld [vmem:[%s3 + $0x18] sm:$0xff]
  %v2880 = vld [vmem:[%s3 + $0x20] sm:$0xff]
  %v2881 = vld [vmem:[%s3 + $0x28] sm:$0xff]
  %v2882 = vld [vmem:[%s3 + $0x30] sm:$0xff]
  %v2883 = vld [vmem:[%s3 + $0x38] sm:$0xff]
  %v2884 = vld [vmem:[%s3 + $0x40] sm:$0xff]
  %v2885 = vld [vmem:[%s3 + $0x48] sm:$0xff]
  %v2886 = vld [vmem:[%s3 + $0x50] sm:$0xff]
  %v2887 = vld [vmem:[%s3 + $0x58] sm:$0xff]
  %v2888 = vld [vmem:[%s3 + $0x60] sm:$0xff]
  %v2889 = vld [vmem:[%s3 + $0x68] sm:$0xff]
  %v2890 = vld [vmem:[%s3 + $0x70] sm:$0xff]
  %v2891 = vld [vmem:[%s3 + $0x78] sm:$0xff]
  %v2892 = vld [vmem:[%s3 + $0x80] sm:$0xff]
  %v2893 = vld [vmem:[%s3 + $0x88] sm:$0xff]
  %v2894 = vld [vmem:[%s3 + $0x90] sm:$0xff]
  %v2895 = vld [vmem:[%s3 + $0x98] sm:$0xff]
  %v2896 = vld [vmem:[%s3 + $0xa0] sm:$0xff]
  %v2897 = vld [vmem:[%s3 + $0xa8] sm:$0xff]
  %v2898 = vld [vmem:[%s3 + $0xb0] sm:$0xff]
  %v2899 = vld [vmem:[%s3 + $0xb8] sm:$0xff]
  %v2900 = vld [vmem:[%s3 + $0xc0] sm:$0xff]
  %v2901 = vld [vmem:[%s3 + $0xc8] sm:$0xff]
  %v2902 = vld [vmem:[%s3 + $0xd0] sm:$0xff]
  %v2903 = vld [vmem:[%s3 + $0xd8] sm:$0xff]
  %v2904 = vld [vmem:[%s3 + $0xe0] sm:$0xff]
  %v2905 = vld [vmem:[%s3 + $0xe8] sm:$0xff]
  %v2906 = vld [vmem:[%s3 + $0xf0] sm:$0xff]
  %v2907 = vld [vmem:[%s3 + $0xf8] sm:$0xff]
  %v2908 = vld [vmem:[%s3 + $0x100] sm:$0xff]
  %v2909 = vld [vmem:[%s3 + $0x108] sm:$0xff]
  %v2910 = vld [vmem:[%s3 + $0x110] sm:$0xff]
  %v2911 = vld [vmem:[%s3 + $0x118] sm:$0xff]
  %v2912 = vld [vmem:[%s3 + $0x120] sm:$0xff]
  %v2913 = vld [vmem:[%s3 + $0x128] sm:$0xff]
  %v2914 = vld [vmem:[%s3 + $0x130] sm:$0xff]
  %v2915 = vld [vmem:[%s3 + $0x138] sm:$0xff]
  %v2916 = vld [vmem:[%s3 + $0x140] sm:$0xff]
  %v2917 = vld [vmem:[%s3 + $0x148] sm:$0xff]
  %v2918 = vld [vmem:[%s3 + $0x150] sm:$0xff]
  %v2919 = vld [vmem:[%s3 + $0x158] sm:$0xff]
  %v2920 = vld [vmem:[%s3 + $0x160] sm:$0xff]
  %v2921 = vld [vmem:[%s3 + $0x168] sm:$0xff]
  %v2922 = vld [vmem:[%s3 + $0x170] sm:$0xff]
  %v2923 = vld [vmem:[%s3 + $0x178] sm:$0xff]
  %v2924 = vld [vmem:[%s4] sm:$0x3]
  %v2926 = vlaneseq
  %v2927 = vshrl.u32 %v2926, 7
  %v2928 = vsub.s32 0, %v2927
  %v2929 = vrot.slane %v2924, %v2928
  %v2930 = vlaneseq
  %v2931 = vshrl.u32 %v2930, 7
  %v2932 = vsub.s32 1, %v2931
  %v2933 = vrot.slane %v2924, %v2932
  %v2984 = vunpack.c.l.b16 %v2876
  %v2985 = vunpack.c.h.b16 %v2876
  %v2986 = vunpack.c.l.b16 %v2877
  %v2987 = vunpack.c.h.b16 %v2877
  %v2988 = vunpack.c.l.b16 %v2878
  %v2989 = vunpack.c.h.b16 %v2878
  %v2990 = vunpack.c.l.b16 %v2879
  %v2991 = vunpack.c.h.b16 %v2879
  %v2992 = vunpack.c.l.b16 %v2880
  %v2993 = vunpack.c.h.b16 %v2880
  %v2994 = vunpack.c.l.b16 %v2881
  %v2995 = vunpack.c.h.b16 %v2881
  %v2996 = vunpack.c.l.b16 %v2882
  %v2997 = vunpack.c.h.b16 %v2882
  %v2998 = vunpack.c.l.b16 %v2883
  %v2999 = vunpack.c.h.b16 %v2883
  %v3000 = vunpack.c.l.b16 %v2884
  %v3001 = vunpack.c.h.b16 %v2884
  %v3002 = vunpack.c.l.b16 %v2885
  %v3003 = vunpack.c.h.b16 %v2885
  %v3004 = vunpack.c.l.b16 %v2886
  %v3005 = vunpack.c.h.b16 %v2886
  %v3006 = vunpack.c.l.b16 %v2887
  %v3007 = vunpack.c.h.b16 %v2887
  %v3008 = vunpack.c.l.b16 %v2888
  %v3009 = vunpack.c.h.b16 %v2888
  %v3010 = vunpack.c.l.b16 %v2889
  %v3011 = vunpack.c.h.b16 %v2889
  %v3012 = vunpack.c.l.b16 %v2890
  %v3013 = vunpack.c.h.b16 %v2890
  %v3014 = vunpack.c.l.b16 %v2891
  %v3015 = vunpack.c.h.b16 %v2891
  %v3016 = vunpack.c.l.b16 %v2892
  %v3017 = vunpack.c.h.b16 %v2892
  %v3018 = vunpack.c.l.b16 %v2893
  %v3019 = vunpack.c.h.b16 %v2893
  %v3020 = vunpack.c.l.b16 %v2894
  %v3021 = vunpack.c.h.b16 %v2894
  %v3022 = vunpack.c.l.b16 %v2895
  %v3023 = vunpack.c.h.b16 %v2895
  %v3024 = vunpack.c.l.b16 %v2896
  %v3025 = vunpack.c.h.b16 %v2896
  %v3026 = vunpack.c.l.b16 %v2897
  %v3027 = vunpack.c.h.b16 %v2897
  %v3028 = vunpack.c.l.b16 %v2898
  %v3029 = vunpack.c.h.b16 %v2898
  %v3030 = vunpack.c.l.b16 %v2899
  %v3031 = vunpack.c.h.b16 %v2899
  %v3032 = vunpack.c.l.b16 %v2900
  %v3033 = vunpack.c.h.b16 %v2900
  %v3034 = vunpack.c.l.b16 %v2901
  %v3035 = vunpack.c.h.b16 %v2901
  %v3036 = vunpack.c.l.b16 %v2902
  %v3037 = vunpack.c.h.b16 %v2902
  %v3038 = vunpack.c.l.b16 %v2903
  %v3039 = vunpack.c.h.b16 %v2903
  %v3040 = vunpack.c.l.b16 %v2904
  %v3041 = vunpack.c.h.b16 %v2904
  %v3042 = vunpack.c.l.b16 %v2905
  %v3043 = vunpack.c.h.b16 %v2905
  %v3044 = vunpack.c.l.b16 %v2906
  %v3045 = vunpack.c.h.b16 %v2906
  %v3046 = vunpack.c.l.b16 %v2907
  %v3047 = vunpack.c.h.b16 %v2907
  %v3048 = vunpack.c.l.b16 %v2908
  %v3049 = vunpack.c.h.b16 %v2908
  %v3050 = vunpack.c.l.b16 %v2909
  %v3051 = vunpack.c.h.b16 %v2909
  %v3052 = vunpack.c.l.b16 %v2910
  %v3053 = vunpack.c.h.b16 %v2910
  %v3054 = vunpack.c.l.b16 %v2911
  %v3055 = vunpack.c.h.b16 %v2911
  %v3056 = vunpack.c.l.b16 %v2912
  %v3057 = vunpack.c.h.b16 %v2912
  %v3058 = vunpack.c.l.b16 %v2913
  %v3059 = vunpack.c.h.b16 %v2913
  %v3060 = vunpack.c.l.b16 %v2914
  %v3061 = vunpack.c.h.b16 %v2914
  %v3062 = vunpack.c.l.b16 %v2915
  %v3063 = vunpack.c.h.b16 %v2915
  %v3064 = vunpack.c.l.b16 %v2916
  %v3065 = vunpack.c.h.b16 %v2916
  %v3066 = vunpack.c.l.b16 %v2917
  %v3067 = vunpack.c.h.b16 %v2917
  %v3068 = vunpack.c.l.b16 %v2918
  %v3069 = vunpack.c.h.b16 %v2918
  %v3070 = vunpack.c.l.b16 %v2919
  %v3071 = vunpack.c.h.b16 %v2919
  %v3072 = vunpack.c.l.b16 %v2920
  %v3073 = vunpack.c.h.b16 %v2920
  %v3074 = vunpack.c.l.b16 %v2921
  %v3075 = vunpack.c.h.b16 %v2921
  %v3076 = vunpack.c.l.b16 %v2922
  %v3077 = vunpack.c.h.b16 %v2922
  %v3078 = vunpack.c.l.b16 %v2923
  %v3079 = vunpack.c.h.b16 %v2923
  %v3080 = vpack.c.b16 %v2986, %v2984
  %v3081 = vpack.c.b16 %v2987, %v2985
  %v3082 = vpack.c.b16 %v2990, %v2988
  %v3083 = vpack.c.b16 %v2991, %v2989
  %v3084 = vpack.c.b16 %v2994, %v2992
  %v3085 = vpack.c.b16 %v2995, %v2993
  %v3086 = vpack.c.b16 %v2998, %v2996
  %v3087 = vpack.c.b16 %v2999, %v2997
  %v3088 = vpack.c.b16 %v3002, %v3000
  %v3089 = vpack.c.b16 %v3003, %v3001
  %v3090 = vpack.c.b16 %v3006, %v3004
  %v3091 = vpack.c.b16 %v3007, %v3005
  %v3092 = vpack.c.b16 %v3010, %v3008
  %v3093 = vpack.c.b16 %v3011, %v3009
  %v3094 = vpack.c.b16 %v3014, %v3012
  %v3095 = vpack.c.b16 %v3015, %v3013
  %v3096 = vpack.c.b16 %v3018, %v3016
  %v3097 = vpack.c.b16 %v3019, %v3017
  %v3098 = vpack.c.b16 %v3022, %v3020
  %v3099 = vpack.c.b16 %v3023, %v3021
  %v3100 = vpack.c.b16 %v3026, %v3024
  %v3101 = vpack.c.b16 %v3027, %v3025
  %v3102 = vpack.c.b16 %v3030, %v3028
  %v3103 = vpack.c.b16 %v3031, %v3029
  %v3104 = vpack.c.b16 %v3034, %v3032
  %v3105 = vpack.c.b16 %v3035, %v3033
  %v3106 = vpack.c.b16 %v3038, %v3036
  %v3107 = vpack.c.b16 %v3039, %v3037
  %v3108 = vpack.c.b16 %v3042, %v3040
  %v3109 = vpack.c.b16 %v3043, %v3041
  %v3110 = vpack.c.b16 %v3046, %v3044
  %v3111 = vpack.c.b16 %v3047, %v3045
  %v3112 = vpack.c.b16 %v3050, %v3048
  %v3113 = vpack.c.b16 %v3051, %v3049
  %v3114 = vpack.c.b16 %v3054, %v3052
  %v3115 = vpack.c.b16 %v3055, %v3053
  %v3116 = vpack.c.b16 %v3058, %v3056
  %v3117 = vpack.c.b16 %v3059, %v3057
  %v3118 = vpack.c.b16 %v3062, %v3060
  %v3119 = vpack.c.b16 %v3063, %v3061
  %v3120 = vpack.c.b16 %v3066, %v3064
  %v3121 = vpack.c.b16 %v3067, %v3065
  %v3122 = vpack.c.b16 %v3070, %v3068
  %v3123 = vpack.c.b16 %v3071, %v3069
  %v3124 = vpack.c.b16 %v3074, %v3072
  %v3125 = vpack.c.b16 %v3075, %v3073
  %v3126 = vpack.c.b16 %v3078, %v3076
  %v3127 = vpack.c.b16 %v3079, %v3077
  %3176 = vmatprep.subr.bf16.mxu0 %v3095
  %3177 = vmatpush1.bf16.msra.mxu0 %v3094
  %3178 = vmatprep.subr.bf16.mxu0 %v3093
  %3179 = vmatpush1.bf16.msra.mxu0 %v3092
  %3180 = vmatprep.subr.bf16.mxu0 %v3091
  %3181 = vmatpush1.bf16.msra.mxu0 %v3090
  %3182 = vmatprep.subr.bf16.mxu0 %v3089
  %3183 = vmatpush1.bf16.msra.mxu0 %v3088
  %3184 = vmatprep.subr.bf16.mxu0 %v3087
  %3185 = vmatpush1.bf16.msra.mxu0 %v3086
  %3186 = vmatprep.subr.bf16.mxu0 %v3085
  %3187 = vmatpush1.bf16.msra.mxu0 %v3084
  %3188 = vmatprep.subr.bf16.mxu0 %v3083
  %3189 = vmatpush1.bf16.msra.mxu0 %v3082
  %3190 = vmatprep.subr.bf16.mxu0 %v3081
  %3191 = vmatpush1.bf16.msra.mxu0 %v3080
  %3192 = vmatprep.subr.bf16.mxu0 %v3111
  %3193 = vmatpush2.bf16.msra.mxu0 %v3110
  %3194 = vmatprep.subr.bf16.mxu0 %v3109
  %3195 = vmatpush2.bf16.msra.mxu0 %v3108
  %3196 = vmatprep.subr.bf16.mxu0 %v3107
  %3197 = vmatpush2.bf16.msra.mxu0 %v3106
  %3198 = vmatprep.subr.bf16.mxu0 %v3105
  %3199 = vmatpush2.bf16.msra.mxu0 %v3104
  %3200 = vmatprep.subr.bf16.mxu0 %v3103
  %3201 = vmatpush2.bf16.msra.mxu0 %v3102
  %3202 = vmatprep.subr.bf16.mxu0 %v3101
  %3203 = vmatpush2.bf16.msra.mxu0 %v3100
  %3204 = vmatprep.subr.bf16.mxu0 %v3099
  %3205 = vmatpush2.bf16.msra.mxu0 %v3098
  %3206 = vmatprep.subr.bf16.mxu0 %v3097
  %3207 = vmatpush2.bf16.msra.mxu0 %v3096
  %3208 = vmatprep.mubr.bf16.mxu0 %v2874
  %3209 = vmatmul.mubr.bf16.gmra.mxu0 %v2873
  %v3210 = vpop.f32.mrf.mxu0
  %v3211 = vadd.f32 %v2929, %v3210
  %v3212 = vpop.f32.mrf.mxu0
  %v3213 = vadd.f32 %v2933, %v3212
  %v3214 = vpop.f32.mrf.mxu0
  %v3215 = vadd.f32 %v2929, %v3214
  %v3216 = vpop.f32.mrf.mxu0
  %v3217 = vadd.f32 %v2933, %v3216
  %3218 = vdwg.mxu0
  %3219 = vmatprep.subr.bf16.mxu0 %v3127
  %3220 = vmatpush1.bf16.msra.mxu0 %v3126
  %3221 = vmatprep.subr.bf16.mxu0 %v3125
  %3222 = vmatpush1.bf16.msra.mxu0 %v3124
  %3223 = vmatprep.subr.bf16.mxu0 %v3123
  %3224 = vmatpush1.bf16.msra.mxu0 %v3122
  %3225 = vmatprep.subr.bf16.mxu0 %v3121
  %3226 = vmatpush1.bf16.msra.mxu0 %v3120
  %3227 = vmatprep.subr.bf16.mxu0 %v3119
  %3228 = vmatpush1.bf16.msra.mxu0 %v3118
  %3229 = vmatprep.subr.bf16.mxu0 %v3117
  %3230 = vmatpush1.bf16.msra.mxu0 %v3116
  %3231 = vmatprep.subr.bf16.mxu0 %v3115
  %3232 = vmatpush1.bf16.msra.mxu0 %v3114
  %3233 = vmatprep.subr.bf16.mxu0 %v3113
  %3234 = vmatpush1.bf16.msra.mxu0 %v3112
  %3235 = vmatprep.subr.bf16.mxu0 0
  %3236 = vmatpush2.bf16.msra.mxu0 0
  %3237 = vmatprep.subr.bf16.mxu0 0
  %3238 = vmatpush2.bf16.msra.mxu0 0
  %3239 = vmatprep.subr.bf16.mxu0 0
  %3240 = vmatpush2.bf16.msra.mxu0 0
  %3241 = vmatprep.subr.bf16.mxu0 0
  %3242 = vmatpush2.bf16.msra.mxu0 0
  %3243 = vmatprep.subr.bf16.mxu0 0
  %3244 = vmatpush2.bf16.msra.mxu0 0
  %3245 = vmatprep.subr.bf16.mxu0 0
  %3246 = vmatpush2.bf16.msra.mxu0 0
  %3247 = vmatprep.subr.bf16.mxu0 0
  %3248 = vmatpush2.bf16.msra.mxu0 0
  %3249 = vmatprep.subr.bf16.mxu0 0
  %3250 = vmatpush2.bf16.msra.mxu0 0
  %3251 = vmatprep.mubr.bf16.mxu0 0
  %3252 = vmatmul.mubr.bf16.gmra.mxu0 %v2875
  %v3253 = vpop.f32.mrf.mxu0
  %v3254 = vadd.f32 %v3211, %v3253
  %v3255 = vpop.f32.mrf.mxu0
  %v3256 = vadd.f32 %v3213, %v3255
  %v3257 = vpop.f32.mrf.mxu0
  %v3258 = vadd.f32 %v3215, %v3257
  %v3259 = vpop.f32.mrf.mxu0
  %v3260 = vadd.f32 %v3217, %v3259
  %3261 = vdwg.mxu0
  %3262 = vst [vmem:[%s5] sm:$0xff] %v3254
  %3263 = vst [vmem:[%s5 + $0x8] sm:$0xff] %v3256
  %3264 = vst [vmem:[%s5 + $0x10] sm:$0xff] %v3258
  %3265 = vst [vmem:[%s5 + $0x18] sm:$0xff] %v3260
  // Predicated region
  $region22: #{cnn_embedding_forward.7} parent=0 // pred_check
    _
  $region23: #{cnn_embedding_forward.7} parent=0 // pred_check_branch
    %3267 = sbr.rel (0) target = $region25
  $region24: #{cnn_embedding_forward.7} parent=0 // pred_region
    _
  $region25: #{cnn_embedding_forward.7} parent=0 // pred_fallthru
    _
  // Predicated region
  $region26: #{cnn_embedding_forward.7} parent=0 // pred_check
    _
  $region27: #{cnn_embedding_forward.7} parent=0 // pred_check_branch
    %3269 = sbr.rel (0) target = $region29
  $region28: #{cnn_embedding_forward.7} parent=0 // pred_region
    _
  $region29: #{cnn_embedding_forward.7} parent=0 // pred_fallthru
    _

</llo_original>
